<compile_context>
chip_gen: v7x
topology: tpu7x:2x2x1
jax: 0.10.0
libtpu: 0.0.40
codegen_flags: <defaults>
</compile_context>

<pallas_src>
import functools

import jax
import jax.numpy as jnp
from jax.experimental import pallas as pl
from jax.experimental.pallas import tpu as pltpu

KERNEL_SIZES = (5, 9, 13)
_NEG = -1e30


def _silu(z):
    return z * jax.nn.sigmoid(z)


def _make_spp_kernel(W, HW, nb, n_branch, precision):
    """Kernel for one grid step: an (nb, Cin, HW) block, flattened spatial on lanes."""

    def kernel(x_ref, w1_ref, b1_ref, w2_ref, b2_ref, mask_ref, o_ref):
        # Resident additive boundary masks (0 = neighbour valid, -1e30 = off-image),
        # one (1, HW) row per (direction, distance).  Loaded once per grid step and
        # broadcast over the channel (sublane) axis inside the add — no per-step
        # iota / integer-mod / compare work at (ch, HW).
        rg = {d: mask_ref[pl.ds(4 * (d - 1) + 0, 1), :] for d in (1, 2)}   # row i-d valid
        rl = {d: mask_ref[pl.ds(4 * (d - 1) + 1, 1), :] for d in (1, 2)}   # row i+d valid
        cg = {d: mask_ref[pl.ds(4 * (d - 1) + 2, 1), :] for d in (1, 2)}   # col j-d valid
        cl = {d: mask_ref[pl.ds(4 * (d - 1) + 3, 1), :] for d in (1, 2)}   # col j+d valid

        def pool5(v):
            # Separable 5x5 / stride-1 / "same" max-pool on the flattened (C, H*W) layout.
            r = v
            for d in (1, 2):
                up = pltpu.roll(v, d * W, axis=1) + rg[d]        # v[i-d, j]
                dn = pltpu.roll(v, HW - d * W, axis=1) + rl[d]   # v[i+d, j]
                r = jnp.maximum(r, jnp.maximum(up, dn))
            out = r
            for d in (1, 2):
                lf = pltpu.roll(r, d, axis=1) + cg[d]            # r[i, j-d]
                rt = pltpu.roll(r, HW - d, axis=1) + cl[d]       # r[i, j+d]
                out = jnp.maximum(out, jnp.maximum(lf, rt))
            return out

        w1 = w1_ref[...]                                    # (ch_p, Cin)  BN scale folded
        b1 = b1_ref[...]                                    # (ch_p, 1)
        b2 = b2_ref[...]                                    # (cout, 1)
        w2 = [w2_ref[k] for k in range(n_branch)]           # each (cout, ch_p)

        for b in range(nb):                                 # static unroll over batch sub-block
            x = x_ref[b]                                    # (Cin, HW)
            # conv1: 1x1 conv on the MXU + bias + SiLU
            h = jnp.dot(w1, x, preferred_element_type=jnp.float32, precision=precision)
            h = _silu(h + b1)                               # (ch_p, HW)
            # SPPF cascade (pool9 = pool5∘pool5, pool13 = pool5∘pool5∘pool5; exact for
            # stride-1 "same" pooling) with conv2 streamed as matmul-accumulate.
            acc = jnp.dot(w2[0], h, preferred_element_type=jnp.float32, precision=precision)
            m = h
            for k in range(1, n_branch):
                m = pool5(m)
                acc = acc + jnp.dot(w2[k], m, preferred_element_type=jnp.float32,
                                    precision=precision)
            o_ref[b] = _silu(acc + b2)                      # (cout, HW)

    return kernel


def _chip_profile():
    """Per-generation VMEM budget / TensorCore count.
    v7x: 64 MiB VMEM per TC, 2 TCs/chip.  v5e/v5p/v6e: 128 MiB VMEM, 1 TC."""
    kind = ""
    try:
        kind = jax.devices()[0].device_kind.lower()
    except Exception:
        pass
    if "v7" in kind or "7x" in kind:
        return {"cores": 2, "vmem_limit": 48 * 2**20, "budget": 28 * 2**20}
    if "v5" in kind or "v6" in kind:
        return {"cores": 1, "vmem_limit": 96 * 2**20, "budget": 64 * 2**20}
    # Unknown chip: don't touch the scoped-VMEM limit, budget conservatively.
    return {"cores": 1, "vmem_limit": None, "budget": 10 * 2**20}


def _pick_block_batch(N, per_img_bytes, fixed_bytes, budget_bytes, n_cores, unroll_cap=8):
    """Images per grid step: as big as the VMEM budget (and unroll cap) allows; on
    multi-TC chips prefer a grid length that is a multiple of the core count."""
    fit = (budget_bytes - fixed_bytes) // max(per_img_bytes, 1)
    nb_cap = int(max(1, min(N, unroll_cap, fit)))
    divs = [d for d in range(1, nb_cap + 1) if N % d == 0]
    if n_cores > 1:
        even = [d for d in divs if (N // d) % n_cores == 0]
        if even:
            return max(even)
        atleast = [d for d in divs if (N // d) >= n_cores]
        if atleast:
            return max(atleast)
    return max(divs)


@functools.partial(jax.jit, static_argnames=("block_batch", "high_precision"))
def spp_bottleneck(x, w1, s1, b1, w2, s2, b2, block_batch=None, high_precision=False):
    N, Cin, H, W = x.shape
    HW = H * W
    ch = w1.shape[0]
    cout = w2.shape[0]
    n_branch = 1 + len(KERNEL_SIZES)
    assert w2.shape[1] == n_branch * ch
    # the in-kernel SPPF cascade assumes kernel_sizes == (5, 9, 13)
    assert [k // 2 for k in KERNEL_SIZES] == [2 * (i + 1) for i in range(len(KERNEL_SIZES))]
    assert H >= 3 and W >= 3

    # Single-pass bf16 MXU matmuls (f32 accumulation) by default; HIGHEST only when a
    # bit-faithful f32 result is required (extra MXU passes contend with the XLU rolls).
    precision = jax.lax.Precision.HIGHEST if high_precision else jax.lax.Precision.DEFAULT

    prof = _chip_profile()
    ch_p = -(-ch // 8) * 8          # pad hidden channels to a full f32 sublane group

    # Host-side (one-time XLA) parameter prep: fold BN scale, pad hidden, split per branch.
    w1e = (w1 * s1[:, None]).astype(jnp.float32)                  # (ch, Cin)
    w2e = (w2 * s2[:, None]).astype(jnp.float32)                  # (cout, n_branch*ch)
    w2s = w2e.reshape(cout, n_branch, ch).transpose(1, 0, 2)      # (n_branch, cout, ch)
    b1f = b1.astype(jnp.float32)
    if ch_p != ch:
        # Exact: padded hidden channels are silu(0)=0, pool to 0, and hit zero w2 columns.
        w1e = jnp.pad(w1e, ((0, ch_p - ch), (0, 0)))
        w2s = jnp.pad(w2s, ((0, 0), (0, 0), (0, ch_p - ch)))
        b1f = jnp.pad(b1f, (0, ch_p - ch))
    b1c = b1f.reshape(ch_p, 1)
    b2c = b2.astype(jnp.float32).reshape(cout, 1)

    # Additive boundary masks (0 / -1e30) for the flattened row-major spatial layout,
    # built once and passed as a resident constant-index input (megacore-safe).
    pos = jnp.arange(HW, dtype=jnp.int32)
    col = pos % W
    rows = []
    for d in (1, 2):
        rows.append(jnp.where(pos >= d * W, 0.0, _NEG))        # v[i-d, j] valid
        rows.append(jnp.where(pos < HW - d * W, 0.0, _NEG))    # v[i+d, j] valid
        rows.append(jnp.where(col >= d, 0.0, _NEG))            # v[i, j-d] valid
        rows.append(jnp.where(col < W - d, 0.0, _NEG))         # v[i, j+d] valid
    masks = jnp.stack(rows).astype(jnp.float32)                 # (8, HW)

    # Batch-leading blocks: x / out are pure reshapes (no host transpose passes).
    xr = x.reshape(N, Cin, HW)

    # VMEM-footprint-aware batch sub-block: double-buffered x/out blocks + h/m/acc per
    # image + resident masks/weights (double-buffered by Pallas).
    fb = 4
    per_img = (2 * Cin + 2 * cout + 2 * ch_p + cout) * HW * fb
    fixed = (8 * HW + ch_p * Cin + n_branch * cout * ch_p + ch_p + cout) * fb * 2
    nb = (_pick_block_batch(N, per_img, fixed, prof["budget"], prof["cores"])
          if block_batch is None else block_batch)
    assert N % nb == 0
    G = N // nb

    cp_kwargs = {"dimension_semantics": ("parallel",)}
    if prof["vmem_limit"] is not None:
        cp_kwargs["vmem_limit_bytes"] = prof["vmem_limit"]

    # NOTE: the weight/bias/mask inputs have constant index_maps; they are small enough
    # here that default double-buffering is accepted instead of pl.Buffered(1).
    out = pl.pallas_call(
        _make_spp_kernel(W, HW, nb, n_branch, precision),
        out_shape=jax.ShapeDtypeStruct((N, cout, HW), jnp.float32),
        grid=(G,),
        in_specs=[
            pl.BlockSpec((nb, Cin, HW), lambda g: (g, 0, 0)),
            pl.BlockSpec((ch_p, Cin), lambda g: (0, 0)),
            pl.BlockSpec((ch_p, 1), lambda g: (0, 0)),
            pl.BlockSpec((n_branch, cout, ch_p), lambda g: (0, 0, 0)),
            pl.BlockSpec((cout, 1), lambda g: (0, 0)),
            pl.BlockSpec((8, HW), lambda g: (0, 0)),
        ],
        out_specs=pl.BlockSpec((nb, cout, HW), lambda g: (g, 0, 0)),
        compiler_params=pltpu.CompilerParams(**cp_kwargs),
    )(xr, w1e, b1c, w2s, b2c, masks)

    return out.reshape(N, cout, H, W)


def init_params(key, in_channels, out_channels):
    """Deterministic synthetic params.  BatchNorm (eval mode) is expressed as
    per-channel scale/bias:  scale = gamma/sqrt(var+eps), bias = beta - mean*scale."""
    hidden = in_channels // 2
    cat_c = hidden * (len(KERNEL_SIZES) + 1)
    ks = jax.random.split(key, 6)
    eps = 1e-5

    def bn_fold(kg, kb, c):
        gamma = 1.0 + 0.1 * jax.random.normal(kg, (c,), jnp.float32)
        beta = 0.1 * jax.random.normal(kb, (c,), jnp.float32)
        mean = 0.05 * jnp.arange(c, dtype=jnp.float32)
        var = 1.0 + 0.02 * jnp.arange(c, dtype=jnp.float32)
        scale = gamma / jnp.sqrt(var + eps)
        bias = beta - mean * scale
        return scale, bias

    w1 = 0.4 * jax.random.normal(ks[0], (hidden, in_channels), jnp.float32)   # 1x1 conv1
    w2 = 0.2 * jax.random.normal(ks[1], (out_channels, cat_c), jnp.float32)   # 1x1 conv2
    s1, b1 = bn_fold(ks[2], ks[3], hidden)
    s2, b2 = bn_fold(ks[4], ks[5], out_channels)
    return w1, s1, b1, w2, s2, b2


def _reference(x, w1, s1, b1, w2, s2, b2):
    """Pure-JAX (XLA) reference matching the PyTorch forward (f32, HIGHEST precision)."""
    hi = jax.lax.Precision.HIGHEST
    h = jnp.einsum('oc,nchw->nohw', w1, x, precision=hi)
    h = _silu(h * s1[None, :, None, None] + b1[None, :, None, None])
    feats = [h]
    for ksz in KERNEL_SIZES:
        p = ksz // 2
        feats.append(jax.lax.reduce_window(
            h, -jnp.inf, jax.lax.max,
            (1, 1, ksz, ksz), (1, 1, 1, 1),
            [(0, 0), (0, 0), (p, p), (p, p)]))
    cat = jnp.concatenate(feats, axis=1)
    y = jnp.einsum('ok,nkhw->nohw', w2, cat, precision=hi)
    return _silu(y * s2[None, :, None, None] + b2[None, :, None, None])


if __name__ == "__main__":
    N, C_IN, C_OUT, H, W = 2, 8, 8, 16, 16
    key = jax.random.PRNGKey(0)
    kx, kp = jax.random.split(key)
    x = jax.random.normal(kx, (N, C_IN, H, W), jnp.float32)
    params = init_params(kp, C_IN, C_OUT)

    ref = _reference(x, *params)

    # Strict semantic check: full-precision MXU path vs the f32 reference.
    out_hi = jax.block_until_ready(spp_bottleneck(x, *params, high_precision=True))
    assert out_hi.shape == (N, C_OUT, H, W), out_hi.shape
    assert jnp.allclose(out_hi, ref, atol=1e-4, rtol=1e-4), float(jnp.max(jnp.abs(out_hi - ref)))

    # Default (fast) path: single-pass bf16 MXU matmuls with f32 accumulation — looser
    # tolerance only reflects the bf16 operand rounding, not a semantic difference.
    out = jax.block_until_ready(spp_bottleneck(x, *params))
    assert out.shape == (N, C_OUT, H, W), out.shape
    assert jnp.allclose(out, ref, atol=1e-1, rtol=1e-1), float(jnp.max(jnp.abs(out - ref)))

    print("KERNEL_OK")
</pallas_src>

<mosaic_0001>
module attributes {stable_mosaic.version = 11 : i64} {
  func.func @kernel(%arg0: i32, %arg1: memref<2x8x256xf32, #tpu.memory_space<vmem>>, %arg2: memref<8x8xf32, #tpu.memory_space<vmem>>, %arg3: memref<8x1xf32, #tpu.memory_space<vmem>>, %arg4: memref<4x8x8xf32, #tpu.memory_space<vmem>>, %arg5: memref<8x1xf32, #tpu.memory_space<vmem>>, %arg6: memref<8x256xf32, #tpu.memory_space<vmem>>, %arg7: memref<2x8x256xf32, #tpu.memory_space<vmem>>) attributes {dimension_semantics = [#tpu.dimension_semantics<parallel>], iteration_bounds = array<i64: 1>, scalar_prefetch = 0 : i64, scratch_operands = 0 : i64, tpu.core_type = #tpu.core_type<tc>, window_params = [{transform_indices = @transform_0, window_bounds = array<i64: 2, 8, 256>}, {pipeline_mode = #tpu.pipeline_mode<synchronous>, transform_indices = @transform_1, window_bounds = array<i64: 8, 8>}, {pipeline_mode = #tpu.pipeline_mode<synchronous>, transform_indices = @transform_2, window_bounds = array<i64: 8, 1>}, {pipeline_mode = #tpu.pipeline_mode<synchronous>, transform_indices = @transform_3, window_bounds = array<i64: 4, 8, 8>}, {pipeline_mode = #tpu.pipeline_mode<synchronous>, transform_indices = @transform_4, window_bounds = array<i64: 8, 1>}, {pipeline_mode = #tpu.pipeline_mode<synchronous>, transform_indices = @transform_5, window_bounds = array<i64: 8, 256>}, {transform_indices = @transform_6, window_bounds = array<i64: 2, 8, 256>}]} {
    %c0 = arith.constant 0 : index
    %c0_0 = arith.constant 0 : index
    %0 = vector.load %arg6[%c0, %c0_0] : memref<8x256xf32, #tpu.memory_space<vmem>>, vector<1x256xf32>
    %c4 = arith.constant 4 : index
    %c0_1 = arith.constant 0 : index
    %1 = vector.load %arg6[%c4, %c0_1] : memref<8x256xf32, #tpu.memory_space<vmem>>, vector<1x256xf32>
    %c1 = arith.constant 1 : index
    %c0_2 = arith.constant 0 : index
    %2 = vector.load %arg6[%c1, %c0_2] : memref<8x256xf32, #tpu.memory_space<vmem>>, vector<1x256xf32>
    %c5 = arith.constant 5 : index
    %c0_3 = arith.constant 0 : index
    %3 = vector.load %arg6[%c5, %c0_3] : memref<8x256xf32, #tpu.memory_space<vmem>>, vector<1x256xf32>
    %c2 = arith.constant 2 : index
    %c0_4 = arith.constant 0 : index
    %4 = vector.load %arg6[%c2, %c0_4] : memref<8x256xf32, #tpu.memory_space<vmem>>, vector<1x256xf32>
    %c6 = arith.constant 6 : index
    %c0_5 = arith.constant 0 : index
    %5 = vector.load %arg6[%c6, %c0_5] : memref<8x256xf32, #tpu.memory_space<vmem>>, vector<1x256xf32>
    %c3 = arith.constant 3 : index
    %c0_6 = arith.constant 0 : index
    %6 = vector.load %arg6[%c3, %c0_6] : memref<8x256xf32, #tpu.memory_space<vmem>>, vector<1x256xf32>
    %c7 = arith.constant 7 : index
    %c0_7 = arith.constant 0 : index
    %7 = vector.load %arg6[%c7, %c0_7] : memref<8x256xf32, #tpu.memory_space<vmem>>, vector<1x256xf32>
    %c0_8 = arith.constant 0 : index
    %c0_9 = arith.constant 0 : index
    %8 = vector.load %arg2[%c0_8, %c0_9] : memref<8x8xf32, #tpu.memory_space<vmem>>, vector<8x8xf32>
    %c0_10 = arith.constant 0 : index
    %c0_11 = arith.constant 0 : index
    %9 = vector.load %arg3[%c0_10, %c0_11] : memref<8x1xf32, #tpu.memory_space<vmem>>, vector<8x1xf32>
    %c0_12 = arith.constant 0 : index
    %c0_13 = arith.constant 0 : index
    %10 = vector.load %arg5[%c0_12, %c0_13] : memref<8x1xf32, #tpu.memory_space<vmem>>, vector<8x1xf32>
    %c0_14 = arith.constant 0 : index
    %c0_15 = arith.constant 0 : index
    %c0_16 = arith.constant 0 : index
    %11 = vector.load %arg4[%c0_14, %c0_15, %c0_16] : memref<4x8x8xf32, #tpu.memory_space<vmem>>, vector<1x8x8xf32>
    %12 = vector.shape_cast %11 : vector<1x8x8xf32> to vector<8x8xf32>
    %c1_17 = arith.constant 1 : index
    %c0_18 = arith.constant 0 : index
    %c0_19 = arith.constant 0 : index
    %13 = vector.load %arg4[%c1_17, %c0_18, %c0_19] : memref<4x8x8xf32, #tpu.memory_space<vmem>>, vector<1x8x8xf32>
    %14 = vector.shape_cast %13 : vector<1x8x8xf32> to vector<8x8xf32>
    %c2_20 = arith.constant 2 : index
    %c0_21 = arith.constant 0 : index
    %c0_22 = arith.constant 0 : index
    %15 = vector.load %arg4[%c2_20, %c0_21, %c0_22] : memref<4x8x8xf32, #tpu.memory_space<vmem>>, vector<1x8x8xf32>
    %16 = vector.shape_cast %15 : vector<1x8x8xf32> to vector<8x8xf32>
    %c3_23 = arith.constant 3 : index
    %c0_24 = arith.constant 0 : index
    %c0_25 = arith.constant 0 : index
    %17 = vector.load %arg4[%c3_23, %c0_24, %c0_25] : memref<4x8x8xf32, #tpu.memory_space<vmem>>, vector<1x8x8xf32>
    %18 = vector.shape_cast %17 : vector<1x8x8xf32> to vector<8x8xf32>
    %c0_26 = arith.constant 0 : index
    %c0_27 = arith.constant 0 : index
    %c0_28 = arith.constant 0 : index
    %19 = vector.load %arg1[%c0_26, %c0_27, %c0_28] : memref<2x8x256xf32, #tpu.memory_space<vmem>>, vector<1x8x256xf32>
    %20 = vector.shape_cast %19 : vector<1x8x256xf32> to vector<8x256xf32>
    %cst = arith.constant dense<0.000000e+00> : vector<8x256xf32>
    %21 = tpu.matmul %8, %20, %cst {dimension_numbers = #tpu.dot_dimension_numbers<[1], [0], [0], [1], [0, 0, 1, 1], [], []>, precision = #tpu.contract_precision<fp32>} : vector<8x8xf32>, vector<8x256xf32>, vector<8x256xf32> -> vector<8x256xf32>
    %22 = vector.broadcast %9 : vector<8x1xf32> to vector<8x256xf32>
    %23 = arith.addf %21, %22 : vector<8x256xf32>
    %24 = arith.negf %23 : vector<8x256xf32>
    %25 = math.exp %24 : vector<8x256xf32>
    %cst_29 = arith.constant 1.000000e+00 : f32
    %26 = vector.broadcast %cst_29 : f32 to vector<8x256xf32>
    %27 = arith.addf %26, %25 : vector<8x256xf32>
    %28 = arith.divf %26, %27 : vector<8x256xf32>
    %29 = arith.mulf %23, %28 : vector<8x256xf32>
    %cst_30 = arith.constant dense<0.000000e+00> : vector<8x256xf32>
    %30 = tpu.matmul %12, %29, %cst_30 {dimension_numbers = #tpu.dot_dimension_numbers<[1], [0], [0], [1], [0, 0, 1, 1], [], []>, precision = #tpu.contract_precision<fp32>} : vector<8x8xf32>, vector<8x256xf32>, vector<8x256xf32> -> vector<8x256xf32>
    %c16_i32 = arith.constant 16 : i32
    %31 = tpu.dynamic_rotate %29 by %c16_i32 dim 1 : vector<8x256xf32>, i32 -> vector<8x256xf32>
    %32 = vector.broadcast %0 : vector<1x256xf32> to vector<8x256xf32>
    %33 = arith.addf %31, %32 : vector<8x256xf32>
    %c240_i32 = arith.constant 240 : i32
    %34 = tpu.dynamic_rotate %29 by %c240_i32 dim 1 : vector<8x256xf32>, i32 -> vector<8x256xf32>
    %35 = vector.broadcast %2 : vector<1x256xf32> to vector<8x256xf32>
    %36 = arith.addf %34, %35 : vector<8x256xf32>
    %37 = arith.maximumf %33, %36 : vector<8x256xf32>
    %38 = arith.maximumf %29, %37 : vector<8x256xf32>
    %c32_i32 = arith.constant 32 : i32
    %39 = tpu.dynamic_rotate %29 by %c32_i32 dim 1 : vector<8x256xf32>, i32 -> vector<8x256xf32>
    %40 = vector.broadcast %1 : vector<1x256xf32> to vector<8x256xf32>
    %41 = arith.addf %39, %40 : vector<8x256xf32>
    %c224_i32 = arith.constant 224 : i32
    %42 = tpu.dynamic_rotate %29 by %c224_i32 dim 1 : vector<8x256xf32>, i32 -> vector<8x256xf32>
    %43 = vector.broadcast %3 : vector<1x256xf32> to vector<8x256xf32>
    %44 = arith.addf %42, %43 : vector<8x256xf32>
    %45 = arith.maximumf %41, %44 : vector<8x256xf32>
    %46 = arith.maximumf %38, %45 : vector<8x256xf32>
    %c1_i32 = arith.constant 1 : i32
    %47 = tpu.dynamic_rotate %46 by %c1_i32 dim 1 : vector<8x256xf32>, i32 -> vector<8x256xf32>
    %48 = vector.broadcast %4 : vector<1x256xf32> to vector<8x256xf32>
    %49 = arith.addf %47, %48 : vector<8x256xf32>
    %c255_i32 = arith.constant 255 : i32
    %50 = tpu.dynamic_rotate %46 by %c255_i32 dim 1 : vector<8x256xf32>, i32 -> vector<8x256xf32>
    %51 = vector.broadcast %6 : vector<1x256xf32> to vector<8x256xf32>
    %52 = arith.addf %50, %51 : vector<8x256xf32>
    %53 = arith.maximumf %49, %52 : vector<8x256xf32>
    %54 = arith.maximumf %46, %53 : vector<8x256xf32>
    %c2_i32 = arith.constant 2 : i32
    %55 = tpu.dynamic_rotate %46 by %c2_i32 dim 1 : vector<8x256xf32>, i32 -> vector<8x256xf32>
    %56 = vector.broadcast %5 : vector<1x256xf32> to vector<8x256xf32>
    %57 = arith.addf %55, %56 : vector<8x256xf32>
    %c254_i32 = arith.constant 254 : i32
    %58 = tpu.dynamic_rotate %46 by %c254_i32 dim 1 : vector<8x256xf32>, i32 -> vector<8x256xf32>
    %59 = vector.broadcast %7 : vector<1x256xf32> to vector<8x256xf32>
    %60 = arith.addf %58, %59 : vector<8x256xf32>
    %61 = arith.maximumf %57, %60 : vector<8x256xf32>
    %62 = arith.maximumf %54, %61 : vector<8x256xf32>
    %cst_31 = arith.constant dense<0.000000e+00> : vector<8x256xf32>
    %63 = tpu.matmul %14, %62, %cst_31 {dimension_numbers = #tpu.dot_dimension_numbers<[1], [0], [0], [1], [0, 0, 1, 1], [], []>, precision = #tpu.contract_precision<fp32>} : vector<8x8xf32>, vector<8x256xf32>, vector<8x256xf32> -> vector<8x256xf32>
    %64 = arith.addf %30, %63 : vector<8x256xf32>
    %c16_i32_32 = arith.constant 16 : i32
    %65 = tpu.dynamic_rotate %62 by %c16_i32_32 dim 1 : vector<8x256xf32>, i32 -> vector<8x256xf32>
    %66 = vector.broadcast %0 : vector<1x256xf32> to vector<8x256xf32>
    %67 = arith.addf %65, %66 : vector<8x256xf32>
    %c240_i32_33 = arith.constant 240 : i32
    %68 = tpu.dynamic_rotate %62 by %c240_i32_33 dim 1 : vector<8x256xf32>, i32 -> vector<8x256xf32>
    %69 = vector.broadcast %2 : vector<1x256xf32> to vector<8x256xf32>
    %70 = arith.addf %68, %69 : vector<8x256xf32>
    %71 = arith.maximumf %67, %70 : vector<8x256xf32>
    %72 = arith.maximumf %62, %71 : vector<8x256xf32>
    %c32_i32_34 = arith.constant 32 : i32
    %73 = tpu.dynamic_rotate %62 by %c32_i32_34 dim 1 : vector<8x256xf32>, i32 -> vector<8x256xf32>
    %74 = vector.broadcast %1 : vector<1x256xf32> to vector<8x256xf32>
    %75 = arith.addf %73, %74 : vector<8x256xf32>
    %c224_i32_35 = arith.constant 224 : i32
    %76 = tpu.dynamic_rotate %62 by %c224_i32_35 dim 1 : vector<8x256xf32>, i32 -> vector<8x256xf32>
    %77 = vector.broadcast %3 : vector<1x256xf32> to vector<8x256xf32>
    %78 = arith.addf %76, %77 : vector<8x256xf32>
    %79 = arith.maximumf %75, %78 : vector<8x256xf32>
    %80 = arith.maximumf %72, %79 : vector<8x256xf32>
    %c1_i32_36 = arith.constant 1 : i32
    %81 = tpu.dynamic_rotate %80 by %c1_i32_36 dim 1 : vector<8x256xf32>, i32 -> vector<8x256xf32>
    %82 = vector.broadcast %4 : vector<1x256xf32> to vector<8x256xf32>
    %83 = arith.addf %81, %82 : vector<8x256xf32>
    %c255_i32_37 = arith.constant 255 : i32
    %84 = tpu.dynamic_rotate %80 by %c255_i32_37 dim 1 : vector<8x256xf32>, i32 -> vector<8x256xf32>
    %85 = vector.broadcast %6 : vector<1x256xf32> to vector<8x256xf32>
    %86 = arith.addf %84, %85 : vector<8x256xf32>
    %87 = arith.maximumf %83, %86 : vector<8x256xf32>
    %88 = arith.maximumf %80, %87 : vector<8x256xf32>
    %c2_i32_38 = arith.constant 2 : i32
    %89 = tpu.dynamic_rotate %80 by %c2_i32_38 dim 1 : vector<8x256xf32>, i32 -> vector<8x256xf32>
    %90 = vector.broadcast %5 : vector<1x256xf32> to vector<8x256xf32>
    %91 = arith.addf %89, %90 : vector<8x256xf32>
    %c254_i32_39 = arith.constant 254 : i32
    %92 = tpu.dynamic_rotate %80 by %c254_i32_39 dim 1 : vector<8x256xf32>, i32 -> vector<8x256xf32>
    %93 = vector.broadcast %7 : vector<1x256xf32> to vector<8x256xf32>
    %94 = arith.addf %92, %93 : vector<8x256xf32>
    %95 = arith.maximumf %91, %94 : vector<8x256xf32>
    %96 = arith.maximumf %88, %95 : vector<8x256xf32>
    %cst_40 = arith.constant dense<0.000000e+00> : vector<8x256xf32>
    %97 = tpu.matmul %16, %96, %cst_40 {dimension_numbers = #tpu.dot_dimension_numbers<[1], [0], [0], [1], [0, 0, 1, 1], [], []>, precision = #tpu.contract_precision<fp32>} : vector<8x8xf32>, vector<8x256xf32>, vector<8x256xf32> -> vector<8x256xf32>
    %98 = arith.addf %64, %97 : vector<8x256xf32>
    %c16_i32_41 = arith.constant 16 : i32
    %99 = tpu.dynamic_rotate %96 by %c16_i32_41 dim 1 : vector<8x256xf32>, i32 -> vector<8x256xf32>
    %100 = vector.broadcast %0 : vector<1x256xf32> to vector<8x256xf32>
    %101 = arith.addf %99, %100 : vector<8x256xf32>
    %c240_i32_42 = arith.constant 240 : i32
    %102 = tpu.dynamic_rotate %96 by %c240_i32_42 dim 1 : vector<8x256xf32>, i32 -> vector<8x256xf32>
    %103 = vector.broadcast %2 : vector<1x256xf32> to vector<8x256xf32>
    %104 = arith.addf %102, %103 : vector<8x256xf32>
    %105 = arith.maximumf %101, %104 : vector<8x256xf32>
    %106 = arith.maximumf %96, %105 : vector<8x256xf32>
    %c32_i32_43 = arith.constant 32 : i32
    %107 = tpu.dynamic_rotate %96 by %c32_i32_43 dim 1 : vector<8x256xf32>, i32 -> vector<8x256xf32>
    %108 = vector.broadcast %1 : vector<1x256xf32> to vector<8x256xf32>
    %109 = arith.addf %107, %108 : vector<8x256xf32>
    %c224_i32_44 = arith.constant 224 : i32
    %110 = tpu.dynamic_rotate %96 by %c224_i32_44 dim 1 : vector<8x256xf32>, i32 -> vector<8x256xf32>
    %111 = vector.broadcast %3 : vector<1x256xf32> to vector<8x256xf32>
    %112 = arith.addf %110, %111 : vector<8x256xf32>
    %113 = arith.maximumf %109, %112 : vector<8x256xf32>
    %114 = arith.maximumf %106, %113 : vector<8x256xf32>
    %c1_i32_45 = arith.constant 1 : i32
    %115 = tpu.dynamic_rotate %114 by %c1_i32_45 dim 1 : vector<8x256xf32>, i32 -> vector<8x256xf32>
    %116 = vector.broadcast %4 : vector<1x256xf32> to vector<8x256xf32>
    %117 = arith.addf %115, %116 : vector<8x256xf32>
    %c255_i32_46 = arith.constant 255 : i32
    %118 = tpu.dynamic_rotate %114 by %c255_i32_46 dim 1 : vector<8x256xf32>, i32 -> vector<8x256xf32>
    %119 = vector.broadcast %6 : vector<1x256xf32> to vector<8x256xf32>
    %120 = arith.addf %118, %119 : vector<8x256xf32>
    %121 = arith.maximumf %117, %120 : vector<8x256xf32>
    %122 = arith.maximumf %114, %121 : vector<8x256xf32>
    %c2_i32_47 = arith.constant 2 : i32
    %123 = tpu.dynamic_rotate %114 by %c2_i32_47 dim 1 : vector<8x256xf32>, i32 -> vector<8x256xf32>
    %124 = vector.broadcast %5 : vector<1x256xf32> to vector<8x256xf32>
    %125 = arith.addf %123, %124 : vector<8x256xf32>
    %c254_i32_48 = arith.constant 254 : i32
    %126 = tpu.dynamic_rotate %114 by %c254_i32_48 dim 1 : vector<8x256xf32>, i32 -> vector<8x256xf32>
    %127 = vector.broadcast %7 : vector<1x256xf32> to vector<8x256xf32>
    %128 = arith.addf %126, %127 : vector<8x256xf32>
    %129 = arith.maximumf %125, %128 : vector<8x256xf32>
    %130 = arith.maximumf %122, %129 : vector<8x256xf32>
    %cst_49 = arith.constant dense<0.000000e+00> : vector<8x256xf32>
    %131 = tpu.matmul %18, %130, %cst_49 {dimension_numbers = #tpu.dot_dimension_numbers<[1], [0], [0], [1], [0, 0, 1, 1], [], []>, precision = #tpu.contract_precision<fp32>} : vector<8x8xf32>, vector<8x256xf32>, vector<8x256xf32> -> vector<8x256xf32>
    %132 = arith.addf %98, %131 : vector<8x256xf32>
    %133 = vector.broadcast %10 : vector<8x1xf32> to vector<8x256xf32>
    %134 = arith.addf %132, %133 : vector<8x256xf32>
    %135 = arith.negf %134 : vector<8x256xf32>
    %136 = math.exp %135 : vector<8x256xf32>
    %cst_50 = arith.constant 1.000000e+00 : f32
    %137 = vector.broadcast %cst_50 : f32 to vector<8x256xf32>
    %138 = arith.addf %137, %136 : vector<8x256xf32>
    %139 = arith.divf %137, %138 : vector<8x256xf32>
    %140 = arith.mulf %134, %139 : vector<8x256xf32>
    %c0_51 = arith.constant 0 : index
    %c0_52 = arith.constant 0 : index
    %c0_53 = arith.constant 0 : index
    %141 = vector.load %arg7[%c0_51, %c0_52, %c0_53] : memref<2x8x256xf32, #tpu.memory_space<vmem>>, vector<1x8x256xf32>
    %142 = vector.shape_cast %141 : vector<1x8x256xf32> to vector<8x256xf32>
    %143 = vector.shape_cast %140 : vector<8x256xf32> to vector<1x8x256xf32>
    tpu.vector_store %arg7[%c0_51, %c0_52, %c0_53], %143 {strides = array<i32>} : memref<2x8x256xf32, #tpu.memory_space<vmem>>, vector<1x8x256xf32>,
    %c1_54 = arith.constant 1 : index
    %c0_55 = arith.constant 0 : index
    %c0_56 = arith.constant 0 : index
    %144 = vector.load %arg1[%c1_54, %c0_55, %c0_56] : memref<2x8x256xf32, #tpu.memory_space<vmem>>, vector<1x8x256xf32>
    %145 = vector.shape_cast %144 : vector<1x8x256xf32> to vector<8x256xf32>
    %cst_57 = arith.constant dense<0.000000e+00> : vector<8x256xf32>
    %146 = tpu.matmul %8, %145, %cst_57 {dimension_numbers = #tpu.dot_dimension_numbers<[1], [0], [0], [1], [0, 0, 1, 1], [], []>, precision = #tpu.contract_precision<fp32>} : vector<8x8xf32>, vector<8x256xf32>, vector<8x256xf32> -> vector<8x256xf32>
    %147 = vector.broadcast %9 : vector<8x1xf32> to vector<8x256xf32>
    %148 = arith.addf %146, %147 : vector<8x256xf32>
    %149 = arith.negf %148 : vector<8x256xf32>
    %150 = math.exp %149 : vector<8x256xf32>
    %cst_58 = arith.constant 1.000000e+00 : f32
    %151 = vector.broadcast %cst_58 : f32 to vector<8x256xf32>
    %152 = arith.addf %151, %150 : vector<8x256xf32>
    %153 = arith.divf %151, %152 : vector<8x256xf32>
    %154 = arith.mulf %148, %153 : vector<8x256xf32>
    %cst_59 = arith.constant dense<0.000000e+00> : vector<8x256xf32>
    %155 = tpu.matmul %12, %154, %cst_59 {dimension_numbers = #tpu.dot_dimension_numbers<[1], [0], [0], [1], [0, 0, 1, 1], [], []>, precision = #tpu.contract_precision<fp32>} : vector<8x8xf32>, vector<8x256xf32>, vector<8x256xf32> -> vector<8x256xf32>
    %c16_i32_60 = arith.constant 16 : i32
    %156 = tpu.dynamic_rotate %154 by %c16_i32_60 dim 1 : vector<8x256xf32>, i32 -> vector<8x256xf32>
    %157 = vector.broadcast %0 : vector<1x256xf32> to vector<8x256xf32>
    %158 = arith.addf %156, %157 : vector<8x256xf32>
    %c240_i32_61 = arith.constant 240 : i32
    %159 = tpu.dynamic_rotate %154 by %c240_i32_61 dim 1 : vector<8x256xf32>, i32 -> vector<8x256xf32>
    %160 = vector.broadcast %2 : vector<1x256xf32> to vector<8x256xf32>
    %161 = arith.addf %159, %160 : vector<8x256xf32>
    %162 = arith.maximumf %158, %161 : vector<8x256xf32>
    %163 = arith.maximumf %154, %162 : vector<8x256xf32>
    %c32_i32_62 = arith.constant 32 : i32
    %164 = tpu.dynamic_rotate %154 by %c32_i32_62 dim 1 : vector<8x256xf32>, i32 -> vector<8x256xf32>
    %165 = vector.broadcast %1 : vector<1x256xf32> to vector<8x256xf32>
    %166 = arith.addf %164, %165 : vector<8x256xf32>
    %c224_i32_63 = arith.constant 224 : i32
    %167 = tpu.dynamic_rotate %154 by %c224_i32_63 dim 1 : vector<8x256xf32>, i32 -> vector<8x256xf32>
    %168 = vector.broadcast %3 : vector<1x256xf32> to vector<8x256xf32>
    %169 = arith.addf %167, %168 : vector<8x256xf32>
    %170 = arith.maximumf %166, %169 : vector<8x256xf32>
    %171 = arith.maximumf %163, %170 : vector<8x256xf32>
    %c1_i32_64 = arith.constant 1 : i32
    %172 = tpu.dynamic_rotate %171 by %c1_i32_64 dim 1 : vector<8x256xf32>, i32 -> vector<8x256xf32>
    %173 = vector.broadcast %4 : vector<1x256xf32> to vector<8x256xf32>
    %174 = arith.addf %172, %173 : vector<8x256xf32>
    %c255_i32_65 = arith.constant 255 : i32
    %175 = tpu.dynamic_rotate %171 by %c255_i32_65 dim 1 : vector<8x256xf32>, i32 -> vector<8x256xf32>
    %176 = vector.broadcast %6 : vector<1x256xf32> to vector<8x256xf32>
    %177 = arith.addf %175, %176 : vector<8x256xf32>
    %178 = arith.maximumf %174, %177 : vector<8x256xf32>
    %179 = arith.maximumf %171, %178 : vector<8x256xf32>
    %c2_i32_66 = arith.constant 2 : i32
    %180 = tpu.dynamic_rotate %171 by %c2_i32_66 dim 1 : vector<8x256xf32>, i32 -> vector<8x256xf32>
    %181 = vector.broadcast %5 : vector<1x256xf32> to vector<8x256xf32>
    %182 = arith.addf %180, %181 : vector<8x256xf32>
    %c254_i32_67 = arith.constant 254 : i32
    %183 = tpu.dynamic_rotate %171 by %c254_i32_67 dim 1 : vector<8x256xf32>, i32 -> vector<8x256xf32>
    %184 = vector.broadcast %7 : vector<1x256xf32> to vector<8x256xf32>
    %185 = arith.addf %183, %184 : vector<8x256xf32>
    %186 = arith.maximumf %182, %185 : vector<8x256xf32>
    %187 = arith.maximumf %179, %186 : vector<8x256xf32>
    %cst_68 = arith.constant dense<0.000000e+00> : vector<8x256xf32>
    %188 = tpu.matmul %14, %187, %cst_68 {dimension_numbers = #tpu.dot_dimension_numbers<[1], [0], [0], [1], [0, 0, 1, 1], [], []>, precision = #tpu.contract_precision<fp32>} : vector<8x8xf32>, vector<8x256xf32>, vector<8x256xf32> -> vector<8x256xf32>
    %189 = arith.addf %155, %188 : vector<8x256xf32>
    %c16_i32_69 = arith.constant 16 : i32
    %190 = tpu.dynamic_rotate %187 by %c16_i32_69 dim 1 : vector<8x256xf32>, i32 -> vector<8x256xf32>
    %191 = vector.broadcast %0 : vector<1x256xf32> to vector<8x256xf32>
    %192 = arith.addf %190, %191 : vector<8x256xf32>
    %c240_i32_70 = arith.constant 240 : i32
    %193 = tpu.dynamic_rotate %187 by %c240_i32_70 dim 1 : vector<8x256xf32>, i32 -> vector<8x256xf32>
    %194 = vector.broadcast %2 : vector<1x256xf32> to vector<8x256xf32>
    %195 = arith.addf %193, %194 : vector<8x256xf32>
    %196 = arith.maximumf %192, %195 : vector<8x256xf32>
    %197 = arith.maximumf %187, %196 : vector<8x256xf32>
    %c32_i32_71 = arith.constant 32 : i32
    %198 = tpu.dynamic_rotate %187 by %c32_i32_71 dim 1 : vector<8x256xf32>, i32 -> vector<8x256xf32>
    %199 = vector.broadcast %1 : vector<1x256xf32> to vector<8x256xf32>
    %200 = arith.addf %198, %199 : vector<8x256xf32>
    %c224_i32_72 = arith.constant 224 : i32
    %201 = tpu.dynamic_rotate %187 by %c224_i32_72 dim 1 : vector<8x256xf32>, i32 -> vector<8x256xf32>
    %202 = vector.broadcast %3 : vector<1x256xf32> to vector<8x256xf32>
    %203 = arith.addf %201, %202 : vector<8x256xf32>
    %204 = arith.maximumf %200, %203 : vector<8x256xf32>
    %205 = arith.maximumf %197, %204 : vector<8x256xf32>
    %c1_i32_73 = arith.constant 1 : i32
    %206 = tpu.dynamic_rotate %205 by %c1_i32_73 dim 1 : vector<8x256xf32>, i32 -> vector<8x256xf32>
    %207 = vector.broadcast %4 : vector<1x256xf32> to vector<8x256xf32>
    %208 = arith.addf %206, %207 : vector<8x256xf32>
    %c255_i32_74 = arith.constant 255 : i32
    %209 = tpu.dynamic_rotate %205 by %c255_i32_74 dim 1 : vector<8x256xf32>, i32 -> vector<8x256xf32>
    %210 = vector.broadcast %6 : vector<1x256xf32> to vector<8x256xf32>
    %211 = arith.addf %209, %210 : vector<8x256xf32>
    %212 = arith.maximumf %208, %211 : vector<8x256xf32>
    %213 = arith.maximumf %205, %212 : vector<8x256xf32>
    %c2_i32_75 = arith.constant 2 : i32
    %214 = tpu.dynamic_rotate %205 by %c2_i32_75 dim 1 : vector<8x256xf32>, i32 -> vector<8x256xf32>
    %215 = vector.broadcast %5 : vector<1x256xf32> to vector<8x256xf32>
    %216 = arith.addf %214, %215 : vector<8x256xf32>
    %c254_i32_76 = arith.constant 254 : i32
    %217 = tpu.dynamic_rotate %205 by %c254_i32_76 dim 1 : vector<8x256xf32>, i32 -> vector<8x256xf32>
    %218 = vector.broadcast %7 : vector<1x256xf32> to vector<8x256xf32>
    %219 = arith.addf %217, %218 : vector<8x256xf32>
    %220 = arith.maximumf %216, %219 : vector<8x256xf32>
    %221 = arith.maximumf %213, %220 : vector<8x256xf32>
    %cst_77 = arith.constant dense<0.000000e+00> : vector<8x256xf32>
    %222 = tpu.matmul %16, %221, %cst_77 {dimension_numbers = #tpu.dot_dimension_numbers<[1], [0], [0], [1], [0, 0, 1, 1], [], []>, precision = #tpu.contract_precision<fp32>} : vector<8x8xf32>, vector<8x256xf32>, vector<8x256xf32> -> vector<8x256xf32>
    %223 = arith.addf %189, %222 : vector<8x256xf32>
    %c16_i32_78 = arith.constant 16 : i32
    %224 = tpu.dynamic_rotate %221 by %c16_i32_78 dim 1 : vector<8x256xf32>, i32 -> vector<8x256xf32>
    %225 = vector.broadcast %0 : vector<1x256xf32> to vector<8x256xf32>
    %226 = arith.addf %224, %225 : vector<8x256xf32>
    %c240_i32_79 = arith.constant 240 : i32
    %227 = tpu.dynamic_rotate %221 by %c240_i32_79 dim 1 : vector<8x256xf32>, i32 -> vector<8x256xf32>
    %228 = vector.broadcast %2 : vector<1x256xf32> to vector<8x256xf32>
    %229 = arith.addf %227, %228 : vector<8x256xf32>
    %230 = arith.maximumf %226, %229 : vector<8x256xf32>
    %231 = arith.maximumf %221, %230 : vector<8x256xf32>
    %c32_i32_80 = arith.constant 32 : i32
    %232 = tpu.dynamic_rotate %221 by %c32_i32_80 dim 1 : vector<8x256xf32>, i32 -> vector<8x256xf32>
    %233 = vector.broadcast %1 : vector<1x256xf32> to vector<8x256xf32>
    %234 = arith.addf %232, %233 : vector<8x256xf32>
    %c224_i32_81 = arith.constant 224 : i32
    %235 = tpu.dynamic_rotate %221 by %c224_i32_81 dim 1 : vector<8x256xf32>, i32 -> vector<8x256xf32>
    %236 = vector.broadcast %3 : vector<1x256xf32> to vector<8x256xf32>
    %237 = arith.addf %235, %236 : vector<8x256xf32>
    %238 = arith.maximumf %234, %237 : vector<8x256xf32>
    %239 = arith.maximumf %231, %238 : vector<8x256xf32>
    %c1_i32_82 = arith.constant 1 : i32
    %240 = tpu.dynamic_rotate %239 by %c1_i32_82 dim 1 : vector<8x256xf32>, i32 -> vector<8x256xf32>
    %241 = vector.broadcast %4 : vector<1x256xf32> to vector<8x256xf32>
    %242 = arith.addf %240, %241 : vector<8x256xf32>
    %c255_i32_83 = arith.constant 255 : i32
    %243 = tpu.dynamic_rotate %239 by %c255_i32_83 dim 1 : vector<8x256xf32>, i32 -> vector<8x256xf32>
    %244 = vector.broadcast %6 : vector<1x256xf32> to vector<8x256xf32>
    %245 = arith.addf %243, %244 : vector<8x256xf32>
    %246 = arith.maximumf %242, %245 : vector<8x256xf32>
    %247 = arith.maximumf %239, %246 : vector<8x256xf32>
    %c2_i32_84 = arith.constant 2 : i32
    %248 = tpu.dynamic_rotate %239 by %c2_i32_84 dim 1 : vector<8x256xf32>, i32 -> vector<8x256xf32>
    %249 = vector.broadcast %5 : vector<1x256xf32> to vector<8x256xf32>
    %250 = arith.addf %248, %249 : vector<8x256xf32>
    %c254_i32_85 = arith.constant 254 : i32
    %251 = tpu.dynamic_rotate %239 by %c254_i32_85 dim 1 : vector<8x256xf32>, i32 -> vector<8x256xf32>
    %252 = vector.broadcast %7 : vector<1x256xf32> to vector<8x256xf32>
    %253 = arith.addf %251, %252 : vector<8x256xf32>
    %254 = arith.maximumf %250, %253 : vector<8x256xf32>
    %255 = arith.maximumf %247, %254 : vector<8x256xf32>
    %cst_86 = arith.constant dense<0.000000e+00> : vector<8x256xf32>
    %256 = tpu.matmul %18, %255, %cst_86 {dimension_numbers = #tpu.dot_dimension_numbers<[1], [0], [0], [1], [0, 0, 1, 1], [], []>, precision = #tpu.contract_precision<fp32>} : vector<8x8xf32>, vector<8x256xf32>, vector<8x256xf32> -> vector<8x256xf32>
    %257 = arith.addf %223, %256 : vector<8x256xf32>
    %258 = vector.broadcast %10 : vector<8x1xf32> to vector<8x256xf32>
    %259 = arith.addf %257, %258 : vector<8x256xf32>
    %260 = arith.negf %259 : vector<8x256xf32>
    %261 = math.exp %260 : vector<8x256xf32>
    %cst_87 = arith.constant 1.000000e+00 : f32
    %262 = vector.broadcast %cst_87 : f32 to vector<8x256xf32>
    %263 = arith.addf %262, %261 : vector<8x256xf32>
    %264 = arith.divf %262, %263 : vector<8x256xf32>
    %265 = arith.mulf %259, %264 : vector<8x256xf32>
    %c1_88 = arith.constant 1 : index
    %c0_89 = arith.constant 0 : index
    %c0_90 = arith.constant 0 : index
    %266 = vector.load %arg7[%c1_88, %c0_89, %c0_90] : memref<2x8x256xf32, #tpu.memory_space<vmem>>, vector<1x8x256xf32>
    %267 = vector.shape_cast %266 : vector<1x8x256xf32> to vector<8x256xf32>
    %268 = vector.shape_cast %265 : vector<8x256xf32> to vector<1x8x256xf32>
    tpu.vector_store %arg7[%c1_88, %c0_89, %c0_90], %268 {strides = array<i32>} : memref<2x8x256xf32, #tpu.memory_space<vmem>>, vector<1x8x256xf32>,
    return
  }
  func.func @transform_0(%arg0: i32) -> (i32, i32, i32) {
    %c0_i32 = arith.constant 0 : i32
    %c0_i32_0 = arith.constant 0 : i32
    %c0_i32_1 = arith.constant 0 : i32
    return %arg0, %c0_i32, %c0_i32_0 : i32, i32, i32
  }
  func.func @transform_1(%arg0: i32) -> (i32, i32) {
    %c0_i32 = arith.constant 0 : i32
    %c0_i32_0 = arith.constant 0 : i32
    %c0_i32_1 = arith.constant 0 : i32
    return %c0_i32, %c0_i32_0 : i32, i32
  }
  func.func @transform_2(%arg0: i32) -> (i32, i32) {
    %c0_i32 = arith.constant 0 : i32
    %c0_i32_0 = arith.constant 0 : i32
    %c0_i32_1 = arith.constant 0 : i32
    return %c0_i32, %c0_i32_0 : i32, i32
  }
  func.func @transform_3(%arg0: i32) -> (i32, i32, i32) {
    %c0_i32 = arith.constant 0 : i32
    %c0_i32_0 = arith.constant 0 : i32
    %c0_i32_1 = arith.constant 0 : i32
    %c0_i32_2 = arith.constant 0 : i32
    return %c0_i32, %c0_i32_0, %c0_i32_1 : i32, i32, i32
  }
  func.func @transform_4(%arg0: i32) -> (i32, i32) {
    %c0_i32 = arith.constant 0 : i32
    %c0_i32_0 = arith.constant 0 : i32
    %c0_i32_1 = arith.constant 0 : i32
    return %c0_i32, %c0_i32_0 : i32, i32
  }
  func.func @transform_5(%arg0: i32) -> (i32, i32) {
    %c0_i32 = arith.constant 0 : i32
    %c0_i32_0 = arith.constant 0 : i32
    %c0_i32_1 = arith.constant 0 : i32
    return %c0_i32, %c0_i32_0 : i32, i32
  }
  func.func @transform_6(%arg0: i32) -> (i32, i32, i32) {
    %c0_i32 = arith.constant 0 : i32
    %c0_i32_0 = arith.constant 0 : i32
    %c0_i32_1 = arith.constant 0 : i32
    return %arg0, %c0_i32, %c0_i32_0 : i32, i32, i32
  }
}

</mosaic_0001>

<llo_original>
// kernel: spp_bottleneck.1
$region0: #{spp_bottleneck.1}
  #allocation0 [shape = 'u32[]', space=smem, size = 0x4, offset = 0x4, fixed_abs, tag = 'smem constant byte address 0x4 - core index']
  #allocation1 [shape = 'u32[144,128]{1,0:T(1,128)}', space=vmem, size = 0x12000, scoped, tag = 'internal scratch']
  %s0 = inlined_call_operand.vmem [shape: f32[2,8,256], index: 0, kind: input, shape index: {}]
  %s1 = inlined_call_operand.vmem [shape: f32[8,8], index: 1, kind: input, shape index: {}]
  %s2 = inlined_call_operand.vmem [shape: f32[8,1], index: 2, kind: input, shape index: {}]
  %s3 = inlined_call_operand.vmem [shape: f32[4,8,8], index: 3, kind: input, shape index: {}]
  %s4 = inlined_call_operand.vmem [shape: f32[8,1], index: 4, kind: input, shape index: {}]
  %s5 = inlined_call_operand.vmem [shape: f32[8,256], index: 5, kind: input, shape index: {}]
  %s6 = inlined_call_operand.vmem [shape: f32[2,8,256], index: 6, kind: output, shape index: {}]
  %s7 = sld [smem:[#allocation0]]
  $region34: #{spp_bottleneck.1} parent=0
    _
  %s9 = ssub.s32 1, %s7
  %s10 = scalar_select 0, %s9, %s7
  // Predicated region
  $region2: #{spp_bottleneck.1} parent=0 // pred_check
    _
  $region3: #{spp_bottleneck.1} parent=0 // pred_check_branch
    %12 = sbr.rel (0) target = $region5
  $region4: #{spp_bottleneck.1} parent=0 // pred_region
    _
  $region5: #{spp_bottleneck.1} parent=0 // pred_fallthru
    _
  // Predicated region
  $region6: #{spp_bottleneck.1} parent=0 // pred_check
    _
  $region7: #{spp_bottleneck.1} parent=0 // pred_check_branch
    %14 = sbr.rel (0) target = $region9
  $region8: #{spp_bottleneck.1} parent=0 // pred_region
    _
  $region9: #{spp_bottleneck.1} parent=0 // pred_fallthru
    _
  // Predicated region
  $region10: #{spp_bottleneck.1} parent=0 // pred_check
    _
  $region11: #{spp_bottleneck.1} parent=0 // pred_check_branch
    %16 = sbr.rel (0) target = $region13
  $region12: #{spp_bottleneck.1} parent=0 // pred_region
    _
  $region13: #{spp_bottleneck.1} parent=0 // pred_fallthru
    _
  // Predicated region
  $region14: #{spp_bottleneck.1} parent=0 // pred_check
    _
  $region15: #{spp_bottleneck.1} parent=0 // pred_check_branch
    %18 = sbr.rel (0) target = $region17
  $region16: #{spp_bottleneck.1} parent=0 // pred_region
    _
  $region17: #{spp_bottleneck.1} parent=0 // pred_fallthru
    _
  // Predicated region
  $region18: #{spp_bottleneck.1} parent=0 // pred_check
    _
  $region19: #{spp_bottleneck.1} parent=0 // pred_check_branch
    %20 = sbr.rel (0) target = $region21
  $region20: #{spp_bottleneck.1} parent=0 // pred_region
    _
  $region21: #{spp_bottleneck.1} parent=0 // pred_fallthru
    _
  // Predicated region
  $region22: #{spp_bottleneck.1} parent=0 // pred_check
    _
  $region23: #{spp_bottleneck.1} parent=0 // pred_check_branch
    %22 = sbr.rel (0) target = $region25
  $region24: #{spp_bottleneck.1} parent=0 // pred_region
    _
  $region25: #{spp_bottleneck.1} parent=0 // pred_fallthru
    _
  %v23 = vld [vmem:[%s5] ss:$8 sm:$0x3]
  %s24 = scalar_lea.vmem %s5, 4
  %v25 = vld [vmem:[%s24] ss:$8 sm:$0x3]
  %s26 = scalar_lea.vmem %s5, 1
  %v27 = vld [vmem:[%s26] ss:$8 sm:$0x3]
  %s28 = scalar_lea.vmem %s5, 5
  %v29 = vld [vmem:[%s28] ss:$8 sm:$0x3]
  %s30 = scalar_lea.vmem %s5, 2
  %v31 = vld [vmem:[%s30] ss:$8 sm:$0x3]
  %s32 = scalar_lea.vmem %s5, 6
  %v33 = vld [vmem:[%s32] ss:$8 sm:$0x3]
  %s34 = scalar_lea.vmem %s5, 3
  %v35 = vld [vmem:[%s34] ss:$8 sm:$0x3]
  %s36 = scalar_lea.vmem %s5, 7
  %v37 = vld [vmem:[%s36] ss:$8 sm:$0x3]
  %v38 = vld [vmem:[%s1] sm:$0xff]
  %v39 = vld [vmem:[%s2] sm:$0xff]
  %v40 = vld [vmem:[%s4] sm:$0xff]
  %v41 = vld [vmem:[%s3] sm:$0xff]
  %s42 = scalar_lea.vmem %s3, 8
  %v43 = vld [vmem:[%s42] sm:$0xff]
  %s44 = scalar_lea.vmem %s3, 16
  %v45 = vld [vmem:[%s44] sm:$0xff]
  %s46 = scalar_lea.vmem %s3, 24
  %v47 = vld [vmem:[%s46] sm:$0xff]
  %v48 = vld [vmem:[%s0] sm:$0xff]
  %v49 = vld [vmem:[%s0 + $0x8] sm:$0xff]
  %51 = vset.pattern.permute.xlu0 0
  %52 = vperm.xlu0 %51, %v39
  %v53 = vpop.permute.xlu0 %52
  %vm55 = vcmask 64512
  %v57 = vsel %vm55, %v38, 0
  %v59 = vand.u32 %v49, 4294901760
  %60 = vmatprep.subr.mxu0 %v59
  %v61 = vand.u32 %v48, 4294901760
  %62 = vmatpush1.msra.mxu0 %v61
  %63 = vmatprep.subr.mxu0 0.0
  %64 = vmatpush1.msra.mxu0 0.0
  %65 = vmatprep.subr.mxu0 0.0
  %66 = vmatpush1.msra.mxu0 0.0
  %67 = vmatprep.subr.mxu0 0.0
  %68 = vmatpush1.msra.mxu0 0.0
  %69 = vmatprep.subr.mxu0 0.0
  %70 = vmatpush1.msra.mxu0 0.0
  %71 = vmatprep.subr.mxu0 0.0
  %72 = vmatpush1.msra.mxu0 0.0
  %73 = vmatprep.subr.mxu0 0.0
  %74 = vmatpush1.msra.mxu0 0.0
  %75 = vmatprep.subr.mxu0 0.0
  %76 = vmatpush1.msra.mxu0 0.0
  %77 = vmatprep.subr.mxu0 0.0
  %78 = vmatpush1.msra.mxu0 0.0
  %79 = vmatprep.subr.mxu0 0.0
  %80 = vmatpush1.msra.mxu0 0.0
  %81 = vmatprep.subr.mxu0 0.0
  %82 = vmatpush1.msra.mxu0 0.0
  %83 = vmatprep.subr.mxu0 0.0
  %84 = vmatpush1.msra.mxu0 0.0
  %85 = vmatprep.subr.mxu0 0.0
  %86 = vmatpush1.msra.mxu0 0.0
  %87 = vmatprep.subr.mxu0 0.0
  %88 = vmatpush1.msra.mxu0 0.0
  %89 = vmatprep.subr.mxu0 0.0
  %90 = vmatpush1.msra.mxu0 0.0
  %91 = vmatprep.subr.mxu0 0.0
  %92 = vmatpush1.msra.mxu0 0.0
  %93 = vmatprep.subr.mxu0 0.0
  %94 = vmatpush1.msra.mxu0 0.0
  %95 = vmatprep.subr.mxu0 0.0
  %96 = vmatpush1.msra.mxu0 0.0
  %97 = vmatprep.subr.mxu0 0.0
  %98 = vmatpush1.msra.mxu0 0.0
  %99 = vmatprep.subr.mxu0 0.0
  %100 = vmatpush1.msra.mxu0 0.0
  %101 = vmatprep.subr.mxu0 0.0
  %102 = vmatpush1.msra.mxu0 0.0
  %103 = vmatprep.subr.mxu0 0.0
  %104 = vmatpush1.msra.mxu0 0.0
  %105 = vmatprep.subr.mxu0 0.0
  %106 = vmatpush1.msra.mxu0 0.0
  %107 = vmatprep.subr.mxu0 0.0
  %108 = vmatpush1.msra.mxu0 0.0
  %109 = vmatprep.subr.mxu0 0.0
  %110 = vmatpush1.msra.mxu0 0.0
  %111 = vmatprep.subr.mxu0 0.0
  %112 = vmatpush1.msra.mxu0 0.0
  %113 = vmatprep.subr.mxu0 0.0
  %114 = vmatpush1.msra.mxu0 0.0
  %115 = vmatprep.subr.mxu0 0.0
  %116 = vmatpush1.msra.mxu0 0.0
  %117 = vmatprep.subr.mxu0 0.0
  %118 = vmatpush1.msra.mxu0 0.0
  %119 = vmatprep.subr.mxu0 0.0
  %120 = vmatpush1.msra.mxu0 0.0
  %121 = vmatprep.subr.mxu0 0.0
  %122 = vmatpush1.msra.mxu0 0.0
  %123 = vmatprep.subr.mxu0 0.0
  %124 = vmatpush1.msra.mxu0 0.0
  %125 = vmatprep.mubr.f32.mxu0 0.0
  %v126 = vand.u32 %v57, 4294901760
  %v127 = vsub.f32 %v57, %v126
  %v128 = vand.u32 %v127, 4294901760
  %v129 = vsub.f32 %v127, %v128
  %v130 = vand.u32 %v129, 4294901760
  %131 = vmatmul.mubr.f32.gmra.mrb[0].mxu0 %v130
  %v132 = vpop.f32.mrb[0].mxu0
  %v133 = vadd.f32 %v53, %v132
  %v134 = vpop.f32.mrb[0].mxu0
  %v135 = vadd.f32 %v53, %v134
  %136 = vdwg.mxu0
  %v137 = vand.u32 %v49, 4294901760
  %v138 = vsub.f32 %v49, %v137
  %v139 = vand.u32 %v138, 4294901760
  %v140 = vsub.f32 %v138, %v139
  %v141 = vand.u32 %v140, 4294901760
  %142 = vmatprep.subr.mxu0 %v141
  %v143 = vand.u32 %v48, 4294901760
  %v144 = vsub.f32 %v48, %v143
  %v145 = vand.u32 %v144, 4294901760
  %v146 = vsub.f32 %v144, %v145
  %v147 = vand.u32 %v146, 4294901760
  %148 = vmatpush1.msra.mxu0 %v147
  %149 = vmatprep.subr.mxu0 0.0
  %150 = vmatpush1.msra.mxu0 0.0
  %151 = vmatprep.subr.mxu0 0.0
  %152 = vmatpush1.msra.mxu0 0.0
  %153 = vmatprep.subr.mxu0 0.0
  %154 = vmatpush1.msra.mxu0 0.0
  %155 = vmatprep.subr.mxu0 0.0
  %156 = vmatpush1.msra.mxu0 0.0
  %157 = vmatprep.subr.mxu0 0.0
  %158 = vmatpush1.msra.mxu0 0.0
  %159 = vmatprep.subr.mxu0 0.0
  %160 = vmatpush1.msra.mxu0 0.0
  %161 = vmatprep.subr.mxu0 0.0
  %162 = vmatpush1.msra.mxu0 0.0
  %163 = vmatprep.subr.mxu0 0.0
  %164 = vmatpush1.msra.mxu0 0.0
  %165 = vmatprep.subr.mxu0 0.0
  %166 = vmatpush1.msra.mxu0 0.0
  %167 = vmatprep.subr.mxu0 0.0
  %168 = vmatpush1.msra.mxu0 0.0
  %169 = vmatprep.subr.mxu0 0.0
  %170 = vmatpush1.msra.mxu0 0.0
  %171 = vmatprep.subr.mxu0 0.0
  %172 = vmatpush1.msra.mxu0 0.0
  %173 = vmatprep.subr.mxu0 0.0
  %174 = vmatpush1.msra.mxu0 0.0
  %175 = vmatprep.subr.mxu0 0.0
  %176 = vmatpush1.msra.mxu0 0.0
  %177 = vmatprep.subr.mxu0 0.0
  %178 = vmatpush1.msra.mxu0 0.0
  %179 = vmatprep.subr.mxu0 0.0
  %180 = vmatpush1.msra.mxu0 0.0
  %181 = vmatprep.subr.mxu0 0.0
  %182 = vmatpush1.msra.mxu0 0.0
  %183 = vmatprep.subr.mxu0 0.0
  %184 = vmatpush1.msra.mxu0 0.0
  %185 = vmatprep.subr.mxu0 0.0
  %186 = vmatpush1.msra.mxu0 0.0
  %187 = vmatprep.subr.mxu0 0.0
  %188 = vmatpush1.msra.mxu0 0.0
  %189 = vmatprep.subr.mxu0 0.0
  %190 = vmatpush1.msra.mxu0 0.0
  %191 = vmatprep.subr.mxu0 0.0
  %192 = vmatpush1.msra.mxu0 0.0
  %193 = vmatprep.subr.mxu0 0.0
  %194 = vmatpush1.msra.mxu0 0.0
  %195 = vmatprep.subr.mxu0 0.0
  %196 = vmatpush1.msra.mxu0 0.0
  %197 = vmatprep.subr.mxu0 0.0
  %198 = vmatpush1.msra.mxu0 0.0
  %199 = vmatprep.subr.mxu0 0.0
  %200 = vmatpush1.msra.mxu0 0.0
  %201 = vmatprep.subr.mxu0 0.0
  %202 = vmatpush1.msra.mxu0 0.0
  %203 = vmatprep.subr.mxu0 0.0
  %204 = vmatpush1.msra.mxu0 0.0
  %205 = vmatprep.subr.mxu0 0.0
  %206 = vmatpush1.msra.mxu0 0.0
  %207 = vmatprep.subr.mxu0 0.0
  %208 = vmatpush1.msra.mxu0 0.0
  %209 = vmatprep.subr.mxu0 0.0
  %210 = vmatpush1.msra.mxu0 0.0
  %211 = vmatprep.mubr.f32.mxu0 0.0
  %v212 = vand.u32 %v57, 4294901760
  %213 = vmatmul.mubr.f32.gmra.mrb[0].mxu0 %v212
  %v214 = vpop.f32.mrb[0].mxu0
  %v215 = vadd.f32 %v133, %v214
  %v216 = vpop.f32.mrb[0].mxu0
  %v217 = vadd.f32 %v135, %v216
  %218 = vdwg.mxu0
  %v219 = vand.u32 %v49, 4294901760
  %v220 = vsub.f32 %v49, %v219
  %221 = vmatprep.subr.mxu0 %v220
  %v222 = vand.u32 %v48, 4294901760
  %v223 = vsub.f32 %v48, %v222
  %224 = vmatpush1.msra.mxu0 %v223
  %225 = vmatprep.subr.mxu0 0.0
  %226 = vmatpush1.msra.mxu0 0.0
  %227 = vmatprep.subr.mxu0 0.0
  %228 = vmatpush1.msra.mxu0 0.0
  %229 = vmatprep.subr.mxu0 0.0
  %230 = vmatpush1.msra.mxu0 0.0
  %231 = vmatprep.subr.mxu0 0.0
  %232 = vmatpush1.msra.mxu0 0.0
  %233 = vmatprep.subr.mxu0 0.0
  %234 = vmatpush1.msra.mxu0 0.0
  %235 = vmatprep.subr.mxu0 0.0
  %236 = vmatpush1.msra.mxu0 0.0
  %237 = vmatprep.subr.mxu0 0.0
  %238 = vmatpush1.msra.mxu0 0.0
  %239 = vmatprep.subr.mxu0 0.0
  %240 = vmatpush1.msra.mxu0 0.0
  %241 = vmatprep.subr.mxu0 0.0
  %242 = vmatpush1.msra.mxu0 0.0
  %243 = vmatprep.subr.mxu0 0.0
  %244 = vmatpush1.msra.mxu0 0.0
  %245 = vmatprep.subr.mxu0 0.0
  %246 = vmatpush1.msra.mxu0 0.0
  %247 = vmatprep.subr.mxu0 0.0
  %248 = vmatpush1.msra.mxu0 0.0
  %249 = vmatprep.subr.mxu0 0.0
  %250 = vmatpush1.msra.mxu0 0.0
  %251 = vmatprep.subr.mxu0 0.0
  %252 = vmatpush1.msra.mxu0 0.0
  %253 = vmatprep.subr.mxu0 0.0
  %254 = vmatpush1.msra.mxu0 0.0
  %255 = vmatprep.subr.mxu0 0.0
  %256 = vmatpush1.msra.mxu0 0.0
  %257 = vmatprep.subr.mxu0 0.0
  %258 = vmatpush1.msra.mxu0 0.0
  %259 = vmatprep.subr.mxu0 0.0
  %260 = vmatpush1.msra.mxu0 0.0
  %261 = vmatprep.subr.mxu0 0.0
  %262 = vmatpush1.msra.mxu0 0.0
  %263 = vmatprep.subr.mxu0 0.0
  %264 = vmatpush1.msra.mxu0 0.0
  %265 = vmatprep.subr.mxu0 0.0
  %266 = vmatpush1.msra.mxu0 0.0
  %267 = vmatprep.subr.mxu0 0.0
  %268 = vmatpush1.msra.mxu0 0.0
  %269 = vmatprep.subr.mxu0 0.0
  %270 = vmatpush1.msra.mxu0 0.0
  %271 = vmatprep.subr.mxu0 0.0
  %272 = vmatpush1.msra.mxu0 0.0
  %273 = vmatprep.subr.mxu0 0.0
  %274 = vmatpush1.msra.mxu0 0.0
  %275 = vmatprep.subr.mxu0 0.0
  %276 = vmatpush1.msra.mxu0 0.0
  %277 = vmatprep.subr.mxu0 0.0
  %278 = vmatpush1.msra.mxu0 0.0
  %279 = vmatprep.subr.mxu0 0.0
  %280 = vmatpush1.msra.mxu0 0.0
  %281 = vmatprep.subr.mxu0 0.0
  %282 = vmatpush1.msra.mxu0 0.0
  %283 = vmatprep.subr.mxu0 0.0
  %284 = vmatpush1.msra.mxu0 0.0
  %285 = vmatprep.subr.mxu0 0.0
  %286 = vmatpush1.msra.mxu0 0.0
  %287 = vmatprep.mubr.f32.mxu0 0.0
  %v288 = vand.u32 %v57, 4294901760
  %v289 = vsub.f32 %v57, %v288
  %290 = vmatmul.mubr.f32.gmra.mrb[0].mxu0 %v289
  %v291 = vpop.f32.mrb[0].mxu0
  %v292 = vadd.f32 %v215, %v291
  %v293 = vpop.f32.mrb[0].mxu0
  %v294 = vadd.f32 %v217, %v293
  %295 = vdwg.mxu0
  %v296 = vand.u32 %v49, 4294901760
  %297 = vmatprep.subr.mxu0 %v296
  %v298 = vand.u32 %v48, 4294901760
  %299 = vmatpush1.msra.mxu0 %v298
  %300 = vmatprep.subr.mxu0 0.0
  %301 = vmatpush1.msra.mxu0 0.0
  %302 = vmatprep.subr.mxu0 0.0
  %303 = vmatpush1.msra.mxu0 0.0
  %304 = vmatprep.subr.mxu0 0.0
  %305 = vmatpush1.msra.mxu0 0.0
  %306 = vmatprep.subr.mxu0 0.0
  %307 = vmatpush1.msra.mxu0 0.0
  %308 = vmatprep.subr.mxu0 0.0
  %309 = vmatpush1.msra.mxu0 0.0
  %310 = vmatprep.subr.mxu0 0.0
  %311 = vmatpush1.msra.mxu0 0.0
  %312 = vmatprep.subr.mxu0 0.0
  %313 = vmatpush1.msra.mxu0 0.0
  %314 = vmatprep.subr.mxu0 0.0
  %315 = vmatpush1.msra.mxu0 0.0
  %316 = vmatprep.subr.mxu0 0.0
  %317 = vmatpush1.msra.mxu0 0.0
  %318 = vmatprep.subr.mxu0 0.0
  %319 = vmatpush1.msra.mxu0 0.0
  %320 = vmatprep.subr.mxu0 0.0
  %321 = vmatpush1.msra.mxu0 0.0
  %322 = vmatprep.subr.mxu0 0.0
  %323 = vmatpush1.msra.mxu0 0.0
  %324 = vmatprep.subr.mxu0 0.0
  %325 = vmatpush1.msra.mxu0 0.0
  %326 = vmatprep.subr.mxu0 0.0
  %327 = vmatpush1.msra.mxu0 0.0
  %328 = vmatprep.subr.mxu0 0.0
  %329 = vmatpush1.msra.mxu0 0.0
  %330 = vmatprep.subr.mxu0 0.0
  %331 = vmatpush1.msra.mxu0 0.0
  %332 = vmatprep.subr.mxu0 0.0
  %333 = vmatpush1.msra.mxu0 0.0
  %334 = vmatprep.subr.mxu0 0.0
  %335 = vmatpush1.msra.mxu0 0.0
  %336 = vmatprep.subr.mxu0 0.0
  %337 = vmatpush1.msra.mxu0 0.0
  %338 = vmatprep.subr.mxu0 0.0
  %339 = vmatpush1.msra.mxu0 0.0
  %340 = vmatprep.subr.mxu0 0.0
  %341 = vmatpush1.msra.mxu0 0.0
  %342 = vmatprep.subr.mxu0 0.0
  %343 = vmatpush1.msra.mxu0 0.0
  %344 = vmatprep.subr.mxu0 0.0
  %345 = vmatpush1.msra.mxu0 0.0
  %346 = vmatprep.subr.mxu0 0.0
  %347 = vmatpush1.msra.mxu0 0.0
  %348 = vmatprep.subr.mxu0 0.0
  %349 = vmatpush1.msra.mxu0 0.0
  %350 = vmatprep.subr.mxu0 0.0
  %351 = vmatpush1.msra.mxu0 0.0
  %352 = vmatprep.subr.mxu0 0.0
  %353 = vmatpush1.msra.mxu0 0.0
  %354 = vmatprep.subr.mxu0 0.0
  %355 = vmatpush1.msra.mxu0 0.0
  %356 = vmatprep.subr.mxu0 0.0
  %357 = vmatpush1.msra.mxu0 0.0
  %358 = vmatprep.subr.mxu0 0.0
  %359 = vmatpush1.msra.mxu0 0.0
  %360 = vmatprep.subr.mxu0 0.0
  %361 = vmatpush1.msra.mxu0 0.0
  %362 = vmatprep.mubr.f32.mxu0 0.0
  %v363 = vand.u32 %v57, 4294901760
  %v364 = vsub.f32 %v57, %v363
  %v365 = vand.u32 %v364, 4294901760
  %366 = vmatmul.mubr.f32.gmra.mrb[0].mxu0 %v365
  %v367 = vpop.f32.mrb[0].mxu0
  %v368 = vadd.f32 %v292, %v367
  %v369 = vpop.f32.mrb[0].mxu0
  %v370 = vadd.f32 %v294, %v369
  %371 = vdwg.mxu0
  %v372 = vand.u32 %v49, 4294901760
  %v373 = vsub.f32 %v49, %v372
  %v374 = vand.u32 %v373, 4294901760
  %375 = vmatprep.subr.mxu0 %v374
  %v376 = vand.u32 %v48, 4294901760
  %v377 = vsub.f32 %v48, %v376
  %v378 = vand.u32 %v377, 4294901760
  %379 = vmatpush1.msra.mxu0 %v378
  %380 = vmatprep.subr.mxu0 0.0
  %381 = vmatpush1.msra.mxu0 0.0
  %382 = vmatprep.subr.mxu0 0.0
  %383 = vmatpush1.msra.mxu0 0.0
  %384 = vmatprep.subr.mxu0 0.0
  %385 = vmatpush1.msra.mxu0 0.0
  %386 = vmatprep.subr.mxu0 0.0
  %387 = vmatpush1.msra.mxu0 0.0
  %388 = vmatprep.subr.mxu0 0.0
  %389 = vmatpush1.msra.mxu0 0.0
  %390 = vmatprep.subr.mxu0 0.0
  %391 = vmatpush1.msra.mxu0 0.0
  %392 = vmatprep.subr.mxu0 0.0
  %393 = vmatpush1.msra.mxu0 0.0
  %394 = vmatprep.subr.mxu0 0.0
  %395 = vmatpush1.msra.mxu0 0.0
  %396 = vmatprep.subr.mxu0 0.0
  %397 = vmatpush1.msra.mxu0 0.0
  %398 = vmatprep.subr.mxu0 0.0
  %399 = vmatpush1.msra.mxu0 0.0
  %400 = vmatprep.subr.mxu0 0.0
  %401 = vmatpush1.msra.mxu0 0.0
  %402 = vmatprep.subr.mxu0 0.0
  %403 = vmatpush1.msra.mxu0 0.0
  %404 = vmatprep.subr.mxu0 0.0
  %405 = vmatpush1.msra.mxu0 0.0
  %406 = vmatprep.subr.mxu0 0.0
  %407 = vmatpush1.msra.mxu0 0.0
  %408 = vmatprep.subr.mxu0 0.0
  %409 = vmatpush1.msra.mxu0 0.0
  %410 = vmatprep.subr.mxu0 0.0
  %411 = vmatpush1.msra.mxu0 0.0
  %412 = vmatprep.subr.mxu0 0.0
  %413 = vmatpush1.msra.mxu0 0.0
  %414 = vmatprep.subr.mxu0 0.0
  %415 = vmatpush1.msra.mxu0 0.0
  %416 = vmatprep.subr.mxu0 0.0
  %417 = vmatpush1.msra.mxu0 0.0
  %418 = vmatprep.subr.mxu0 0.0
  %419 = vmatpush1.msra.mxu0 0.0
  %420 = vmatprep.subr.mxu0 0.0
  %421 = vmatpush1.msra.mxu0 0.0
  %422 = vmatprep.subr.mxu0 0.0
  %423 = vmatpush1.msra.mxu0 0.0
  %424 = vmatprep.subr.mxu0 0.0
  %425 = vmatpush1.msra.mxu0 0.0
  %426 = vmatprep.subr.mxu0 0.0
  %427 = vmatpush1.msra.mxu0 0.0
  %428 = vmatprep.subr.mxu0 0.0
  %429 = vmatpush1.msra.mxu0 0.0
  %430 = vmatprep.subr.mxu0 0.0
  %431 = vmatpush1.msra.mxu0 0.0
  %432 = vmatprep.subr.mxu0 0.0
  %433 = vmatpush1.msra.mxu0 0.0
  %434 = vmatprep.subr.mxu0 0.0
  %435 = vmatpush1.msra.mxu0 0.0
  %436 = vmatprep.subr.mxu0 0.0
  %437 = vmatpush1.msra.mxu0 0.0
  %438 = vmatprep.subr.mxu0 0.0
  %439 = vmatpush1.msra.mxu0 0.0
  %440 = vmatprep.subr.mxu0 0.0
  %441 = vmatpush1.msra.mxu0 0.0
  %442 = vmatprep.mubr.f32.mxu0 0.0
  %v443 = vand.u32 %v57, 4294901760
  %444 = vmatmul.mubr.f32.gmra.mrb[0].mxu0 %v443
  %v445 = vpop.f32.mrb[0].mxu0
  %v446 = vadd.f32 %v368, %v445
  %v447 = vpop.f32.mrb[0].mxu0
  %v448 = vadd.f32 %v370, %v447
  %449 = vdwg.mxu0
  %v450 = vand.u32 %v49, 4294901760
  %451 = vmatprep.subr.mxu0 %v450
  %v452 = vand.u32 %v48, 4294901760
  %453 = vmatpush1.msra.mxu0 %v452
  %454 = vmatprep.subr.mxu0 0.0
  %455 = vmatpush1.msra.mxu0 0.0
  %456 = vmatprep.subr.mxu0 0.0
  %457 = vmatpush1.msra.mxu0 0.0
  %458 = vmatprep.subr.mxu0 0.0
  %459 = vmatpush1.msra.mxu0 0.0
  %460 = vmatprep.subr.mxu0 0.0
  %461 = vmatpush1.msra.mxu0 0.0
  %462 = vmatprep.subr.mxu0 0.0
  %463 = vmatpush1.msra.mxu0 0.0
  %464 = vmatprep.subr.mxu0 0.0
  %465 = vmatpush1.msra.mxu0 0.0
  %466 = vmatprep.subr.mxu0 0.0
  %467 = vmatpush1.msra.mxu0 0.0
  %468 = vmatprep.subr.mxu0 0.0
  %469 = vmatpush1.msra.mxu0 0.0
  %470 = vmatprep.subr.mxu0 0.0
  %471 = vmatpush1.msra.mxu0 0.0
  %472 = vmatprep.subr.mxu0 0.0
  %473 = vmatpush1.msra.mxu0 0.0
  %474 = vmatprep.subr.mxu0 0.0
  %475 = vmatpush1.msra.mxu0 0.0
  %476 = vmatprep.subr.mxu0 0.0
  %477 = vmatpush1.msra.mxu0 0.0
  %478 = vmatprep.subr.mxu0 0.0
  %479 = vmatpush1.msra.mxu0 0.0
  %480 = vmatprep.subr.mxu0 0.0
  %481 = vmatpush1.msra.mxu0 0.0
  %482 = vmatprep.subr.mxu0 0.0
  %483 = vmatpush1.msra.mxu0 0.0
  %484 = vmatprep.subr.mxu0 0.0
  %485 = vmatpush1.msra.mxu0 0.0
  %486 = vmatprep.subr.mxu0 0.0
  %487 = vmatpush1.msra.mxu0 0.0
  %488 = vmatprep.subr.mxu0 0.0
  %489 = vmatpush1.msra.mxu0 0.0
  %490 = vmatprep.subr.mxu0 0.0
  %491 = vmatpush1.msra.mxu0 0.0
  %492 = vmatprep.subr.mxu0 0.0
  %493 = vmatpush1.msra.mxu0 0.0
  %494 = vmatprep.subr.mxu0 0.0
  %495 = vmatpush1.msra.mxu0 0.0
  %496 = vmatprep.subr.mxu0 0.0
  %497 = vmatpush1.msra.mxu0 0.0
  %498 = vmatprep.subr.mxu0 0.0
  %499 = vmatpush1.msra.mxu0 0.0
  %500 = vmatprep.subr.mxu0 0.0
  %501 = vmatpush1.msra.mxu0 0.0
  %502 = vmatprep.subr.mxu0 0.0
  %503 = vmatpush1.msra.mxu0 0.0
  %504 = vmatprep.subr.mxu0 0.0
  %505 = vmatpush1.msra.mxu0 0.0
  %506 = vmatprep.subr.mxu0 0.0
  %507 = vmatpush1.msra.mxu0 0.0
  %508 = vmatprep.subr.mxu0 0.0
  %509 = vmatpush1.msra.mxu0 0.0
  %510 = vmatprep.subr.mxu0 0.0
  %511 = vmatpush1.msra.mxu0 0.0
  %512 = vmatprep.subr.mxu0 0.0
  %513 = vmatpush1.msra.mxu0 0.0
  %514 = vmatprep.subr.mxu0 0.0
  %515 = vmatpush1.msra.mxu0 0.0
  %516 = vmatprep.mubr.f32.mxu0 0.0
  %v517 = vand.u32 %v57, 4294901760
  %518 = vmatmul.mubr.f32.gmra.mrb[0].mxu0 %v517
  %v519 = vpop.f32.mrb[0].mxu0
  %v520 = vadd.f32 %v446, %v519
  %v521 = vpop.f32.mrb[0].mxu0
  %v522 = vadd.f32 %v448, %v521
  %523 = vdwg.mxu0
  %v524 = vxor.u32 %v520, 2147483648
  %v525 = vxor.u32 %v522, 2147483648
  %v526 = vmul.f32 %v524, 1.442695
  %v527 = vpow.pop %v526
  %v528 = vmul.f32 %v525, 1.442695
  %v529 = vpow.pop %v528
  %v530 = vadd.f32 %v527, 1.0
  %v531 = vadd.f32 %v529, 1.0
  %v532 = vrcp.pop %v530
  %v533 = vmul.f32 1.0, %v532
  %v534 = vrcp.pop %v531
  %v535 = vmul.f32 1.0, %v534
  %v536 = vmul.f32 %v520, %v533
  %v537 = vmul.f32 %v522, %v535
  %538 = vrot.lane.b32.xlu0 %v536, 16
  %v539 = vpop.permute.xlu0 %538
  %540 = vrot.lane.b32.xlu0 %v537, 16
  %v541 = vpop.permute.xlu0 %540
  %v542 = vlaneseq
  %v543 = vand.u32 %v542, 127
  %vm544 = vcmp.lt.s32.totalorder %v543, 16
  %v545 = vsel %vm544, %v539, %v541
  %v546 = vsel %vm544, %v541, %v539
  %v548 = vlaneseq
  %v549 = vshrl.u32 %v548, 7
  %v550 = vsub.s32 0, %v549
  %v551 = vrot.slane %v23, %v550
  %v552 = vlaneseq
  %v553 = vshrl.u32 %v552, 7
  %v554 = vsub.s32 1, %v553
  %v555 = vrot.slane %v23, %v554
  %v558 = vadd.f32 %v546, %v551
  %v559 = vadd.f32 %v545, %v555
  %560 = vrot.lane.b32.xlu0 %v536, 112
  %v561 = vpop.permute.xlu0 %560
  %562 = vrot.lane.b32.xlu0 %v537, 112
  %v563 = vpop.permute.xlu0 %562
  %vm564 = vcmp.lt.s32.totalorder %v543, 112
  %v565 = vsel %vm564, %v561, %v563
  %v566 = vsel %vm564, %v563, %v561
  %v568 = vlaneseq
  %v569 = vshrl.u32 %v568, 7
  %v570 = vsub.s32 0, %v569
  %v571 = vrot.slane %v27, %v570
  %v572 = vlaneseq
  %v573 = vshrl.u32 %v572, 7
  %v574 = vsub.s32 1, %v573
  %v575 = vrot.slane %v27, %v574
  %v578 = vadd.f32 %v565, %v571
  %v579 = vadd.f32 %v566, %v575
  %v580 = vmax.f32 %v558, %v578
  %v581 = vmax.f32 %v559, %v579
  %v582 = vmax.f32 %v536, %v580
  %v583 = vmax.f32 %v537, %v581
  %584 = vrot.lane.b32.xlu0 %v536, 32
  %v585 = vpop.permute.xlu0 %584
  %586 = vrot.lane.b32.xlu0 %v537, 32
  %v587 = vpop.permute.xlu0 %586
  %vm588 = vcmp.lt.s32.totalorder %v543, 32
  %v589 = vsel %vm588, %v585, %v587
  %v590 = vsel %vm588, %v587, %v585
  %v592 = vlaneseq
  %v593 = vshrl.u32 %v592, 7
  %v594 = vsub.s32 0, %v593
  %v595 = vrot.slane %v25, %v594
  %v596 = vlaneseq
  %v597 = vshrl.u32 %v596, 7
  %v598 = vsub.s32 1, %v597
  %v599 = vrot.slane %v25, %v598
  %v602 = vadd.f32 %v590, %v595
  %v603 = vadd.f32 %v589, %v599
  %604 = vrot.lane.b32.xlu0 %v536, 96
  %v605 = vpop.permute.xlu0 %604
  %606 = vrot.lane.b32.xlu0 %v537, 96
  %v607 = vpop.permute.xlu0 %606
  %vm608 = vcmp.lt.s32.totalorder %v543, 96
  %v609 = vsel %vm608, %v605, %v607
  %v610 = vsel %vm608, %v607, %v605
  %v612 = vlaneseq
  %v613 = vshrl.u32 %v612, 7
  %v614 = vsub.s32 0, %v613
  %v615 = vrot.slane %v29, %v614
  %v616 = vlaneseq
  %v617 = vshrl.u32 %v616, 7
  %v618 = vsub.s32 1, %v617
  %v619 = vrot.slane %v29, %v618
  %v622 = vadd.f32 %v609, %v615
  %v623 = vadd.f32 %v610, %v619
  %v624 = vmax.f32 %v602, %v622
  %v625 = vmax.f32 %v603, %v623
  %v626 = vmax.f32 %v582, %v624
  %v627 = vmax.f32 %v583, %v625
  %628 = vrot.lane.b32.xlu0 %v626, 1
  %v629 = vpop.permute.xlu0 %628
  %630 = vrot.lane.b32.xlu0 %v627, 1
  %v631 = vpop.permute.xlu0 %630
  %vm632 = vcmp.lt.s32.totalorder %v543, 1
  %v633 = vsel %vm632, %v629, %v631
  %v634 = vsel %vm632, %v631, %v629
  %v636 = vlaneseq
  %v637 = vshrl.u32 %v636, 7
  %v638 = vsub.s32 0, %v637
  %v639 = vrot.slane %v31, %v638
  %v640 = vlaneseq
  %v641 = vshrl.u32 %v640, 7
  %v642 = vsub.s32 1, %v641
  %v643 = vrot.slane %v31, %v642
  %v646 = vadd.f32 %v634, %v639
  %v647 = vadd.f32 %v633, %v643
  %648 = vrot.lane.b32.xlu0 %v626, 127
  %v649 = vpop.permute.xlu0 %648
  %650 = vrot.lane.b32.xlu0 %v627, 127
  %v651 = vpop.permute.xlu0 %650
  %vm652 = vcmp.lt.s32.totalorder %v543, 127
  %v653 = vsel %vm652, %v649, %v651
  %v654 = vsel %vm652, %v651, %v649
  %v656 = vlaneseq
  %v657 = vshrl.u32 %v656, 7
  %v658 = vsub.s32 0, %v657
  %v659 = vrot.slane %v35, %v658
  %v660 = vlaneseq
  %v661 = vshrl.u32 %v660, 7
  %v662 = vsub.s32 1, %v661
  %v663 = vrot.slane %v35, %v662
  %v666 = vadd.f32 %v653, %v659
  %v667 = vadd.f32 %v654, %v663
  %v668 = vmax.f32 %v646, %v666
  %v669 = vmax.f32 %v647, %v667
  %v670 = vmax.f32 %v626, %v668
  %v671 = vmax.f32 %v627, %v669
  %672 = vrot.lane.b32.xlu0 %v626, 2
  %v673 = vpop.permute.xlu0 %672
  %674 = vrot.lane.b32.xlu0 %v627, 2
  %v675 = vpop.permute.xlu0 %674
  %vm676 = vcmp.lt.s32.totalorder %v543, 2
  %v677 = vsel %vm676, %v673, %v675
  %v678 = vsel %vm676, %v675, %v673
  %v680 = vlaneseq
  %v681 = vshrl.u32 %v680, 7
  %v682 = vsub.s32 0, %v681
  %v683 = vrot.slane %v33, %v682
  %v684 = vlaneseq
  %v685 = vshrl.u32 %v684, 7
  %v686 = vsub.s32 1, %v685
  %v687 = vrot.slane %v33, %v686
  %v690 = vadd.f32 %v678, %v683
  %v691 = vadd.f32 %v677, %v687
  %692 = vrot.lane.b32.xlu0 %v626, 126
  %v693 = vpop.permute.xlu0 %692
  %694 = vrot.lane.b32.xlu0 %v627, 126
  %v695 = vpop.permute.xlu0 %694
  %vm696 = vcmp.lt.s32.totalorder %v543, 126
  %v697 = vsel %vm696, %v693, %v695
  %v698 = vsel %vm696, %v695, %v693
  %v700 = vlaneseq
  %v701 = vshrl.u32 %v700, 7
  %v702 = vsub.s32 0, %v701
  %v703 = vrot.slane %v37, %v702
  %v704 = vlaneseq
  %v705 = vshrl.u32 %v704, 7
  %v706 = vsub.s32 1, %v705
  %v707 = vrot.slane %v37, %v706
  %v710 = vadd.f32 %v697, %v703
  %v711 = vadd.f32 %v698, %v707
  %v712 = vmax.f32 %v690, %v710
  %v713 = vmax.f32 %v691, %v711
  %v714 = vmax.f32 %v670, %v712
  %v715 = vmax.f32 %v671, %v713
  %v717 = vsel %vm55, %v43, 0
  %v719 = vand.u32 %v715, 4294901760
  %720 = vmatprep.subr.mxu0 %v719
  %v721 = vand.u32 %v714, 4294901760
  %722 = vmatpush1.msra.mxu0 %v721
  %723 = vmatprep.subr.mxu0 0.0
  %724 = vmatpush1.msra.mxu0 0.0
  %725 = vmatprep.subr.mxu0 0.0
  %726 = vmatpush1.msra.mxu0 0.0
  %727 = vmatprep.subr.mxu0 0.0
  %728 = vmatpush1.msra.mxu0 0.0
  %729 = vmatprep.subr.mxu0 0.0
  %730 = vmatpush1.msra.mxu0 0.0
  %731 = vmatprep.subr.mxu0 0.0
  %732 = vmatpush1.msra.mxu0 0.0
  %733 = vmatprep.subr.mxu0 0.0
  %734 = vmatpush1.msra.mxu0 0.0
  %735 = vmatprep.subr.mxu0 0.0
  %736 = vmatpush1.msra.mxu0 0.0
  %737 = vmatprep.subr.mxu0 0.0
  %738 = vmatpush1.msra.mxu0 0.0
  %739 = vmatprep.subr.mxu0 0.0
  %740 = vmatpush1.msra.mxu0 0.0
  %741 = vmatprep.subr.mxu0 0.0
  %742 = vmatpush1.msra.mxu0 0.0
  %743 = vmatprep.subr.mxu0 0.0
  %744 = vmatpush1.msra.mxu0 0.0
  %745 = vmatprep.subr.mxu0 0.0
  %746 = vmatpush1.msra.mxu0 0.0
  %747 = vmatprep.subr.mxu0 0.0
  %748 = vmatpush1.msra.mxu0 0.0
  %749 = vmatprep.subr.mxu0 0.0
  %750 = vmatpush1.msra.mxu0 0.0
  %751 = vmatprep.subr.mxu0 0.0
  %752 = vmatpush1.msra.mxu0 0.0
  %753 = vmatprep.subr.mxu0 0.0
  %754 = vmatpush1.msra.mxu0 0.0
  %755 = vmatprep.subr.mxu0 0.0
  %756 = vmatpush1.msra.mxu0 0.0
  %757 = vmatprep.subr.mxu0 0.0
  %758 = vmatpush1.msra.mxu0 0.0
  %759 = vmatprep.subr.mxu0 0.0
  %760 = vmatpush1.msra.mxu0 0.0
  %761 = vmatprep.subr.mxu0 0.0
  %762 = vmatpush1.msra.mxu0 0.0
  %763 = vmatprep.subr.mxu0 0.0
  %764 = vmatpush1.msra.mxu0 0.0
  %765 = vmatprep.subr.mxu0 0.0
  %766 = vmatpush1.msra.mxu0 0.0
  %767 = vmatprep.subr.mxu0 0.0
  %768 = vmatpush1.msra.mxu0 0.0
  %769 = vmatprep.subr.mxu0 0.0
  %770 = vmatpush1.msra.mxu0 0.0
  %771 = vmatprep.subr.mxu0 0.0
  %772 = vmatpush1.msra.mxu0 0.0
  %773 = vmatprep.subr.mxu0 0.0
  %774 = vmatpush1.msra.mxu0 0.0
  %775 = vmatprep.subr.mxu0 0.0
  %776 = vmatpush1.msra.mxu0 0.0
  %777 = vmatprep.subr.mxu0 0.0
  %778 = vmatpush1.msra.mxu0 0.0
  %779 = vmatprep.subr.mxu0 0.0
  %780 = vmatpush1.msra.mxu0 0.0
  %781 = vmatprep.subr.mxu0 0.0
  %782 = vmatpush1.msra.mxu0 0.0
  %783 = vmatprep.subr.mxu0 0.0
  %784 = vmatpush1.msra.mxu0 0.0
  %785 = vmatprep.mubr.f32.mxu0 0.0
  %v786 = vand.u32 %v717, 4294901760
  %v787 = vsub.f32 %v717, %v786
  %v788 = vand.u32 %v787, 4294901760
  %v789 = vsub.f32 %v787, %v788
  %v790 = vand.u32 %v789, 4294901760
  %791 = vmatmul.mubr.f32.gmra.mrb[0].mxu0 %v790
  %v792 = vpop.f32.mrb[0].mxu0
  %v793 = vadd.f32 0.0, %v792
  %v794 = vpop.f32.mrb[0].mxu0
  %v795 = vadd.f32 0.0, %v794
  %796 = vdwg.mxu0
  %v797 = vand.u32 %v715, 4294901760
  %v798 = vsub.f32 %v715, %v797
  %v799 = vand.u32 %v798, 4294901760
  %v800 = vsub.f32 %v798, %v799
  %v801 = vand.u32 %v800, 4294901760
  %802 = vmatprep.subr.mxu0 %v801
  %v803 = vand.u32 %v714, 4294901760
  %v804 = vsub.f32 %v714, %v803
  %v805 = vand.u32 %v804, 4294901760
  %v806 = vsub.f32 %v804, %v805
  %v807 = vand.u32 %v806, 4294901760
  %808 = vmatpush1.msra.mxu0 %v807
  %809 = vmatprep.subr.mxu0 0.0
  %810 = vmatpush1.msra.mxu0 0.0
  %811 = vmatprep.subr.mxu0 0.0
  %812 = vmatpush1.msra.mxu0 0.0
  %813 = vmatprep.subr.mxu0 0.0
  %814 = vmatpush1.msra.mxu0 0.0
  %815 = vmatprep.subr.mxu0 0.0
  %816 = vmatpush1.msra.mxu0 0.0
  %817 = vmatprep.subr.mxu0 0.0
  %818 = vmatpush1.msra.mxu0 0.0
  %819 = vmatprep.subr.mxu0 0.0
  %820 = vmatpush1.msra.mxu0 0.0
  %821 = vmatprep.subr.mxu0 0.0
  %822 = vmatpush1.msra.mxu0 0.0
  %823 = vmatprep.subr.mxu0 0.0
  %824 = vmatpush1.msra.mxu0 0.0
  %825 = vmatprep.subr.mxu0 0.0
  %826 = vmatpush1.msra.mxu0 0.0
  %827 = vmatprep.subr.mxu0 0.0
  %828 = vmatpush1.msra.mxu0 0.0
  %829 = vmatprep.subr.mxu0 0.0
  %830 = vmatpush1.msra.mxu0 0.0
  %831 = vmatprep.subr.mxu0 0.0
  %832 = vmatpush1.msra.mxu0 0.0
  %833 = vmatprep.subr.mxu0 0.0
  %834 = vmatpush1.msra.mxu0 0.0
  %835 = vmatprep.subr.mxu0 0.0
  %836 = vmatpush1.msra.mxu0 0.0
  %837 = vmatprep.subr.mxu0 0.0
  %838 = vmatpush1.msra.mxu0 0.0
  %839 = vmatprep.subr.mxu0 0.0
  %840 = vmatpush1.msra.mxu0 0.0
  %841 = vmatprep.subr.mxu0 0.0
  %842 = vmatpush1.msra.mxu0 0.0
  %843 = vmatprep.subr.mxu0 0.0
  %844 = vmatpush1.msra.mxu0 0.0
  %845 = vmatprep.subr.mxu0 0.0
  %846 = vmatpush1.msra.mxu0 0.0
  %847 = vmatprep.subr.mxu0 0.0
  %848 = vmatpush1.msra.mxu0 0.0
  %849 = vmatprep.subr.mxu0 0.0
  %850 = vmatpush1.msra.mxu0 0.0
  %851 = vmatprep.subr.mxu0 0.0
  %852 = vmatpush1.msra.mxu0 0.0
  %853 = vmatprep.subr.mxu0 0.0
  %854 = vmatpush1.msra.mxu0 0.0
  %855 = vmatprep.subr.mxu0 0.0
  %856 = vmatpush1.msra.mxu0 0.0
  %857 = vmatprep.subr.mxu0 0.0
  %858 = vmatpush1.msra.mxu0 0.0
  %859 = vmatprep.subr.mxu0 0.0
  %860 = vmatpush1.msra.mxu0 0.0
  %861 = vmatprep.subr.mxu0 0.0
  %862 = vmatpush1.msra.mxu0 0.0
  %863 = vmatprep.subr.mxu0 0.0
  %864 = vmatpush1.msra.mxu0 0.0
  %865 = vmatprep.subr.mxu0 0.0
  %866 = vmatpush1.msra.mxu0 0.0
  %867 = vmatprep.subr.mxu0 0.0
  %868 = vmatpush1.msra.mxu0 0.0
  %869 = vmatprep.subr.mxu0 0.0
  %870 = vmatpush1.msra.mxu0 0.0
  %871 = vmatprep.mubr.f32.mxu0 0.0
  %v872 = vand.u32 %v717, 4294901760
  %873 = vmatmul.mubr.f32.gmra.mrb[0].mxu0 %v872
  %v874 = vpop.f32.mrb[0].mxu0
  %v875 = vadd.f32 %v793, %v874
  %v876 = vpop.f32.mrb[0].mxu0
  %v877 = vadd.f32 %v795, %v876
  %878 = vdwg.mxu0
  %v879 = vand.u32 %v715, 4294901760
  %v880 = vsub.f32 %v715, %v879
  %881 = vmatprep.subr.mxu0 %v880
  %v882 = vand.u32 %v714, 4294901760
  %v883 = vsub.f32 %v714, %v882
  %884 = vmatpush1.msra.mxu0 %v883
  %885 = vmatprep.subr.mxu0 0.0
  %886 = vmatpush1.msra.mxu0 0.0
  %887 = vmatprep.subr.mxu0 0.0
  %888 = vmatpush1.msra.mxu0 0.0
  %889 = vmatprep.subr.mxu0 0.0
  %890 = vmatpush1.msra.mxu0 0.0
  %891 = vmatprep.subr.mxu0 0.0
  %892 = vmatpush1.msra.mxu0 0.0
  %893 = vmatprep.subr.mxu0 0.0
  %894 = vmatpush1.msra.mxu0 0.0
  %895 = vmatprep.subr.mxu0 0.0
  %896 = vmatpush1.msra.mxu0 0.0
  %897 = vmatprep.subr.mxu0 0.0
  %898 = vmatpush1.msra.mxu0 0.0
  %899 = vmatprep.subr.mxu0 0.0
  %900 = vmatpush1.msra.mxu0 0.0
  %901 = vmatprep.subr.mxu0 0.0
  %902 = vmatpush1.msra.mxu0 0.0
  %903 = vmatprep.subr.mxu0 0.0
  %904 = vmatpush1.msra.mxu0 0.0
  %905 = vmatprep.subr.mxu0 0.0
  %906 = vmatpush1.msra.mxu0 0.0
  %907 = vmatprep.subr.mxu0 0.0
  %908 = vmatpush1.msra.mxu0 0.0
  %909 = vmatprep.subr.mxu0 0.0
  %910 = vmatpush1.msra.mxu0 0.0
  %911 = vmatprep.subr.mxu0 0.0
  %912 = vmatpush1.msra.mxu0 0.0
  %913 = vmatprep.subr.mxu0 0.0
  %914 = vmatpush1.msra.mxu0 0.0
  %915 = vmatprep.subr.mxu0 0.0
  %916 = vmatpush1.msra.mxu0 0.0
  %917 = vmatprep.subr.mxu0 0.0
  %918 = vmatpush1.msra.mxu0 0.0
  %919 = vmatprep.subr.mxu0 0.0
  %920 = vmatpush1.msra.mxu0 0.0
  %921 = vmatprep.subr.mxu0 0.0
  %922 = vmatpush1.msra.mxu0 0.0
  %923 = vmatprep.subr.mxu0 0.0
  %924 = vmatpush1.msra.mxu0 0.0
  %925 = vmatprep.subr.mxu0 0.0
  %926 = vmatpush1.msra.mxu0 0.0
  %927 = vmatprep.subr.mxu0 0.0
  %928 = vmatpush1.msra.mxu0 0.0
  %929 = vmatprep.subr.mxu0 0.0
  %930 = vmatpush1.msra.mxu0 0.0
  %931 = vmatprep.subr.mxu0 0.0
  %932 = vmatpush1.msra.mxu0 0.0
  %933 = vmatprep.subr.mxu0 0.0
  %934 = vmatpush1.msra.mxu0 0.0
  %935 = vmatprep.subr.mxu0 0.0
  %936 = vmatpush1.msra.mxu0 0.0
  %937 = vmatprep.subr.mxu0 0.0
  %938 = vmatpush1.msra.mxu0 0.0
  %939 = vmatprep.subr.mxu0 0.0
  %940 = vmatpush1.msra.mxu0 0.0
  %941 = vmatprep.subr.mxu0 0.0
  %942 = vmatpush1.msra.mxu0 0.0
  %943 = vmatprep.subr.mxu0 0.0
  %944 = vmatpush1.msra.mxu0 0.0
  %945 = vmatprep.subr.mxu0 0.0
  %946 = vmatpush1.msra.mxu0 0.0
  %947 = vmatprep.mubr.f32.mxu0 0.0
  %v948 = vand.u32 %v717, 4294901760
  %v949 = vsub.f32 %v717, %v948
  %950 = vmatmul.mubr.f32.gmra.mrb[0].mxu0 %v949
  %v951 = vpop.f32.mrb[0].mxu0
  %v952 = vadd.f32 %v875, %v951
  %v953 = vpop.f32.mrb[0].mxu0
  %v954 = vadd.f32 %v877, %v953
  %955 = vdwg.mxu0
  %v956 = vand.u32 %v715, 4294901760
  %957 = vmatprep.subr.mxu0 %v956
  %v958 = vand.u32 %v714, 4294901760
  %959 = vmatpush1.msra.mxu0 %v958
  %960 = vmatprep.subr.mxu0 0.0
  %961 = vmatpush1.msra.mxu0 0.0
  %962 = vmatprep.subr.mxu0 0.0
  %963 = vmatpush1.msra.mxu0 0.0
  %964 = vmatprep.subr.mxu0 0.0
  %965 = vmatpush1.msra.mxu0 0.0
  %966 = vmatprep.subr.mxu0 0.0
  %967 = vmatpush1.msra.mxu0 0.0
  %968 = vmatprep.subr.mxu0 0.0
  %969 = vmatpush1.msra.mxu0 0.0
  %970 = vmatprep.subr.mxu0 0.0
  %971 = vmatpush1.msra.mxu0 0.0
  %972 = vmatprep.subr.mxu0 0.0
  %973 = vmatpush1.msra.mxu0 0.0
  %974 = vmatprep.subr.mxu0 0.0
  %975 = vmatpush1.msra.mxu0 0.0
  %976 = vmatprep.subr.mxu0 0.0
  %977 = vmatpush1.msra.mxu0 0.0
  %978 = vmatprep.subr.mxu0 0.0
  %979 = vmatpush1.msra.mxu0 0.0
  %980 = vmatprep.subr.mxu0 0.0
  %981 = vmatpush1.msra.mxu0 0.0
  %982 = vmatprep.subr.mxu0 0.0
  %983 = vmatpush1.msra.mxu0 0.0
  %984 = vmatprep.subr.mxu0 0.0
  %985 = vmatpush1.msra.mxu0 0.0
  %986 = vmatprep.subr.mxu0 0.0
  %987 = vmatpush1.msra.mxu0 0.0
  %988 = vmatprep.subr.mxu0 0.0
  %989 = vmatpush1.msra.mxu0 0.0
  %990 = vmatprep.subr.mxu0 0.0
  %991 = vmatpush1.msra.mxu0 0.0
  %992 = vmatprep.subr.mxu0 0.0
  %993 = vmatpush1.msra.mxu0 0.0
  %994 = vmatprep.subr.mxu0 0.0
  %995 = vmatpush1.msra.mxu0 0.0
  %996 = vmatprep.subr.mxu0 0.0
  %997 = vmatpush1.msra.mxu0 0.0
  %998 = vmatprep.subr.mxu0 0.0
  %999 = vmatpush1.msra.mxu0 0.0
  %1000 = vmatprep.subr.mxu0 0.0
  %1001 = vmatpush1.msra.mxu0 0.0
  %1002 = vmatprep.subr.mxu0 0.0
  %1003 = vmatpush1.msra.mxu0 0.0
  %1004 = vmatprep.subr.mxu0 0.0
  %1005 = vmatpush1.msra.mxu0 0.0
  %1006 = vmatprep.subr.mxu0 0.0
  %1007 = vmatpush1.msra.mxu0 0.0
  %1008 = vmatprep.subr.mxu0 0.0
  %1009 = vmatpush1.msra.mxu0 0.0
  %1010 = vmatprep.subr.mxu0 0.0
  %1011 = vmatpush1.msra.mxu0 0.0
  %1012 = vmatprep.subr.mxu0 0.0
  %1013 = vmatpush1.msra.mxu0 0.0
  %1014 = vmatprep.subr.mxu0 0.0
  %1015 = vmatpush1.msra.mxu0 0.0
  %1016 = vmatprep.subr.mxu0 0.0
  %1017 = vmatpush1.msra.mxu0 0.0
  %1018 = vmatprep.subr.mxu0 0.0
  %1019 = vmatpush1.msra.mxu0 0.0
  %1020 = vmatprep.subr.mxu0 0.0
  %1021 = vmatpush1.msra.mxu0 0.0
  %1022 = vmatprep.mubr.f32.mxu0 0.0
  %v1023 = vand.u32 %v717, 4294901760
  %v1024 = vsub.f32 %v717, %v1023
  %v1025 = vand.u32 %v1024, 4294901760
  %1026 = vmatmul.mubr.f32.gmra.mrb[0].mxu0 %v1025
  %v1027 = vpop.f32.mrb[0].mxu0
  %v1028 = vadd.f32 %v952, %v1027
  %v1029 = vpop.f32.mrb[0].mxu0
  %v1030 = vadd.f32 %v954, %v1029
  %1031 = vdwg.mxu0
  %v1032 = vand.u32 %v715, 4294901760
  %v1033 = vsub.f32 %v715, %v1032
  %v1034 = vand.u32 %v1033, 4294901760
  %1035 = vmatprep.subr.mxu0 %v1034
  %v1036 = vand.u32 %v714, 4294901760
  %v1037 = vsub.f32 %v714, %v1036
  %v1038 = vand.u32 %v1037, 4294901760
  %1039 = vmatpush1.msra.mxu0 %v1038
  %1040 = vmatprep.subr.mxu0 0.0
  %1041 = vmatpush1.msra.mxu0 0.0
  %1042 = vmatprep.subr.mxu0 0.0
  %1043 = vmatpush1.msra.mxu0 0.0
  %1044 = vmatprep.subr.mxu0 0.0
  %1045 = vmatpush1.msra.mxu0 0.0
  %1046 = vmatprep.subr.mxu0 0.0
  %1047 = vmatpush1.msra.mxu0 0.0
  %1048 = vmatprep.subr.mxu0 0.0
  %1049 = vmatpush1.msra.mxu0 0.0
  %1050 = vmatprep.subr.mxu0 0.0
  %1051 = vmatpush1.msra.mxu0 0.0
  %1052 = vmatprep.subr.mxu0 0.0
  %1053 = vmatpush1.msra.mxu0 0.0
  %1054 = vmatprep.subr.mxu0 0.0
  %1055 = vmatpush1.msra.mxu0 0.0
  %1056 = vmatprep.subr.mxu0 0.0
  %1057 = vmatpush1.msra.mxu0 0.0
  %1058 = vmatprep.subr.mxu0 0.0
  %1059 = vmatpush1.msra.mxu0 0.0
  %1060 = vmatprep.subr.mxu0 0.0
  %1061 = vmatpush1.msra.mxu0 0.0
  %1062 = vmatprep.subr.mxu0 0.0
  %1063 = vmatpush1.msra.mxu0 0.0
  %1064 = vmatprep.subr.mxu0 0.0
  %1065 = vmatpush1.msra.mxu0 0.0
  %1066 = vmatprep.subr.mxu0 0.0
  %1067 = vmatpush1.msra.mxu0 0.0
  %1068 = vmatprep.subr.mxu0 0.0
  %1069 = vmatpush1.msra.mxu0 0.0
  %1070 = vmatprep.subr.mxu0 0.0
  %1071 = vmatpush1.msra.mxu0 0.0
  %1072 = vmatprep.subr.mxu0 0.0
  %1073 = vmatpush1.msra.mxu0 0.0
  %1074 = vmatprep.subr.mxu0 0.0
  %1075 = vmatpush1.msra.mxu0 0.0
  %1076 = vmatprep.subr.mxu0 0.0
  %1077 = vmatpush1.msra.mxu0 0.0
  %1078 = vmatprep.subr.mxu0 0.0
  %1079 = vmatpush1.msra.mxu0 0.0
  %1080 = vmatprep.subr.mxu0 0.0
  %1081 = vmatpush1.msra.mxu0 0.0
  %1082 = vmatprep.subr.mxu0 0.0
  %1083 = vmatpush1.msra.mxu0 0.0
  %1084 = vmatprep.subr.mxu0 0.0
  %1085 = vmatpush1.msra.mxu0 0.0
  %1086 = vmatprep.subr.mxu0 0.0
  %1087 = vmatpush1.msra.mxu0 0.0
  %1088 = vmatprep.subr.mxu0 0.0
  %1089 = vmatpush1.msra.mxu0 0.0
  %1090 = vmatprep.subr.mxu0 0.0
  %1091 = vmatpush1.msra.mxu0 0.0
  %1092 = vmatprep.subr.mxu0 0.0
  %1093 = vmatpush1.msra.mxu0 0.0
  %1094 = vmatprep.subr.mxu0 0.0
  %1095 = vmatpush1.msra.mxu0 0.0
  %1096 = vmatprep.subr.mxu0 0.0
  %1097 = vmatpush1.msra.mxu0 0.0
  %1098 = vmatprep.subr.mxu0 0.0
  %1099 = vmatpush1.msra.mxu0 0.0
  %1100 = vmatprep.subr.mxu0 0.0
  %1101 = vmatpush1.msra.mxu0 0.0
  %1102 = vmatprep.mubr.f32.mxu0 0.0
  %v1103 = vand.u32 %v717, 4294901760
  %1104 = vmatmul.mubr.f32.gmra.mrb[0].mxu0 %v1103
  %v1105 = vpop.f32.mrb[0].mxu0
  %v1106 = vadd.f32 %v1028, %v1105
  %v1107 = vpop.f32.mrb[0].mxu0
  %v1108 = vadd.f32 %v1030, %v1107
  %1109 = vdwg.mxu0
  %v1110 = vand.u32 %v715, 4294901760
  %1111 = vmatprep.subr.mxu0 %v1110
  %v1112 = vand.u32 %v714, 4294901760
  %1113 = vmatpush1.msra.mxu0 %v1112
  %1114 = vmatprep.subr.mxu0 0.0
  %1115 = vmatpush1.msra.mxu0 0.0
  %1116 = vmatprep.subr.mxu0 0.0
  %1117 = vmatpush1.msra.mxu0 0.0
  %1118 = vmatprep.subr.mxu0 0.0
  %1119 = vmatpush1.msra.mxu0 0.0
  %1120 = vmatprep.subr.mxu0 0.0
  %1121 = vmatpush1.msra.mxu0 0.0
  %1122 = vmatprep.subr.mxu0 0.0
  %1123 = vmatpush1.msra.mxu0 0.0
  %1124 = vmatprep.subr.mxu0 0.0
  %1125 = vmatpush1.msra.mxu0 0.0
  %1126 = vmatprep.subr.mxu0 0.0
  %1127 = vmatpush1.msra.mxu0 0.0
  %1128 = vmatprep.subr.mxu0 0.0
  %1129 = vmatpush1.msra.mxu0 0.0
  %1130 = vmatprep.subr.mxu0 0.0
  %1131 = vmatpush1.msra.mxu0 0.0
  %1132 = vmatprep.subr.mxu0 0.0
  %1133 = vmatpush1.msra.mxu0 0.0
  %1134 = vmatprep.subr.mxu0 0.0
  %1135 = vmatpush1.msra.mxu0 0.0
  %1136 = vmatprep.subr.mxu0 0.0
  %1137 = vmatpush1.msra.mxu0 0.0
  %1138 = vmatprep.subr.mxu0 0.0
  %1139 = vmatpush1.msra.mxu0 0.0
  %1140 = vmatprep.subr.mxu0 0.0
  %1141 = vmatpush1.msra.mxu0 0.0
  %1142 = vmatprep.subr.mxu0 0.0
  %1143 = vmatpush1.msra.mxu0 0.0
  %1144 = vmatprep.subr.mxu0 0.0
  %1145 = vmatpush1.msra.mxu0 0.0
  %1146 = vmatprep.subr.mxu0 0.0
  %1147 = vmatpush1.msra.mxu0 0.0
  %1148 = vmatprep.subr.mxu0 0.0
  %1149 = vmatpush1.msra.mxu0 0.0
  %1150 = vmatprep.subr.mxu0 0.0
  %1151 = vmatpush1.msra.mxu0 0.0
  %1152 = vmatprep.subr.mxu0 0.0
  %1153 = vmatpush1.msra.mxu0 0.0
  %1154 = vmatprep.subr.mxu0 0.0
  %1155 = vmatpush1.msra.mxu0 0.0
  %1156 = vmatprep.subr.mxu0 0.0
  %1157 = vmatpush1.msra.mxu0 0.0
  %1158 = vmatprep.subr.mxu0 0.0
  %1159 = vmatpush1.msra.mxu0 0.0
  %1160 = vmatprep.subr.mxu0 0.0
  %1161 = vmatpush1.msra.mxu0 0.0
  %1162 = vmatprep.subr.mxu0 0.0
  %1163 = vmatpush1.msra.mxu0 0.0
  %1164 = vmatprep.subr.mxu0 0.0
  %1165 = vmatpush1.msra.mxu0 0.0
  %1166 = vmatprep.subr.mxu0 0.0
  %1167 = vmatpush1.msra.mxu0 0.0
  %1168 = vmatprep.subr.mxu0 0.0
  %1169 = vmatpush1.msra.mxu0 0.0
  %1170 = vmatprep.subr.mxu0 0.0
  %1171 = vmatpush1.msra.mxu0 0.0
  %1172 = vmatprep.subr.mxu0 0.0
  %1173 = vmatpush1.msra.mxu0 0.0
  %1174 = vmatprep.subr.mxu0 0.0
  %1175 = vmatpush1.msra.mxu0 0.0
  %1176 = vmatprep.mubr.f32.mxu0 0.0
  %v1177 = vand.u32 %v717, 4294901760
  %1178 = vmatmul.mubr.f32.gmra.mrb[0].mxu0 %v1177
  %v1179 = vpop.f32.mrb[0].mxu0
  %v1180 = vadd.f32 %v1106, %v1179
  %v1181 = vpop.f32.mrb[0].mxu0
  %v1182 = vadd.f32 %v1108, %v1181
  %1183 = vdwg.mxu0
  %v1185 = vsel %vm55, %v41, 0
  %v1187 = vand.u32 %v537, 4294901760
  %1188 = vmatprep.subr.mxu0 %v1187
  %v1189 = vand.u32 %v536, 4294901760
  %1190 = vmatpush1.msra.mxu0 %v1189
  %1191 = vmatprep.subr.mxu0 0.0
  %1192 = vmatpush1.msra.mxu0 0.0
  %1193 = vmatprep.subr.mxu0 0.0
  %1194 = vmatpush1.msra.mxu0 0.0
  %1195 = vmatprep.subr.mxu0 0.0
  %1196 = vmatpush1.msra.mxu0 0.0
  %1197 = vmatprep.subr.mxu0 0.0
  %1198 = vmatpush1.msra.mxu0 0.0
  %1199 = vmatprep.subr.mxu0 0.0
  %1200 = vmatpush1.msra.mxu0 0.0
  %1201 = vmatprep.subr.mxu0 0.0
  %1202 = vmatpush1.msra.mxu0 0.0
  %1203 = vmatprep.subr.mxu0 0.0
  %1204 = vmatpush1.msra.mxu0 0.0
  %1205 = vmatprep.subr.mxu0 0.0
  %1206 = vmatpush1.msra.mxu0 0.0
  %1207 = vmatprep.subr.mxu0 0.0
  %1208 = vmatpush1.msra.mxu0 0.0
  %1209 = vmatprep.subr.mxu0 0.0
  %1210 = vmatpush1.msra.mxu0 0.0
  %1211 = vmatprep.subr.mxu0 0.0
  %1212 = vmatpush1.msra.mxu0 0.0
  %1213 = vmatprep.subr.mxu0 0.0
  %1214 = vmatpush1.msra.mxu0 0.0
  %1215 = vmatprep.subr.mxu0 0.0
  %1216 = vmatpush1.msra.mxu0 0.0
  %1217 = vmatprep.subr.mxu0 0.0
  %1218 = vmatpush1.msra.mxu0 0.0
  %1219 = vmatprep.subr.mxu0 0.0
  %1220 = vmatpush1.msra.mxu0 0.0
  %1221 = vmatprep.subr.mxu0 0.0
  %1222 = vmatpush1.msra.mxu0 0.0
  %1223 = vmatprep.subr.mxu0 0.0
  %1224 = vmatpush1.msra.mxu0 0.0
  %1225 = vmatprep.subr.mxu0 0.0
  %1226 = vmatpush1.msra.mxu0 0.0
  %1227 = vmatprep.subr.mxu0 0.0
  %1228 = vmatpush1.msra.mxu0 0.0
  %1229 = vmatprep.subr.mxu0 0.0
  %1230 = vmatpush1.msra.mxu0 0.0
  %1231 = vmatprep.subr.mxu0 0.0
  %1232 = vmatpush1.msra.mxu0 0.0
  %1233 = vmatprep.subr.mxu0 0.0
  %1234 = vmatpush1.msra.mxu0 0.0
  %1235 = vmatprep.subr.mxu0 0.0
  %1236 = vmatpush1.msra.mxu0 0.0
  %1237 = vmatprep.subr.mxu0 0.0
  %1238 = vmatpush1.msra.mxu0 0.0
  %1239 = vmatprep.subr.mxu0 0.0
  %1240 = vmatpush1.msra.mxu0 0.0
  %1241 = vmatprep.subr.mxu0 0.0
  %1242 = vmatpush1.msra.mxu0 0.0
  %1243 = vmatprep.subr.mxu0 0.0
  %1244 = vmatpush1.msra.mxu0 0.0
  %1245 = vmatprep.subr.mxu0 0.0
  %1246 = vmatpush1.msra.mxu0 0.0
  %1247 = vmatprep.subr.mxu0 0.0
  %1248 = vmatpush1.msra.mxu0 0.0
  %1249 = vmatprep.subr.mxu0 0.0
  %1250 = vmatpush1.msra.mxu0 0.0
  %1251 = vmatprep.subr.mxu0 0.0
  %1252 = vmatpush1.msra.mxu0 0.0
  %1253 = vmatprep.mubr.f32.mxu0 0.0
  %v1254 = vand.u32 %v1185, 4294901760
  %v1255 = vsub.f32 %v1185, %v1254
  %v1256 = vand.u32 %v1255, 4294901760
  %v1257 = vsub.f32 %v1255, %v1256
  %v1258 = vand.u32 %v1257, 4294901760
  %1259 = vmatmul.mubr.f32.gmra.mrb[0].mxu0 %v1258
  %v1260 = vpop.f32.mrb[0].mxu0
  %v1261 = vadd.f32 %v1180, %v1260
  %v1262 = vpop.f32.mrb[0].mxu0
  %v1263 = vadd.f32 %v1182, %v1262
  %1264 = vdwg.mxu0
  %v1265 = vand.u32 %v537, 4294901760
  %v1266 = vsub.f32 %v537, %v1265
  %v1267 = vand.u32 %v1266, 4294901760
  %v1268 = vsub.f32 %v1266, %v1267
  %v1269 = vand.u32 %v1268, 4294901760
  %1270 = vmatprep.subr.mxu0 %v1269
  %v1271 = vand.u32 %v536, 4294901760
  %v1272 = vsub.f32 %v536, %v1271
  %v1273 = vand.u32 %v1272, 4294901760
  %v1274 = vsub.f32 %v1272, %v1273
  %v1275 = vand.u32 %v1274, 4294901760
  %1276 = vmatpush1.msra.mxu0 %v1275
  %1277 = vmatprep.subr.mxu0 0.0
  %1278 = vmatpush1.msra.mxu0 0.0
  %1279 = vmatprep.subr.mxu0 0.0
  %1280 = vmatpush1.msra.mxu0 0.0
  %1281 = vmatprep.subr.mxu0 0.0
  %1282 = vmatpush1.msra.mxu0 0.0
  %1283 = vmatprep.subr.mxu0 0.0
  %1284 = vmatpush1.msra.mxu0 0.0
  %1285 = vmatprep.subr.mxu0 0.0
  %1286 = vmatpush1.msra.mxu0 0.0
  %1287 = vmatprep.subr.mxu0 0.0
  %1288 = vmatpush1.msra.mxu0 0.0
  %1289 = vmatprep.subr.mxu0 0.0
  %1290 = vmatpush1.msra.mxu0 0.0
  %1291 = vmatprep.subr.mxu0 0.0
  %1292 = vmatpush1.msra.mxu0 0.0
  %1293 = vmatprep.subr.mxu0 0.0
  %1294 = vmatpush1.msra.mxu0 0.0
  %1295 = vmatprep.subr.mxu0 0.0
  %1296 = vmatpush1.msra.mxu0 0.0
  %1297 = vmatprep.subr.mxu0 0.0
  %1298 = vmatpush1.msra.mxu0 0.0
  %1299 = vmatprep.subr.mxu0 0.0
  %1300 = vmatpush1.msra.mxu0 0.0
  %1301 = vmatprep.subr.mxu0 0.0
  %1302 = vmatpush1.msra.mxu0 0.0
  %1303 = vmatprep.subr.mxu0 0.0
  %1304 = vmatpush1.msra.mxu0 0.0
  %1305 = vmatprep.subr.mxu0 0.0
  %1306 = vmatpush1.msra.mxu0 0.0
  %1307 = vmatprep.subr.mxu0 0.0
  %1308 = vmatpush1.msra.mxu0 0.0
  %1309 = vmatprep.subr.mxu0 0.0
  %1310 = vmatpush1.msra.mxu0 0.0
  %1311 = vmatprep.subr.mxu0 0.0
  %1312 = vmatpush1.msra.mxu0 0.0
  %1313 = vmatprep.subr.mxu0 0.0
  %1314 = vmatpush1.msra.mxu0 0.0
  %1315 = vmatprep.subr.mxu0 0.0
  %1316 = vmatpush1.msra.mxu0 0.0
  %1317 = vmatprep.subr.mxu0 0.0
  %1318 = vmatpush1.msra.mxu0 0.0
  %1319 = vmatprep.subr.mxu0 0.0
  %1320 = vmatpush1.msra.mxu0 0.0
  %1321 = vmatprep.subr.mxu0 0.0
  %1322 = vmatpush1.msra.mxu0 0.0
  %1323 = vmatprep.subr.mxu0 0.0
  %1324 = vmatpush1.msra.mxu0 0.0
  %1325 = vmatprep.subr.mxu0 0.0
  %1326 = vmatpush1.msra.mxu0 0.0
  %1327 = vmatprep.subr.mxu0 0.0
  %1328 = vmatpush1.msra.mxu0 0.0
  %1329 = vmatprep.subr.mxu0 0.0
  %1330 = vmatpush1.msra.mxu0 0.0
  %1331 = vmatprep.subr.mxu0 0.0
  %1332 = vmatpush1.msra.mxu0 0.0
  %1333 = vmatprep.subr.mxu0 0.0
  %1334 = vmatpush1.msra.mxu0 0.0
  %1335 = vmatprep.subr.mxu0 0.0
  %1336 = vmatpush1.msra.mxu0 0.0
  %1337 = vmatprep.subr.mxu0 0.0
  %1338 = vmatpush1.msra.mxu0 0.0
  %1339 = vmatprep.mubr.f32.mxu0 0.0
  %v1340 = vand.u32 %v1185, 4294901760
  %1341 = vmatmul.mubr.f32.gmra.mrb[0].mxu0 %v1340
  %v1342 = vpop.f32.mrb[0].mxu0
  %v1343 = vadd.f32 %v1261, %v1342
  %v1344 = vpop.f32.mrb[0].mxu0
  %v1345 = vadd.f32 %v1263, %v1344
  %1346 = vdwg.mxu0
  %v1347 = vand.u32 %v537, 4294901760
  %v1348 = vsub.f32 %v537, %v1347
  %1349 = vmatprep.subr.mxu0 %v1348
  %v1350 = vand.u32 %v536, 4294901760
  %v1351 = vsub.f32 %v536, %v1350
  %1352 = vmatpush1.msra.mxu0 %v1351
  %1353 = vmatprep.subr.mxu0 0.0
  %1354 = vmatpush1.msra.mxu0 0.0
  %1355 = vmatprep.subr.mxu0 0.0
  %1356 = vmatpush1.msra.mxu0 0.0
  %1357 = vmatprep.subr.mxu0 0.0
  %1358 = vmatpush1.msra.mxu0 0.0
  %1359 = vmatprep.subr.mxu0 0.0
  %1360 = vmatpush1.msra.mxu0 0.0
  %1361 = vmatprep.subr.mxu0 0.0
  %1362 = vmatpush1.msra.mxu0 0.0
  %1363 = vmatprep.subr.mxu0 0.0
  %1364 = vmatpush1.msra.mxu0 0.0
  %1365 = vmatprep.subr.mxu0 0.0
  %1366 = vmatpush1.msra.mxu0 0.0
  %1367 = vmatprep.subr.mxu0 0.0
  %1368 = vmatpush1.msra.mxu0 0.0
  %1369 = vmatprep.subr.mxu0 0.0
  %1370 = vmatpush1.msra.mxu0 0.0
  %1371 = vmatprep.subr.mxu0 0.0
  %1372 = vmatpush1.msra.mxu0 0.0
  %1373 = vmatprep.subr.mxu0 0.0
  %1374 = vmatpush1.msra.mxu0 0.0
  %1375 = vmatprep.subr.mxu0 0.0
  %1376 = vmatpush1.msra.mxu0 0.0
  %1377 = vmatprep.subr.mxu0 0.0
  %1378 = vmatpush1.msra.mxu0 0.0
  %1379 = vmatprep.subr.mxu0 0.0
  %1380 = vmatpush1.msra.mxu0 0.0
  %1381 = vmatprep.subr.mxu0 0.0
  %1382 = vmatpush1.msra.mxu0 0.0
  %1383 = vmatprep.subr.mxu0 0.0
  %1384 = vmatpush1.msra.mxu0 0.0
  %1385 = vmatprep.subr.mxu0 0.0
  %1386 = vmatpush1.msra.mxu0 0.0
  %1387 = vmatprep.subr.mxu0 0.0
  %1388 = vmatpush1.msra.mxu0 0.0
  %1389 = vmatprep.subr.mxu0 0.0
  %1390 = vmatpush1.msra.mxu0 0.0
  %1391 = vmatprep.subr.mxu0 0.0
  %1392 = vmatpush1.msra.mxu0 0.0
  %1393 = vmatprep.subr.mxu0 0.0
  %1394 = vmatpush1.msra.mxu0 0.0
  %1395 = vmatprep.subr.mxu0 0.0
  %1396 = vmatpush1.msra.mxu0 0.0
  %1397 = vmatprep.subr.mxu0 0.0
  %1398 = vmatpush1.msra.mxu0 0.0
  %1399 = vmatprep.subr.mxu0 0.0
  %1400 = vmatpush1.msra.mxu0 0.0
  %1401 = vmatprep.subr.mxu0 0.0
  %1402 = vmatpush1.msra.mxu0 0.0
  %1403 = vmatprep.subr.mxu0 0.0
  %1404 = vmatpush1.msra.mxu0 0.0
  %1405 = vmatprep.subr.mxu0 0.0
  %1406 = vmatpush1.msra.mxu0 0.0
  %1407 = vmatprep.subr.mxu0 0.0
  %1408 = vmatpush1.msra.mxu0 0.0
  %1409 = vmatprep.subr.mxu0 0.0
  %1410 = vmatpush1.msra.mxu0 0.0
  %1411 = vmatprep.subr.mxu0 0.0
  %1412 = vmatpush1.msra.mxu0 0.0
  %1413 = vmatprep.subr.mxu0 0.0
  %1414 = vmatpush1.msra.mxu0 0.0
  %1415 = vmatprep.mubr.f32.mxu0 0.0
  %v1416 = vand.u32 %v1185, 4294901760
  %v1417 = vsub.f32 %v1185, %v1416
  %1418 = vmatmul.mubr.f32.gmra.mrb[0].mxu0 %v1417
  %v1419 = vpop.f32.mrb[0].mxu0
  %v1420 = vadd.f32 %v1343, %v1419
  %v1421 = vpop.f32.mrb[0].mxu0
  %v1422 = vadd.f32 %v1345, %v1421
  %1423 = vdwg.mxu0
  %v1424 = vand.u32 %v537, 4294901760
  %1425 = vmatprep.subr.mxu0 %v1424
  %v1426 = vand.u32 %v536, 4294901760
  %1427 = vmatpush1.msra.mxu0 %v1426
  %1428 = vmatprep.subr.mxu0 0.0
  %1429 = vmatpush1.msra.mxu0 0.0
  %1430 = vmatprep.subr.mxu0 0.0
  %1431 = vmatpush1.msra.mxu0 0.0
  %1432 = vmatprep.subr.mxu0 0.0
  %1433 = vmatpush1.msra.mxu0 0.0
  %1434 = vmatprep.subr.mxu0 0.0
  %1435 = vmatpush1.msra.mxu0 0.0
  %1436 = vmatprep.subr.mxu0 0.0
  %1437 = vmatpush1.msra.mxu0 0.0
  %1438 = vmatprep.subr.mxu0 0.0
  %1439 = vmatpush1.msra.mxu0 0.0
  %1440 = vmatprep.subr.mxu0 0.0
  %1441 = vmatpush1.msra.mxu0 0.0
  %1442 = vmatprep.subr.mxu0 0.0
  %1443 = vmatpush1.msra.mxu0 0.0
  %1444 = vmatprep.subr.mxu0 0.0
  %1445 = vmatpush1.msra.mxu0 0.0
  %1446 = vmatprep.subr.mxu0 0.0
  %1447 = vmatpush1.msra.mxu0 0.0
  %1448 = vmatprep.subr.mxu0 0.0
  %1449 = vmatpush1.msra.mxu0 0.0
  %1450 = vmatprep.subr.mxu0 0.0
  %1451 = vmatpush1.msra.mxu0 0.0
  %1452 = vmatprep.subr.mxu0 0.0
  %1453 = vmatpush1.msra.mxu0 0.0
  %1454 = vmatprep.subr.mxu0 0.0
  %1455 = vmatpush1.msra.mxu0 0.0
  %1456 = vmatprep.subr.mxu0 0.0
  %1457 = vmatpush1.msra.mxu0 0.0
  %1458 = vmatprep.subr.mxu0 0.0
  %1459 = vmatpush1.msra.mxu0 0.0
  %1460 = vmatprep.subr.mxu0 0.0
  %1461 = vmatpush1.msra.mxu0 0.0
  %1462 = vmatprep.subr.mxu0 0.0
  %1463 = vmatpush1.msra.mxu0 0.0
  %1464 = vmatprep.subr.mxu0 0.0
  %1465 = vmatpush1.msra.mxu0 0.0
  %1466 = vmatprep.subr.mxu0 0.0
  %1467 = vmatpush1.msra.mxu0 0.0
  %1468 = vmatprep.subr.mxu0 0.0
  %1469 = vmatpush1.msra.mxu0 0.0
  %1470 = vmatprep.subr.mxu0 0.0
  %1471 = vmatpush1.msra.mxu0 0.0
  %1472 = vmatprep.subr.mxu0 0.0
  %1473 = vmatpush1.msra.mxu0 0.0
  %1474 = vmatprep.subr.mxu0 0.0
  %1475 = vmatpush1.msra.mxu0 0.0
  %1476 = vmatprep.subr.mxu0 0.0
  %1477 = vmatpush1.msra.mxu0 0.0
  %1478 = vmatprep.subr.mxu0 0.0
  %1479 = vmatpush1.msra.mxu0 0.0
  %1480 = vmatprep.subr.mxu0 0.0
  %1481 = vmatpush1.msra.mxu0 0.0
  %1482 = vmatprep.subr.mxu0 0.0
  %1483 = vmatpush1.msra.mxu0 0.0
  %1484 = vmatprep.subr.mxu0 0.0
  %1485 = vmatpush1.msra.mxu0 0.0
  %1486 = vmatprep.subr.mxu0 0.0
  %1487 = vmatpush1.msra.mxu0 0.0
  %1488 = vmatprep.subr.mxu0 0.0
  %1489 = vmatpush1.msra.mxu0 0.0
  %1490 = vmatprep.mubr.f32.mxu0 0.0
  %v1491 = vand.u32 %v1185, 4294901760
  %v1492 = vsub.f32 %v1185, %v1491
  %v1493 = vand.u32 %v1492, 4294901760
  %1494 = vmatmul.mubr.f32.gmra.mrb[0].mxu0 %v1493
  %v1495 = vpop.f32.mrb[0].mxu0
  %v1496 = vadd.f32 %v1420, %v1495
  %v1497 = vpop.f32.mrb[0].mxu0
  %v1498 = vadd.f32 %v1422, %v1497
  %1499 = vdwg.mxu0
  %v1500 = vand.u32 %v537, 4294901760
  %v1501 = vsub.f32 %v537, %v1500
  %v1502 = vand.u32 %v1501, 4294901760
  %1503 = vmatprep.subr.mxu0 %v1502
  %v1504 = vand.u32 %v536, 4294901760
  %v1505 = vsub.f32 %v536, %v1504
  %v1506 = vand.u32 %v1505, 4294901760
  %1507 = vmatpush1.msra.mxu0 %v1506
  %1508 = vmatprep.subr.mxu0 0.0
  %1509 = vmatpush1.msra.mxu0 0.0
  %1510 = vmatprep.subr.mxu0 0.0
  %1511 = vmatpush1.msra.mxu0 0.0
  %1512 = vmatprep.subr.mxu0 0.0
  %1513 = vmatpush1.msra.mxu0 0.0
  %1514 = vmatprep.subr.mxu0 0.0
  %1515 = vmatpush1.msra.mxu0 0.0
  %1516 = vmatprep.subr.mxu0 0.0
  %1517 = vmatpush1.msra.mxu0 0.0
  %1518 = vmatprep.subr.mxu0 0.0
  %1519 = vmatpush1.msra.mxu0 0.0
  %1520 = vmatprep.subr.mxu0 0.0
  %1521 = vmatpush1.msra.mxu0 0.0
  %1522 = vmatprep.subr.mxu0 0.0
  %1523 = vmatpush1.msra.mxu0 0.0
  %1524 = vmatprep.subr.mxu0 0.0
  %1525 = vmatpush1.msra.mxu0 0.0
  %1526 = vmatprep.subr.mxu0 0.0
  %1527 = vmatpush1.msra.mxu0 0.0
  %1528 = vmatprep.subr.mxu0 0.0
  %1529 = vmatpush1.msra.mxu0 0.0
  %1530 = vmatprep.subr.mxu0 0.0
  %1531 = vmatpush1.msra.mxu0 0.0
  %1532 = vmatprep.subr.mxu0 0.0
  %1533 = vmatpush1.msra.mxu0 0.0
  %1534 = vmatprep.subr.mxu0 0.0
  %1535 = vmatpush1.msra.mxu0 0.0
  %1536 = vmatprep.subr.mxu0 0.0
  %1537 = vmatpush1.msra.mxu0 0.0
  %1538 = vmatprep.subr.mxu0 0.0
  %1539 = vmatpush1.msra.mxu0 0.0
  %1540 = vmatprep.subr.mxu0 0.0
  %1541 = vmatpush1.msra.mxu0 0.0
  %1542 = vmatprep.subr.mxu0 0.0
  %1543 = vmatpush1.msra.mxu0 0.0
  %1544 = vmatprep.subr.mxu0 0.0
  %1545 = vmatpush1.msra.mxu0 0.0
  %1546 = vmatprep.subr.mxu0 0.0
  %1547 = vmatpush1.msra.mxu0 0.0
  %1548 = vmatprep.subr.mxu0 0.0
  %1549 = vmatpush1.msra.mxu0 0.0
  %1550 = vmatprep.subr.mxu0 0.0
  %1551 = vmatpush1.msra.mxu0 0.0
  %1552 = vmatprep.subr.mxu0 0.0
  %1553 = vmatpush1.msra.mxu0 0.0
  %1554 = vmatprep.subr.mxu0 0.0
  %1555 = vmatpush1.msra.mxu0 0.0
  %1556 = vmatprep.subr.mxu0 0.0
  %1557 = vmatpush1.msra.mxu0 0.0
  %1558 = vmatprep.subr.mxu0 0.0
  %1559 = vmatpush1.msra.mxu0 0.0
  %1560 = vmatprep.subr.mxu0 0.0
  %1561 = vmatpush1.msra.mxu0 0.0
  %1562 = vmatprep.subr.mxu0 0.0
  %1563 = vmatpush1.msra.mxu0 0.0
  %1564 = vmatprep.subr.mxu0 0.0
  %1565 = vmatpush1.msra.mxu0 0.0
  %1566 = vmatprep.subr.mxu0 0.0
  %1567 = vmatpush1.msra.mxu0 0.0
  %1568 = vmatprep.subr.mxu0 0.0
  %1569 = vmatpush1.msra.mxu0 0.0
  %1570 = vmatprep.mubr.f32.mxu0 0.0
  %v1571 = vand.u32 %v1185, 4294901760
  %1572 = vmatmul.mubr.f32.gmra.mrb[0].mxu0 %v1571
  %v1573 = vpop.f32.mrb[0].mxu0
  %v1574 = vadd.f32 %v1496, %v1573
  %v1575 = vpop.f32.mrb[0].mxu0
  %v1576 = vadd.f32 %v1498, %v1575
  %1577 = vdwg.mxu0
  %v1578 = vand.u32 %v537, 4294901760
  %1579 = vmatprep.subr.mxu0 %v1578
  %v1580 = vand.u32 %v536, 4294901760
  %1581 = vmatpush1.msra.mxu0 %v1580
  %1582 = vmatprep.subr.mxu0 0.0
  %1583 = vmatpush1.msra.mxu0 0.0
  %1584 = vmatprep.subr.mxu0 0.0
  %1585 = vmatpush1.msra.mxu0 0.0
  %1586 = vmatprep.subr.mxu0 0.0
  %1587 = vmatpush1.msra.mxu0 0.0
  %1588 = vmatprep.subr.mxu0 0.0
  %1589 = vmatpush1.msra.mxu0 0.0
  %1590 = vmatprep.subr.mxu0 0.0
  %1591 = vmatpush1.msra.mxu0 0.0
  %1592 = vmatprep.subr.mxu0 0.0
  %1593 = vmatpush1.msra.mxu0 0.0
  %1594 = vmatprep.subr.mxu0 0.0
  %1595 = vmatpush1.msra.mxu0 0.0
  %1596 = vmatprep.subr.mxu0 0.0
  %1597 = vmatpush1.msra.mxu0 0.0
  %1598 = vmatprep.subr.mxu0 0.0
  %1599 = vmatpush1.msra.mxu0 0.0
  %1600 = vmatprep.subr.mxu0 0.0
  %1601 = vmatpush1.msra.mxu0 0.0
  %1602 = vmatprep.subr.mxu0 0.0
  %1603 = vmatpush1.msra.mxu0 0.0
  %1604 = vmatprep.subr.mxu0 0.0
  %1605 = vmatpush1.msra.mxu0 0.0
  %1606 = vmatprep.subr.mxu0 0.0
  %1607 = vmatpush1.msra.mxu0 0.0
  %1608 = vmatprep.subr.mxu0 0.0
  %1609 = vmatpush1.msra.mxu0 0.0
  %1610 = vmatprep.subr.mxu0 0.0
  %1611 = vmatpush1.msra.mxu0 0.0
  %1612 = vmatprep.subr.mxu0 0.0
  %1613 = vmatpush1.msra.mxu0 0.0
  %1614 = vmatprep.subr.mxu0 0.0
  %1615 = vmatpush1.msra.mxu0 0.0
  %1616 = vmatprep.subr.mxu0 0.0
  %1617 = vmatpush1.msra.mxu0 0.0
  %1618 = vmatprep.subr.mxu0 0.0
  %1619 = vmatpush1.msra.mxu0 0.0
  %1620 = vmatprep.subr.mxu0 0.0
  %1621 = vmatpush1.msra.mxu0 0.0
  %1622 = vmatprep.subr.mxu0 0.0
  %1623 = vmatpush1.msra.mxu0 0.0
  %1624 = vmatprep.subr.mxu0 0.0
  %1625 = vmatpush1.msra.mxu0 0.0
  %1626 = vmatprep.subr.mxu0 0.0
  %1627 = vmatpush1.msra.mxu0 0.0
  %1628 = vmatprep.subr.mxu0 0.0
  %1629 = vmatpush1.msra.mxu0 0.0
  %1630 = vmatprep.subr.mxu0 0.0
  %1631 = vmatpush1.msra.mxu0 0.0
  %1632 = vmatprep.subr.mxu0 0.0
  %1633 = vmatpush1.msra.mxu0 0.0
  %1634 = vmatprep.subr.mxu0 0.0
  %1635 = vmatpush1.msra.mxu0 0.0
  %1636 = vmatprep.subr.mxu0 0.0
  %1637 = vmatpush1.msra.mxu0 0.0
  %1638 = vmatprep.subr.mxu0 0.0
  %1639 = vmatpush1.msra.mxu0 0.0
  %1640 = vmatprep.subr.mxu0 0.0
  %1641 = vmatpush1.msra.mxu0 0.0
  %1642 = vmatprep.subr.mxu0 0.0
  %1643 = vmatpush1.msra.mxu0 0.0
  %1644 = vmatprep.mubr.f32.mxu0 0.0
  %v1645 = vand.u32 %v1185, 4294901760
  %1646 = vmatmul.mubr.f32.gmra.mrb[0].mxu0 %v1645
  %v1647 = vpop.f32.mrb[0].mxu0
  %v1648 = vadd.f32 %v1574, %v1647
  %v1649 = vpop.f32.mrb[0].mxu0
  %v1650 = vadd.f32 %v1576, %v1649
  %1651 = vdwg.mxu0
  %1652 = vrot.lane.b32.xlu0 %v714, 16
  %v1653 = vpop.permute.xlu0 %1652
  %1654 = vrot.lane.b32.xlu0 %v715, 16
  %v1655 = vpop.permute.xlu0 %1654
  %v1656 = vsel %vm544, %v1653, %v1655
  %v1657 = vsel %vm544, %v1655, %v1653
  %v1658 = vadd.f32 %v1657, %v551
  %v1659 = vadd.f32 %v1656, %v555
  %1660 = vrot.lane.b32.xlu0 %v714, 112
  %v1661 = vpop.permute.xlu0 %1660
  %1662 = vrot.lane.b32.xlu0 %v715, 112
  %v1663 = vpop.permute.xlu0 %1662
  %v1664 = vsel %vm564, %v1661, %v1663
  %v1665 = vsel %vm564, %v1663, %v1661
  %v1666 = vadd.f32 %v1664, %v571
  %v1667 = vadd.f32 %v1665, %v575
  %v1668 = vmax.f32 %v1658, %v1666
  %v1669 = vmax.f32 %v1659, %v1667
  %v1670 = vmax.f32 %v714, %v1668
  %v1671 = vmax.f32 %v715, %v1669
  %1672 = vrot.lane.b32.xlu0 %v714, 32
  %v1673 = vpop.permute.xlu0 %1672
  %1674 = vrot.lane.b32.xlu0 %v715, 32
  %v1675 = vpop.permute.xlu0 %1674
  %v1676 = vsel %vm588, %v1673, %v1675
  %v1677 = vsel %vm588, %v1675, %v1673
  %v1678 = vadd.f32 %v1677, %v595
  %v1679 = vadd.f32 %v1676, %v599
  %1680 = vrot.lane.b32.xlu0 %v714, 96
  %v1681 = vpop.permute.xlu0 %1680
  %1682 = vrot.lane.b32.xlu0 %v715, 96
  %v1683 = vpop.permute.xlu0 %1682
  %v1684 = vsel %vm608, %v1681, %v1683
  %v1685 = vsel %vm608, %v1683, %v1681
  %v1686 = vadd.f32 %v1684, %v615
  %v1687 = vadd.f32 %v1685, %v619
  %v1688 = vmax.f32 %v1678, %v1686
  %v1689 = vmax.f32 %v1679, %v1687
  %v1690 = vmax.f32 %v1670, %v1688
  %v1691 = vmax.f32 %v1671, %v1689
  %1692 = vrot.lane.b32.xlu0 %v1690, 1
  %v1693 = vpop.permute.xlu0 %1692
  %1694 = vrot.lane.b32.xlu0 %v1691, 1
  %v1695 = vpop.permute.xlu0 %1694
  %v1696 = vsel %vm632, %v1693, %v1695
  %v1697 = vsel %vm632, %v1695, %v1693
  %v1698 = vadd.f32 %v1697, %v639
  %v1699 = vadd.f32 %v1696, %v643
  %1700 = vrot.lane.b32.xlu0 %v1690, 127
  %v1701 = vpop.permute.xlu0 %1700
  %1702 = vrot.lane.b32.xlu0 %v1691, 127
  %v1703 = vpop.permute.xlu0 %1702
  %v1704 = vsel %vm652, %v1701, %v1703
  %v1705 = vsel %vm652, %v1703, %v1701
  %v1706 = vadd.f32 %v1704, %v659
  %v1707 = vadd.f32 %v1705, %v663
  %v1708 = vmax.f32 %v1698, %v1706
  %v1709 = vmax.f32 %v1699, %v1707
  %v1710 = vmax.f32 %v1690, %v1708
  %v1711 = vmax.f32 %v1691, %v1709
  %1712 = vrot.lane.b32.xlu0 %v1690, 2
  %v1713 = vpop.permute.xlu0 %1712
  %1714 = vrot.lane.b32.xlu0 %v1691, 2
  %v1715 = vpop.permute.xlu0 %1714
  %v1716 = vsel %vm676, %v1713, %v1715
  %v1717 = vsel %vm676, %v1715, %v1713
  %v1718 = vadd.f32 %v1717, %v683
  %v1719 = vadd.f32 %v1716, %v687
  %1720 = vrot.lane.b32.xlu0 %v1690, 126
  %v1721 = vpop.permute.xlu0 %1720
  %1722 = vrot.lane.b32.xlu0 %v1691, 126
  %v1723 = vpop.permute.xlu0 %1722
  %v1724 = vsel %vm696, %v1721, %v1723
  %v1725 = vsel %vm696, %v1723, %v1721
  %v1726 = vadd.f32 %v1724, %v703
  %v1727 = vadd.f32 %v1725, %v707
  %v1728 = vmax.f32 %v1718, %v1726
  %v1729 = vmax.f32 %v1719, %v1727
  %v1730 = vmax.f32 %v1710, %v1728
  %v1731 = vmax.f32 %v1711, %v1729
  %v1733 = vsel %vm55, %v45, 0
  %v1735 = vand.u32 %v1731, 4294901760
  %1736 = vmatprep.subr.mxu0 %v1735
  %v1737 = vand.u32 %v1730, 4294901760
  %1738 = vmatpush1.msra.mxu0 %v1737
  %1739 = vmatprep.subr.mxu0 0.0
  %1740 = vmatpush1.msra.mxu0 0.0
  %1741 = vmatprep.subr.mxu0 0.0
  %1742 = vmatpush1.msra.mxu0 0.0
  %1743 = vmatprep.subr.mxu0 0.0
  %1744 = vmatpush1.msra.mxu0 0.0
  %1745 = vmatprep.subr.mxu0 0.0
  %1746 = vmatpush1.msra.mxu0 0.0
  %1747 = vmatprep.subr.mxu0 0.0
  %1748 = vmatpush1.msra.mxu0 0.0
  %1749 = vmatprep.subr.mxu0 0.0
  %1750 = vmatpush1.msra.mxu0 0.0
  %1751 = vmatprep.subr.mxu0 0.0
  %1752 = vmatpush1.msra.mxu0 0.0
  %1753 = vmatprep.subr.mxu0 0.0
  %1754 = vmatpush1.msra.mxu0 0.0
  %1755 = vmatprep.subr.mxu0 0.0
  %1756 = vmatpush1.msra.mxu0 0.0
  %1757 = vmatprep.subr.mxu0 0.0
  %1758 = vmatpush1.msra.mxu0 0.0
  %1759 = vmatprep.subr.mxu0 0.0
  %1760 = vmatpush1.msra.mxu0 0.0
  %1761 = vmatprep.subr.mxu0 0.0
  %1762 = vmatpush1.msra.mxu0 0.0
  %1763 = vmatprep.subr.mxu0 0.0
  %1764 = vmatpush1.msra.mxu0 0.0
  %1765 = vmatprep.subr.mxu0 0.0
  %1766 = vmatpush1.msra.mxu0 0.0
  %1767 = vmatprep.subr.mxu0 0.0
  %1768 = vmatpush1.msra.mxu0 0.0
  %1769 = vmatprep.subr.mxu0 0.0
  %1770 = vmatpush1.msra.mxu0 0.0
  %1771 = vmatprep.subr.mxu0 0.0
  %1772 = vmatpush1.msra.mxu0 0.0
  %1773 = vmatprep.subr.mxu0 0.0
  %1774 = vmatpush1.msra.mxu0 0.0
  %1775 = vmatprep.subr.mxu0 0.0
  %1776 = vmatpush1.msra.mxu0 0.0
  %1777 = vmatprep.subr.mxu0 0.0
  %1778 = vmatpush1.msra.mxu0 0.0
  %1779 = vmatprep.subr.mxu0 0.0
  %1780 = vmatpush1.msra.mxu0 0.0
  %1781 = vmatprep.subr.mxu0 0.0
  %1782 = vmatpush1.msra.mxu0 0.0
  %1783 = vmatprep.subr.mxu0 0.0
  %1784 = vmatpush1.msra.mxu0 0.0
  %1785 = vmatprep.subr.mxu0 0.0
  %1786 = vmatpush1.msra.mxu0 0.0
  %1787 = vmatprep.subr.mxu0 0.0
  %1788 = vmatpush1.msra.mxu0 0.0
  %1789 = vmatprep.subr.mxu0 0.0
  %1790 = vmatpush1.msra.mxu0 0.0
  %1791 = vmatprep.subr.mxu0 0.0
  %1792 = vmatpush1.msra.mxu0 0.0
  %1793 = vmatprep.subr.mxu0 0.0
  %1794 = vmatpush1.msra.mxu0 0.0
  %1795 = vmatprep.subr.mxu0 0.0
  %1796 = vmatpush1.msra.mxu0 0.0
  %1797 = vmatprep.subr.mxu0 0.0
  %1798 = vmatpush1.msra.mxu0 0.0
  %1799 = vmatprep.subr.mxu0 0.0
  %1800 = vmatpush1.msra.mxu0 0.0
  %1801 = vmatprep.mubr.f32.mxu0 0.0
  %v1802 = vand.u32 %v1733, 4294901760
  %v1803 = vsub.f32 %v1733, %v1802
  %v1804 = vand.u32 %v1803, 4294901760
  %v1805 = vsub.f32 %v1803, %v1804
  %v1806 = vand.u32 %v1805, 4294901760
  %1807 = vmatmul.mubr.f32.gmra.mrb[0].mxu0 %v1806
  %v1808 = vpop.f32.mrb[0].mxu0
  %v1809 = vadd.f32 0.0, %v1808
  %v1810 = vpop.f32.mrb[0].mxu0
  %v1811 = vadd.f32 0.0, %v1810
  %1812 = vdwg.mxu0
  %v1813 = vand.u32 %v1731, 4294901760
  %v1814 = vsub.f32 %v1731, %v1813
  %v1815 = vand.u32 %v1814, 4294901760
  %v1816 = vsub.f32 %v1814, %v1815
  %v1817 = vand.u32 %v1816, 4294901760
  %1818 = vmatprep.subr.mxu0 %v1817
  %v1819 = vand.u32 %v1730, 4294901760
  %v1820 = vsub.f32 %v1730, %v1819
  %v1821 = vand.u32 %v1820, 4294901760
  %v1822 = vsub.f32 %v1820, %v1821
  %v1823 = vand.u32 %v1822, 4294901760
  %1824 = vmatpush1.msra.mxu0 %v1823
  %1825 = vmatprep.subr.mxu0 0.0
  %1826 = vmatpush1.msra.mxu0 0.0
  %1827 = vmatprep.subr.mxu0 0.0
  %1828 = vmatpush1.msra.mxu0 0.0
  %1829 = vmatprep.subr.mxu0 0.0
  %1830 = vmatpush1.msra.mxu0 0.0
  %1831 = vmatprep.subr.mxu0 0.0
  %1832 = vmatpush1.msra.mxu0 0.0
  %1833 = vmatprep.subr.mxu0 0.0
  %1834 = vmatpush1.msra.mxu0 0.0
  %1835 = vmatprep.subr.mxu0 0.0
  %1836 = vmatpush1.msra.mxu0 0.0
  %1837 = vmatprep.subr.mxu0 0.0
  %1838 = vmatpush1.msra.mxu0 0.0
  %1839 = vmatprep.subr.mxu0 0.0
  %1840 = vmatpush1.msra.mxu0 0.0
  %1841 = vmatprep.subr.mxu0 0.0
  %1842 = vmatpush1.msra.mxu0 0.0
  %1843 = vmatprep.subr.mxu0 0.0
  %1844 = vmatpush1.msra.mxu0 0.0
  %1845 = vmatprep.subr.mxu0 0.0
  %1846 = vmatpush1.msra.mxu0 0.0
  %1847 = vmatprep.subr.mxu0 0.0
  %1848 = vmatpush1.msra.mxu0 0.0
  %1849 = vmatprep.subr.mxu0 0.0
  %1850 = vmatpush1.msra.mxu0 0.0
  %1851 = vmatprep.subr.mxu0 0.0
  %1852 = vmatpush1.msra.mxu0 0.0
  %1853 = vmatprep.subr.mxu0 0.0
  %1854 = vmatpush1.msra.mxu0 0.0
  %1855 = vmatprep.subr.mxu0 0.0
  %1856 = vmatpush1.msra.mxu0 0.0
  %1857 = vmatprep.subr.mxu0 0.0
  %1858 = vmatpush1.msra.mxu0 0.0
  %1859 = vmatprep.subr.mxu0 0.0
  %1860 = vmatpush1.msra.mxu0 0.0
  %1861 = vmatprep.subr.mxu0 0.0
  %1862 = vmatpush1.msra.mxu0 0.0
  %1863 = vmatprep.subr.mxu0 0.0
  %1864 = vmatpush1.msra.mxu0 0.0
  %1865 = vmatprep.subr.mxu0 0.0
  %1866 = vmatpush1.msra.mxu0 0.0
  %1867 = vmatprep.subr.mxu0 0.0
  %1868 = vmatpush1.msra.mxu0 0.0
  %1869 = vmatprep.subr.mxu0 0.0
  %1870 = vmatpush1.msra.mxu0 0.0
  %1871 = vmatprep.subr.mxu0 0.0
  %1872 = vmatpush1.msra.mxu0 0.0
  %1873 = vmatprep.subr.mxu0 0.0
  %1874 = vmatpush1.msra.mxu0 0.0
  %1875 = vmatprep.subr.mxu0 0.0
  %1876 = vmatpush1.msra.mxu0 0.0
  %1877 = vmatprep.subr.mxu0 0.0
  %1878 = vmatpush1.msra.mxu0 0.0
  %1879 = vmatprep.subr.mxu0 0.0
  %1880 = vmatpush1.msra.mxu0 0.0
  %1881 = vmatprep.subr.mxu0 0.0
  %1882 = vmatpush1.msra.mxu0 0.0
  %1883 = vmatprep.subr.mxu0 0.0
  %1884 = vmatpush1.msra.mxu0 0.0
  %1885 = vmatprep.subr.mxu0 0.0
  %1886 = vmatpush1.msra.mxu0 0.0
  %1887 = vmatprep.mubr.f32.mxu0 0.0
  %v1888 = vand.u32 %v1733, 4294901760
  %1889 = vmatmul.mubr.f32.gmra.mrb[0].mxu0 %v1888
  %v1890 = vpop.f32.mrb[0].mxu0
  %v1891 = vadd.f32 %v1809, %v1890
  %v1892 = vpop.f32.mrb[0].mxu0
  %v1893 = vadd.f32 %v1811, %v1892
  %1894 = vdwg.mxu0
  %v1895 = vand.u32 %v1731, 4294901760
  %v1896 = vsub.f32 %v1731, %v1895
  %1897 = vmatprep.subr.mxu0 %v1896
  %v1898 = vand.u32 %v1730, 4294901760
  %v1899 = vsub.f32 %v1730, %v1898
  %1900 = vmatpush1.msra.mxu0 %v1899
  %1901 = vmatprep.subr.mxu0 0.0
  %1902 = vmatpush1.msra.mxu0 0.0
  %1903 = vmatprep.subr.mxu0 0.0
  %1904 = vmatpush1.msra.mxu0 0.0
  %1905 = vmatprep.subr.mxu0 0.0
  %1906 = vmatpush1.msra.mxu0 0.0
  %1907 = vmatprep.subr.mxu0 0.0
  %1908 = vmatpush1.msra.mxu0 0.0
  %1909 = vmatprep.subr.mxu0 0.0
  %1910 = vmatpush1.msra.mxu0 0.0
  %1911 = vmatprep.subr.mxu0 0.0
  %1912 = vmatpush1.msra.mxu0 0.0
  %1913 = vmatprep.subr.mxu0 0.0
  %1914 = vmatpush1.msra.mxu0 0.0
  %1915 = vmatprep.subr.mxu0 0.0
  %1916 = vmatpush1.msra.mxu0 0.0
  %1917 = vmatprep.subr.mxu0 0.0
  %1918 = vmatpush1.msra.mxu0 0.0
  %1919 = vmatprep.subr.mxu0 0.0
  %1920 = vmatpush1.msra.mxu0 0.0
  %1921 = vmatprep.subr.mxu0 0.0
  %1922 = vmatpush1.msra.mxu0 0.0
  %1923 = vmatprep.subr.mxu0 0.0
  %1924 = vmatpush1.msra.mxu0 0.0
  %1925 = vmatprep.subr.mxu0 0.0
  %1926 = vmatpush1.msra.mxu0 0.0
  %1927 = vmatprep.subr.mxu0 0.0
  %1928 = vmatpush1.msra.mxu0 0.0
  %1929 = vmatprep.subr.mxu0 0.0
  %1930 = vmatpush1.msra.mxu0 0.0
  %1931 = vmatprep.subr.mxu0 0.0
  %1932 = vmatpush1.msra.mxu0 0.0
  %1933 = vmatprep.subr.mxu0 0.0
  %1934 = vmatpush1.msra.mxu0 0.0
  %1935 = vmatprep.subr.mxu0 0.0
  %1936 = vmatpush1.msra.mxu0 0.0
  %1937 = vmatprep.subr.mxu0 0.0
  %1938 = vmatpush1.msra.mxu0 0.0
  %1939 = vmatprep.subr.mxu0 0.0
  %1940 = vmatpush1.msra.mxu0 0.0
  %1941 = vmatprep.subr.mxu0 0.0
  %1942 = vmatpush1.msra.mxu0 0.0
  %1943 = vmatprep.subr.mxu0 0.0
  %1944 = vmatpush1.msra.mxu0 0.0
  %1945 = vmatprep.subr.mxu0 0.0
  %1946 = vmatpush1.msra.mxu0 0.0
  %1947 = vmatprep.subr.mxu0 0.0
  %1948 = vmatpush1.msra.mxu0 0.0
  %1949 = vmatprep.subr.mxu0 0.0
  %1950 = vmatpush1.msra.mxu0 0.0
  %1951 = vmatprep.subr.mxu0 0.0
  %1952 = vmatpush1.msra.mxu0 0.0
  %1953 = vmatprep.subr.mxu0 0.0
  %1954 = vmatpush1.msra.mxu0 0.0
  %1955 = vmatprep.subr.mxu0 0.0
  %1956 = vmatpush1.msra.mxu0 0.0
  %1957 = vmatprep.subr.mxu0 0.0
  %1958 = vmatpush1.msra.mxu0 0.0
  %1959 = vmatprep.subr.mxu0 0.0
  %1960 = vmatpush1.msra.mxu0 0.0
  %1961 = vmatprep.subr.mxu0 0.0
  %1962 = vmatpush1.msra.mxu0 0.0
  %1963 = vmatprep.mubr.f32.mxu0 0.0
  %v1964 = vand.u32 %v1733, 4294901760
  %v1965 = vsub.f32 %v1733, %v1964
  %1966 = vmatmul.mubr.f32.gmra.mrb[0].mxu0 %v1965
  %v1967 = vpop.f32.mrb[0].mxu0
  %v1968 = vadd.f32 %v1891, %v1967
  %v1969 = vpop.f32.mrb[0].mxu0
  %v1970 = vadd.f32 %v1893, %v1969
  %1971 = vdwg.mxu0
  %v1972 = vand.u32 %v1731, 4294901760
  %1973 = vmatprep.subr.mxu0 %v1972
  %v1974 = vand.u32 %v1730, 4294901760
  %1975 = vmatpush1.msra.mxu0 %v1974
  %1976 = vmatprep.subr.mxu0 0.0
  %1977 = vmatpush1.msra.mxu0 0.0
  %1978 = vmatprep.subr.mxu0 0.0
  %1979 = vmatpush1.msra.mxu0 0.0
  %1980 = vmatprep.subr.mxu0 0.0
  %1981 = vmatpush1.msra.mxu0 0.0
  %1982 = vmatprep.subr.mxu0 0.0
  %1983 = vmatpush1.msra.mxu0 0.0
  %1984 = vmatprep.subr.mxu0 0.0
  %1985 = vmatpush1.msra.mxu0 0.0
  %1986 = vmatprep.subr.mxu0 0.0
  %1987 = vmatpush1.msra.mxu0 0.0
  %1988 = vmatprep.subr.mxu0 0.0
  %1989 = vmatpush1.msra.mxu0 0.0
  %1990 = vmatprep.subr.mxu0 0.0
  %1991 = vmatpush1.msra.mxu0 0.0
  %1992 = vmatprep.subr.mxu0 0.0
  %1993 = vmatpush1.msra.mxu0 0.0
  %1994 = vmatprep.subr.mxu0 0.0
  %1995 = vmatpush1.msra.mxu0 0.0
  %1996 = vmatprep.subr.mxu0 0.0
  %1997 = vmatpush1.msra.mxu0 0.0
  %1998 = vmatprep.subr.mxu0 0.0
  %1999 = vmatpush1.msra.mxu0 0.0
  %2000 = vmatprep.subr.mxu0 0.0
  %2001 = vmatpush1.msra.mxu0 0.0
  %2002 = vmatprep.subr.mxu0 0.0
  %2003 = vmatpush1.msra.mxu0 0.0
  %2004 = vmatprep.subr.mxu0 0.0
  %2005 = vmatpush1.msra.mxu0 0.0
  %2006 = vmatprep.subr.mxu0 0.0
  %2007 = vmatpush1.msra.mxu0 0.0
  %2008 = vmatprep.subr.mxu0 0.0
  %2009 = vmatpush1.msra.mxu0 0.0
  %2010 = vmatprep.subr.mxu0 0.0
  %2011 = vmatpush1.msra.mxu0 0.0
  %2012 = vmatprep.subr.mxu0 0.0
  %2013 = vmatpush1.msra.mxu0 0.0
  %2014 = vmatprep.subr.mxu0 0.0
  %2015 = vmatpush1.msra.mxu0 0.0
  %2016 = vmatprep.subr.mxu0 0.0
  %2017 = vmatpush1.msra.mxu0 0.0
  %2018 = vmatprep.subr.mxu0 0.0
  %2019 = vmatpush1.msra.mxu0 0.0
  %2020 = vmatprep.subr.mxu0 0.0
  %2021 = vmatpush1.msra.mxu0 0.0
  %2022 = vmatprep.subr.mxu0 0.0
  %2023 = vmatpush1.msra.mxu0 0.0
  %2024 = vmatprep.subr.mxu0 0.0
  %2025 = vmatpush1.msra.mxu0 0.0
  %2026 = vmatprep.subr.mxu0 0.0
  %2027 = vmatpush1.msra.mxu0 0.0
  %2028 = vmatprep.subr.mxu0 0.0
  %2029 = vmatpush1.msra.mxu0 0.0
  %2030 = vmatprep.subr.mxu0 0.0
  %2031 = vmatpush1.msra.mxu0 0.0
  %2032 = vmatprep.subr.mxu0 0.0
  %2033 = vmatpush1.msra.mxu0 0.0
  %2034 = vmatprep.subr.mxu0 0.0
  %2035 = vmatpush1.msra.mxu0 0.0
  %2036 = vmatprep.subr.mxu0 0.0
  %2037 = vmatpush1.msra.mxu0 0.0
  %2038 = vmatprep.mubr.f32.mxu0 0.0
  %v2039 = vand.u32 %v1733, 4294901760
  %v2040 = vsub.f32 %v1733, %v2039
  %v2041 = vand.u32 %v2040, 4294901760
  %2042 = vmatmul.mubr.f32.gmra.mrb[0].mxu0 %v2041
  %v2043 = vpop.f32.mrb[0].mxu0
  %v2044 = vadd.f32 %v1968, %v2043
  %v2045 = vpop.f32.mrb[0].mxu0
  %v2046 = vadd.f32 %v1970, %v2045
  %2047 = vdwg.mxu0
  %v2048 = vand.u32 %v1731, 4294901760
  %v2049 = vsub.f32 %v1731, %v2048
  %v2050 = vand.u32 %v2049, 4294901760
  %2051 = vmatprep.subr.mxu0 %v2050
  %v2052 = vand.u32 %v1730, 4294901760
  %v2053 = vsub.f32 %v1730, %v2052
  %v2054 = vand.u32 %v2053, 4294901760
  %2055 = vmatpush1.msra.mxu0 %v2054
  %2056 = vmatprep.subr.mxu0 0.0
  %2057 = vmatpush1.msra.mxu0 0.0
  %2058 = vmatprep.subr.mxu0 0.0
  %2059 = vmatpush1.msra.mxu0 0.0
  %2060 = vmatprep.subr.mxu0 0.0
  %2061 = vmatpush1.msra.mxu0 0.0
  %2062 = vmatprep.subr.mxu0 0.0
  %2063 = vmatpush1.msra.mxu0 0.0
  %2064 = vmatprep.subr.mxu0 0.0
  %2065 = vmatpush1.msra.mxu0 0.0
  %2066 = vmatprep.subr.mxu0 0.0
  %2067 = vmatpush1.msra.mxu0 0.0
  %2068 = vmatprep.subr.mxu0 0.0
  %2069 = vmatpush1.msra.mxu0 0.0
  %2070 = vmatprep.subr.mxu0 0.0
  %2071 = vmatpush1.msra.mxu0 0.0
  %2072 = vmatprep.subr.mxu0 0.0
  %2073 = vmatpush1.msra.mxu0 0.0
  %2074 = vmatprep.subr.mxu0 0.0
  %2075 = vmatpush1.msra.mxu0 0.0
  %2076 = vmatprep.subr.mxu0 0.0
  %2077 = vmatpush1.msra.mxu0 0.0
  %2078 = vmatprep.subr.mxu0 0.0
  %2079 = vmatpush1.msra.mxu0 0.0
  %2080 = vmatprep.subr.mxu0 0.0
  %2081 = vmatpush1.msra.mxu0 0.0
  %2082 = vmatprep.subr.mxu0 0.0
  %2083 = vmatpush1.msra.mxu0 0.0
  %2084 = vmatprep.subr.mxu0 0.0
  %2085 = vmatpush1.msra.mxu0 0.0
  %2086 = vmatprep.subr.mxu0 0.0
  %2087 = vmatpush1.msra.mxu0 0.0
  %2088 = vmatprep.subr.mxu0 0.0
  %2089 = vmatpush1.msra.mxu0 0.0
  %2090 = vmatprep.subr.mxu0 0.0
  %2091 = vmatpush1.msra.mxu0 0.0
  %2092 = vmatprep.subr.mxu0 0.0
  %2093 = vmatpush1.msra.mxu0 0.0
  %2094 = vmatprep.subr.mxu0 0.0
  %2095 = vmatpush1.msra.mxu0 0.0
  %2096 = vmatprep.subr.mxu0 0.0
  %2097 = vmatpush1.msra.mxu0 0.0
  %2098 = vmatprep.subr.mxu0 0.0
  %2099 = vmatpush1.msra.mxu0 0.0
  %2100 = vmatprep.subr.mxu0 0.0
  %2101 = vmatpush1.msra.mxu0 0.0
  %2102 = vmatprep.subr.mxu0 0.0
  %2103 = vmatpush1.msra.mxu0 0.0
  %2104 = vmatprep.subr.mxu0 0.0
  %2105 = vmatpush1.msra.mxu0 0.0
  %2106 = vmatprep.subr.mxu0 0.0
  %2107 = vmatpush1.msra.mxu0 0.0
  %2108 = vmatprep.subr.mxu0 0.0
  %2109 = vmatpush1.msra.mxu0 0.0
  %2110 = vmatprep.subr.mxu0 0.0
  %2111 = vmatpush1.msra.mxu0 0.0
  %2112 = vmatprep.subr.mxu0 0.0
  %2113 = vmatpush1.msra.mxu0 0.0
  %2114 = vmatprep.subr.mxu0 0.0
  %2115 = vmatpush1.msra.mxu0 0.0
  %2116 = vmatprep.subr.mxu0 0.0
  %2117 = vmatpush1.msra.mxu0 0.0
  %2118 = vmatprep.mubr.f32.mxu0 0.0
  %v2119 = vand.u32 %v1733, 4294901760
  %2120 = vmatmul.mubr.f32.gmra.mrb[0].mxu0 %v2119
  %v2121 = vpop.f32.mrb[0].mxu0
  %v2122 = vadd.f32 %v2044, %v2121
  %v2123 = vpop.f32.mrb[0].mxu0
  %v2124 = vadd.f32 %v2046, %v2123
  %2125 = vdwg.mxu0
  %v2126 = vand.u32 %v1731, 4294901760
  %2127 = vmatprep.subr.mxu0 %v2126
  %v2128 = vand.u32 %v1730, 4294901760
  %2129 = vmatpush1.msra.mxu0 %v2128
  %2130 = vmatprep.subr.mxu0 0.0
  %2131 = vmatpush1.msra.mxu0 0.0
  %2132 = vmatprep.subr.mxu0 0.0
  %2133 = vmatpush1.msra.mxu0 0.0
  %2134 = vmatprep.subr.mxu0 0.0
  %2135 = vmatpush1.msra.mxu0 0.0
  %2136 = vmatprep.subr.mxu0 0.0
  %2137 = vmatpush1.msra.mxu0 0.0
  %2138 = vmatprep.subr.mxu0 0.0
  %2139 = vmatpush1.msra.mxu0 0.0
  %2140 = vmatprep.subr.mxu0 0.0
  %2141 = vmatpush1.msra.mxu0 0.0
  %2142 = vmatprep.subr.mxu0 0.0
  %2143 = vmatpush1.msra.mxu0 0.0
  %2144 = vmatprep.subr.mxu0 0.0
  %2145 = vmatpush1.msra.mxu0 0.0
  %2146 = vmatprep.subr.mxu0 0.0
  %2147 = vmatpush1.msra.mxu0 0.0
  %2148 = vmatprep.subr.mxu0 0.0
  %2149 = vmatpush1.msra.mxu0 0.0
  %2150 = vmatprep.subr.mxu0 0.0
  %2151 = vmatpush1.msra.mxu0 0.0
  %2152 = vmatprep.subr.mxu0 0.0
  %2153 = vmatpush1.msra.mxu0 0.0
  %2154 = vmatprep.subr.mxu0 0.0
  %2155 = vmatpush1.msra.mxu0 0.0
  %2156 = vmatprep.subr.mxu0 0.0
  %2157 = vmatpush1.msra.mxu0 0.0
  %2158 = vmatprep.subr.mxu0 0.0
  %2159 = vmatpush1.msra.mxu0 0.0
  %2160 = vmatprep.subr.mxu0 0.0
  %2161 = vmatpush1.msra.mxu0 0.0
  %2162 = vmatprep.subr.mxu0 0.0
  %2163 = vmatpush1.msra.mxu0 0.0
  %2164 = vmatprep.subr.mxu0 0.0
  %2165 = vmatpush1.msra.mxu0 0.0
  %2166 = vmatprep.subr.mxu0 0.0
  %2167 = vmatpush1.msra.mxu0 0.0
  %2168 = vmatprep.subr.mxu0 0.0
  %2169 = vmatpush1.msra.mxu0 0.0
  %2170 = vmatprep.subr.mxu0 0.0
  %2171 = vmatpush1.msra.mxu0 0.0
  %2172 = vmatprep.subr.mxu0 0.0
  %2173 = vmatpush1.msra.mxu0 0.0
  %2174 = vmatprep.subr.mxu0 0.0
  %2175 = vmatpush1.msra.mxu0 0.0
  %2176 = vmatprep.subr.mxu0 0.0
  %2177 = vmatpush1.msra.mxu0 0.0
  %2178 = vmatprep.subr.mxu0 0.0
  %2179 = vmatpush1.msra.mxu0 0.0
  %2180 = vmatprep.subr.mxu0 0.0
  %2181 = vmatpush1.msra.mxu0 0.0
  %2182 = vmatprep.subr.mxu0 0.0
  %2183 = vmatpush1.msra.mxu0 0.0
  %2184 = vmatprep.subr.mxu0 0.0
  %2185 = vmatpush1.msra.mxu0 0.0
  %2186 = vmatprep.subr.mxu0 0.0
  %2187 = vmatpush1.msra.mxu0 0.0
  %2188 = vmatprep.subr.mxu0 0.0
  %2189 = vmatpush1.msra.mxu0 0.0
  %2190 = vmatprep.subr.mxu0 0.0
  %2191 = vmatpush1.msra.mxu0 0.0
  %2192 = vmatprep.mubr.f32.mxu0 0.0
  %v2193 = vand.u32 %v1733, 4294901760
  %2194 = vmatmul.mubr.f32.gmra.mrb[0].mxu0 %v2193
  %v2195 = vpop.f32.mrb[0].mxu0
  %v2196 = vadd.f32 %v2122, %v2195
  %v2197 = vpop.f32.mrb[0].mxu0
  %v2198 = vadd.f32 %v2124, %v2197
  %2199 = vdwg.mxu0
  %v2200 = vadd.f32 %v1648, %v2196
  %v2201 = vadd.f32 %v1650, %v2198
  %2202 = vrot.lane.b32.xlu0 %v1730, 16
  %v2203 = vpop.permute.xlu0 %2202
  %2204 = vrot.lane.b32.xlu0 %v1731, 16
  %v2205 = vpop.permute.xlu0 %2204
  %v2206 = vsel %vm544, %v2203, %v2205
  %v2207 = vsel %vm544, %v2205, %v2203
  %v2208 = vadd.f32 %v2207, %v551
  %v2209 = vadd.f32 %v2206, %v555
  %2210 = vrot.lane.b32.xlu0 %v1730, 112
  %v2211 = vpop.permute.xlu0 %2210
  %2212 = vrot.lane.b32.xlu0 %v1731, 112
  %v2213 = vpop.permute.xlu0 %2212
  %v2214 = vsel %vm564, %v2211, %v2213
  %v2215 = vsel %vm564, %v2213, %v2211
  %v2216 = vadd.f32 %v2214, %v571
  %v2217 = vadd.f32 %v2215, %v575
  %v2218 = vmax.f32 %v2208, %v2216
  %v2219 = vmax.f32 %v2209, %v2217
  %v2220 = vmax.f32 %v1730, %v2218
  %v2221 = vmax.f32 %v1731, %v2219
  %2222 = vrot.lane.b32.xlu0 %v1730, 32
  %v2223 = vpop.permute.xlu0 %2222
  %2224 = vrot.lane.b32.xlu0 %v1731, 32
  %v2225 = vpop.permute.xlu0 %2224
  %v2226 = vsel %vm588, %v2223, %v2225
  %v2227 = vsel %vm588, %v2225, %v2223
  %v2228 = vadd.f32 %v2227, %v595
  %v2229 = vadd.f32 %v2226, %v599
  %2230 = vrot.lane.b32.xlu0 %v1730, 96
  %v2231 = vpop.permute.xlu0 %2230
  %2232 = vrot.lane.b32.xlu0 %v1731, 96
  %v2233 = vpop.permute.xlu0 %2232
  %v2234 = vsel %vm608, %v2231, %v2233
  %v2235 = vsel %vm608, %v2233, %v2231
  %v2236 = vadd.f32 %v2234, %v615
  %v2237 = vadd.f32 %v2235, %v619
  %v2238 = vmax.f32 %v2228, %v2236
  %v2239 = vmax.f32 %v2229, %v2237
  %v2240 = vmax.f32 %v2220, %v2238
  %v2241 = vmax.f32 %v2221, %v2239
  %2242 = vrot.lane.b32.xlu0 %v2240, 1
  %v2243 = vpop.permute.xlu0 %2242
  %2244 = vrot.lane.b32.xlu0 %v2241, 1
  %v2245 = vpop.permute.xlu0 %2244
  %v2246 = vsel %vm632, %v2243, %v2245
  %v2247 = vsel %vm632, %v2245, %v2243
  %v2248 = vadd.f32 %v2247, %v639
  %v2249 = vadd.f32 %v2246, %v643
  %2250 = vrot.lane.b32.xlu0 %v2240, 127
  %v2251 = vpop.permute.xlu0 %2250
  %2252 = vrot.lane.b32.xlu0 %v2241, 127
  %v2253 = vpop.permute.xlu0 %2252
  %v2254 = vsel %vm652, %v2251, %v2253
  %v2255 = vsel %vm652, %v2253, %v2251
  %v2256 = vadd.f32 %v2254, %v659
  %v2257 = vadd.f32 %v2255, %v663
  %v2258 = vmax.f32 %v2248, %v2256
  %v2259 = vmax.f32 %v2249, %v2257
  %v2260 = vmax.f32 %v2240, %v2258
  %v2261 = vmax.f32 %v2241, %v2259
  %2262 = vrot.lane.b32.xlu0 %v2240, 2
  %v2263 = vpop.permute.xlu0 %2262
  %2264 = vrot.lane.b32.xlu0 %v2241, 2
  %v2265 = vpop.permute.xlu0 %2264
  %v2266 = vsel %vm676, %v2263, %v2265
  %v2267 = vsel %vm676, %v2265, %v2263
  %v2268 = vadd.f32 %v2267, %v683
  %v2269 = vadd.f32 %v2266, %v687
  %2270 = vrot.lane.b32.xlu0 %v2240, 126
  %v2271 = vpop.permute.xlu0 %2270
  %2272 = vrot.lane.b32.xlu0 %v2241, 126
  %v2273 = vpop.permute.xlu0 %2272
  %v2274 = vsel %vm696, %v2271, %v2273
  %v2275 = vsel %vm696, %v2273, %v2271
  %v2276 = vadd.f32 %v2274, %v703
  %v2277 = vadd.f32 %v2275, %v707
  %v2278 = vmax.f32 %v2268, %v2276
  %v2279 = vmax.f32 %v2269, %v2277
  %v2280 = vmax.f32 %v2260, %v2278
  %v2281 = vmax.f32 %v2261, %v2279
  %v2283 = vsel %vm55, %v47, 0
  %v2285 = vand.u32 %v2281, 4294901760
  %2286 = vmatprep.subr.mxu0 %v2285
  %v2287 = vand.u32 %v2280, 4294901760
  %2288 = vmatpush1.msra.mxu0 %v2287
  %2289 = vmatprep.subr.mxu0 0.0
  %2290 = vmatpush1.msra.mxu0 0.0
  %2291 = vmatprep.subr.mxu0 0.0
  %2292 = vmatpush1.msra.mxu0 0.0
  %2293 = vmatprep.subr.mxu0 0.0
  %2294 = vmatpush1.msra.mxu0 0.0
  %2295 = vmatprep.subr.mxu0 0.0
  %2296 = vmatpush1.msra.mxu0 0.0
  %2297 = vmatprep.subr.mxu0 0.0
  %2298 = vmatpush1.msra.mxu0 0.0
  %2299 = vmatprep.subr.mxu0 0.0
  %2300 = vmatpush1.msra.mxu0 0.0
  %2301 = vmatprep.subr.mxu0 0.0
  %2302 = vmatpush1.msra.mxu0 0.0
  %2303 = vmatprep.subr.mxu0 0.0
  %2304 = vmatpush1.msra.mxu0 0.0
  %2305 = vmatprep.subr.mxu0 0.0
  %2306 = vmatpush1.msra.mxu0 0.0
  %2307 = vmatprep.subr.mxu0 0.0
  %2308 = vmatpush1.msra.mxu0 0.0
  %2309 = vmatprep.subr.mxu0 0.0
  %2310 = vmatpush1.msra.mxu0 0.0
  %2311 = vmatprep.subr.mxu0 0.0
  %2312 = vmatpush1.msra.mxu0 0.0
  %2313 = vmatprep.subr.mxu0 0.0
  %2314 = vmatpush1.msra.mxu0 0.0
  %2315 = vmatprep.subr.mxu0 0.0
  %2316 = vmatpush1.msra.mxu0 0.0
  %2317 = vmatprep.subr.mxu0 0.0
  %2318 = vmatpush1.msra.mxu0 0.0
  %2319 = vmatprep.subr.mxu0 0.0
  %2320 = vmatpush1.msra.mxu0 0.0
  %2321 = vmatprep.subr.mxu0 0.0
  %2322 = vmatpush1.msra.mxu0 0.0
  %2323 = vmatprep.subr.mxu0 0.0
  %2324 = vmatpush1.msra.mxu0 0.0
  %2325 = vmatprep.subr.mxu0 0.0
  %2326 = vmatpush1.msra.mxu0 0.0
  %2327 = vmatprep.subr.mxu0 0.0
  %2328 = vmatpush1.msra.mxu0 0.0
  %2329 = vmatprep.subr.mxu0 0.0
  %2330 = vmatpush1.msra.mxu0 0.0
  %2331 = vmatprep.subr.mxu0 0.0
  %2332 = vmatpush1.msra.mxu0 0.0
  %2333 = vmatprep.subr.mxu0 0.0
  %2334 = vmatpush1.msra.mxu0 0.0
  %2335 = vmatprep.subr.mxu0 0.0
  %2336 = vmatpush1.msra.mxu0 0.0
  %2337 = vmatprep.subr.mxu0 0.0
  %2338 = vmatpush1.msra.mxu0 0.0
  %2339 = vmatprep.subr.mxu0 0.0
  %2340 = vmatpush1.msra.mxu0 0.0
  %2341 = vmatprep.subr.mxu0 0.0
  %2342 = vmatpush1.msra.mxu0 0.0
  %2343 = vmatprep.subr.mxu0 0.0
  %2344 = vmatpush1.msra.mxu0 0.0
  %2345 = vmatprep.subr.mxu0 0.0
  %2346 = vmatpush1.msra.mxu0 0.0
  %2347 = vmatprep.subr.mxu0 0.0
  %2348 = vmatpush1.msra.mxu0 0.0
  %2349 = vmatprep.subr.mxu0 0.0
  %2350 = vmatpush1.msra.mxu0 0.0
  %2351 = vmatprep.mubr.f32.mxu0 0.0
  %v2352 = vand.u32 %v2283, 4294901760
  %v2353 = vsub.f32 %v2283, %v2352
  %v2354 = vand.u32 %v2353, 4294901760
  %v2355 = vsub.f32 %v2353, %v2354
  %v2356 = vand.u32 %v2355, 4294901760
  %2357 = vmatmul.mubr.f32.gmra.mrb[0].mxu0 %v2356
  %v2358 = vpop.f32.mrb[0].mxu0
  %v2359 = vadd.f32 0.0, %v2358
  %v2360 = vpop.f32.mrb[0].mxu0
  %v2361 = vadd.f32 0.0, %v2360
  %2362 = vdwg.mxu0
  %v2363 = vand.u32 %v2281, 4294901760
  %v2364 = vsub.f32 %v2281, %v2363
  %v2365 = vand.u32 %v2364, 4294901760
  %v2366 = vsub.f32 %v2364, %v2365
  %v2367 = vand.u32 %v2366, 4294901760
  %2368 = vmatprep.subr.mxu0 %v2367
  %v2369 = vand.u32 %v2280, 4294901760
  %v2370 = vsub.f32 %v2280, %v2369
  %v2371 = vand.u32 %v2370, 4294901760
  %v2372 = vsub.f32 %v2370, %v2371
  %v2373 = vand.u32 %v2372, 4294901760
  %2374 = vmatpush1.msra.mxu0 %v2373
  %2375 = vmatprep.subr.mxu0 0.0
  %2376 = vmatpush1.msra.mxu0 0.0
  %2377 = vmatprep.subr.mxu0 0.0
  %2378 = vmatpush1.msra.mxu0 0.0
  %2379 = vmatprep.subr.mxu0 0.0
  %2380 = vmatpush1.msra.mxu0 0.0
  %2381 = vmatprep.subr.mxu0 0.0
  %2382 = vmatpush1.msra.mxu0 0.0
  %2383 = vmatprep.subr.mxu0 0.0
  %2384 = vmatpush1.msra.mxu0 0.0
  %2385 = vmatprep.subr.mxu0 0.0
  %2386 = vmatpush1.msra.mxu0 0.0
  %2387 = vmatprep.subr.mxu0 0.0
  %2388 = vmatpush1.msra.mxu0 0.0
  %2389 = vmatprep.subr.mxu0 0.0
  %2390 = vmatpush1.msra.mxu0 0.0
  %2391 = vmatprep.subr.mxu0 0.0
  %2392 = vmatpush1.msra.mxu0 0.0
  %2393 = vmatprep.subr.mxu0 0.0
  %2394 = vmatpush1.msra.mxu0 0.0
  %2395 = vmatprep.subr.mxu0 0.0
  %2396 = vmatpush1.msra.mxu0 0.0
  %2397 = vmatprep.subr.mxu0 0.0
  %2398 = vmatpush1.msra.mxu0 0.0
  %2399 = vmatprep.subr.mxu0 0.0
  %2400 = vmatpush1.msra.mxu0 0.0
  %2401 = vmatprep.subr.mxu0 0.0
  %2402 = vmatpush1.msra.mxu0 0.0
  %2403 = vmatprep.subr.mxu0 0.0
  %2404 = vmatpush1.msra.mxu0 0.0
  %2405 = vmatprep.subr.mxu0 0.0
  %2406 = vmatpush1.msra.mxu0 0.0
  %2407 = vmatprep.subr.mxu0 0.0
  %2408 = vmatpush1.msra.mxu0 0.0
  %2409 = vmatprep.subr.mxu0 0.0
  %2410 = vmatpush1.msra.mxu0 0.0
  %2411 = vmatprep.subr.mxu0 0.0
  %2412 = vmatpush1.msra.mxu0 0.0
  %2413 = vmatprep.subr.mxu0 0.0
  %2414 = vmatpush1.msra.mxu0 0.0
  %2415 = vmatprep.subr.mxu0 0.0
  %2416 = vmatpush1.msra.mxu0 0.0
  %2417 = vmatprep.subr.mxu0 0.0
  %2418 = vmatpush1.msra.mxu0 0.0
  %2419 = vmatprep.subr.mxu0 0.0
  %2420 = vmatpush1.msra.mxu0 0.0
  %2421 = vmatprep.subr.mxu0 0.0
  %2422 = vmatpush1.msra.mxu0 0.0
  %2423 = vmatprep.subr.mxu0 0.0
  %2424 = vmatpush1.msra.mxu0 0.0
  %2425 = vmatprep.subr.mxu0 0.0
  %2426 = vmatpush1.msra.mxu0 0.0
  %2427 = vmatprep.subr.mxu0 0.0
  %2428 = vmatpush1.msra.mxu0 0.0
  %2429 = vmatprep.subr.mxu0 0.0
  %2430 = vmatpush1.msra.mxu0 0.0
  %2431 = vmatprep.subr.mxu0 0.0
  %2432 = vmatpush1.msra.mxu0 0.0
  %2433 = vmatprep.subr.mxu0 0.0
  %2434 = vmatpush1.msra.mxu0 0.0
  %2435 = vmatprep.subr.mxu0 0.0
  %2436 = vmatpush1.msra.mxu0 0.0
  %2437 = vmatprep.mubr.f32.mxu0 0.0
  %v2438 = vand.u32 %v2283, 4294901760
  %2439 = vmatmul.mubr.f32.gmra.mrb[0].mxu0 %v2438
  %v2440 = vpop.f32.mrb[0].mxu0
  %v2441 = vadd.f32 %v2359, %v2440
  %v2442 = vpop.f32.mrb[0].mxu0
  %v2443 = vadd.f32 %v2361, %v2442
  %2444 = vdwg.mxu0
  %v2445 = vand.u32 %v2281, 4294901760
  %v2446 = vsub.f32 %v2281, %v2445
  %2447 = vmatprep.subr.mxu0 %v2446
  %v2448 = vand.u32 %v2280, 4294901760
  %v2449 = vsub.f32 %v2280, %v2448
  %2450 = vmatpush1.msra.mxu0 %v2449
  %2451 = vmatprep.subr.mxu0 0.0
  %2452 = vmatpush1.msra.mxu0 0.0
  %2453 = vmatprep.subr.mxu0 0.0
  %2454 = vmatpush1.msra.mxu0 0.0
  %2455 = vmatprep.subr.mxu0 0.0
  %2456 = vmatpush1.msra.mxu0 0.0
  %2457 = vmatprep.subr.mxu0 0.0
  %2458 = vmatpush1.msra.mxu0 0.0
  %2459 = vmatprep.subr.mxu0 0.0
  %2460 = vmatpush1.msra.mxu0 0.0
  %2461 = vmatprep.subr.mxu0 0.0
  %2462 = vmatpush1.msra.mxu0 0.0
  %2463 = vmatprep.subr.mxu0 0.0
  %2464 = vmatpush1.msra.mxu0 0.0
  %2465 = vmatprep.subr.mxu0 0.0
  %2466 = vmatpush1.msra.mxu0 0.0
  %2467 = vmatprep.subr.mxu0 0.0
  %2468 = vmatpush1.msra.mxu0 0.0
  %2469 = vmatprep.subr.mxu0 0.0
  %2470 = vmatpush1.msra.mxu0 0.0
  %2471 = vmatprep.subr.mxu0 0.0
  %2472 = vmatpush1.msra.mxu0 0.0
  %2473 = vmatprep.subr.mxu0 0.0
  %2474 = vmatpush1.msra.mxu0 0.0
  %2475 = vmatprep.subr.mxu0 0.0
  %2476 = vmatpush1.msra.mxu0 0.0
  %2477 = vmatprep.subr.mxu0 0.0
  %2478 = vmatpush1.msra.mxu0 0.0
  %2479 = vmatprep.subr.mxu0 0.0
  %2480 = vmatpush1.msra.mxu0 0.0
  %2481 = vmatprep.subr.mxu0 0.0
  %2482 = vmatpush1.msra.mxu0 0.0
  %2483 = vmatprep.subr.mxu0 0.0
  %2484 = vmatpush1.msra.mxu0 0.0
  %2485 = vmatprep.subr.mxu0 0.0
  %2486 = vmatpush1.msra.mxu0 0.0
  %2487 = vmatprep.subr.mxu0 0.0
  %2488 = vmatpush1.msra.mxu0 0.0
  %2489 = vmatprep.subr.mxu0 0.0
  %2490 = vmatpush1.msra.mxu0 0.0
  %2491 = vmatprep.subr.mxu0 0.0
  %2492 = vmatpush1.msra.mxu0 0.0
  %2493 = vmatprep.subr.mxu0 0.0
  %2494 = vmatpush1.msra.mxu0 0.0
  %2495 = vmatprep.subr.mxu0 0.0
  %2496 = vmatpush1.msra.mxu0 0.0
  %2497 = vmatprep.subr.mxu0 0.0
  %2498 = vmatpush1.msra.mxu0 0.0
  %2499 = vmatprep.subr.mxu0 0.0
  %2500 = vmatpush1.msra.mxu0 0.0
  %2501 = vmatprep.subr.mxu0 0.0
  %2502 = vmatpush1.msra.mxu0 0.0
  %2503 = vmatprep.subr.mxu0 0.0
  %2504 = vmatpush1.msra.mxu0 0.0
  %2505 = vmatprep.subr.mxu0 0.0
  %2506 = vmatpush1.msra.mxu0 0.0
  %2507 = vmatprep.subr.mxu0 0.0
  %2508 = vmatpush1.msra.mxu0 0.0
  %2509 = vmatprep.subr.mxu0 0.0
  %2510 = vmatpush1.msra.mxu0 0.0
  %2511 = vmatprep.subr.mxu0 0.0
  %2512 = vmatpush1.msra.mxu0 0.0
  %2513 = vmatprep.mubr.f32.mxu0 0.0
  %v2514 = vand.u32 %v2283, 4294901760
  %v2515 = vsub.f32 %v2283, %v2514
  %2516 = vmatmul.mubr.f32.gmra.mrb[0].mxu0 %v2515
  %v2517 = vpop.f32.mrb[0].mxu0
  %v2518 = vadd.f32 %v2441, %v2517
  %v2519 = vpop.f32.mrb[0].mxu0
  %v2520 = vadd.f32 %v2443, %v2519
  %2521 = vdwg.mxu0
  %v2522 = vand.u32 %v2281, 4294901760
  %2523 = vmatprep.subr.mxu0 %v2522
  %v2524 = vand.u32 %v2280, 4294901760
  %2525 = vmatpush1.msra.mxu0 %v2524
  %2526 = vmatprep.subr.mxu0 0.0
  %2527 = vmatpush1.msra.mxu0 0.0
  %2528 = vmatprep.subr.mxu0 0.0
  %2529 = vmatpush1.msra.mxu0 0.0
  %2530 = vmatprep.subr.mxu0 0.0
  %2531 = vmatpush1.msra.mxu0 0.0
  %2532 = vmatprep.subr.mxu0 0.0
  %2533 = vmatpush1.msra.mxu0 0.0
  %2534 = vmatprep.subr.mxu0 0.0
  %2535 = vmatpush1.msra.mxu0 0.0
  %2536 = vmatprep.subr.mxu0 0.0
  %2537 = vmatpush1.msra.mxu0 0.0
  %2538 = vmatprep.subr.mxu0 0.0
  %2539 = vmatpush1.msra.mxu0 0.0
  %2540 = vmatprep.subr.mxu0 0.0
  %2541 = vmatpush1.msra.mxu0 0.0
  %2542 = vmatprep.subr.mxu0 0.0
  %2543 = vmatpush1.msra.mxu0 0.0
  %2544 = vmatprep.subr.mxu0 0.0
  %2545 = vmatpush1.msra.mxu0 0.0
  %2546 = vmatprep.subr.mxu0 0.0
  %2547 = vmatpush1.msra.mxu0 0.0
  %2548 = vmatprep.subr.mxu0 0.0
  %2549 = vmatpush1.msra.mxu0 0.0
  %2550 = vmatprep.subr.mxu0 0.0
  %2551 = vmatpush1.msra.mxu0 0.0
  %2552 = vmatprep.subr.mxu0 0.0
  %2553 = vmatpush1.msra.mxu0 0.0
  %2554 = vmatprep.subr.mxu0 0.0
  %2555 = vmatpush1.msra.mxu0 0.0
  %2556 = vmatprep.subr.mxu0 0.0
  %2557 = vmatpush1.msra.mxu0 0.0
  %2558 = vmatprep.subr.mxu0 0.0
  %2559 = vmatpush1.msra.mxu0 0.0
  %2560 = vmatprep.subr.mxu0 0.0
  %2561 = vmatpush1.msra.mxu0 0.0
  %2562 = vmatprep.subr.mxu0 0.0
  %2563 = vmatpush1.msra.mxu0 0.0
  %2564 = vmatprep.subr.mxu0 0.0
  %2565 = vmatpush1.msra.mxu0 0.0
  %2566 = vmatprep.subr.mxu0 0.0
  %2567 = vmatpush1.msra.mxu0 0.0
  %2568 = vmatprep.subr.mxu0 0.0
  %2569 = vmatpush1.msra.mxu0 0.0
  %2570 = vmatprep.subr.mxu0 0.0
  %2571 = vmatpush1.msra.mxu0 0.0
  %2572 = vmatprep.subr.mxu0 0.0
  %2573 = vmatpush1.msra.mxu0 0.0
  %2574 = vmatprep.subr.mxu0 0.0
  %2575 = vmatpush1.msra.mxu0 0.0
  %2576 = vmatprep.subr.mxu0 0.0
  %2577 = vmatpush1.msra.mxu0 0.0
  %2578 = vmatprep.subr.mxu0 0.0
  %2579 = vmatpush1.msra.mxu0 0.0
  %2580 = vmatprep.subr.mxu0 0.0
  %2581 = vmatpush1.msra.mxu0 0.0
  %2582 = vmatprep.subr.mxu0 0.0
  %2583 = vmatpush1.msra.mxu0 0.0
  %2584 = vmatprep.subr.mxu0 0.0
  %2585 = vmatpush1.msra.mxu0 0.0
  %2586 = vmatprep.subr.mxu0 0.0
  %2587 = vmatpush1.msra.mxu0 0.0
  %2588 = vmatprep.mubr.f32.mxu0 0.0
  %v2589 = vand.u32 %v2283, 4294901760
  %v2590 = vsub.f32 %v2283, %v2589
  %v2591 = vand.u32 %v2590, 4294901760
  %2592 = vmatmul.mubr.f32.gmra.mrb[0].mxu0 %v2591
  %v2593 = vpop.f32.mrb[0].mxu0
  %v2594 = vadd.f32 %v2518, %v2593
  %v2595 = vpop.f32.mrb[0].mxu0
  %v2596 = vadd.f32 %v2520, %v2595
  %2597 = vdwg.mxu0
  %v2598 = vand.u32 %v2281, 4294901760
  %v2599 = vsub.f32 %v2281, %v2598
  %v2600 = vand.u32 %v2599, 4294901760
  %2601 = vmatprep.subr.mxu0 %v2600
  %v2602 = vand.u32 %v2280, 4294901760
  %v2603 = vsub.f32 %v2280, %v2602
  %v2604 = vand.u32 %v2603, 4294901760
  %2605 = vmatpush1.msra.mxu0 %v2604
  %2606 = vmatprep.subr.mxu0 0.0
  %2607 = vmatpush1.msra.mxu0 0.0
  %2608 = vmatprep.subr.mxu0 0.0
  %2609 = vmatpush1.msra.mxu0 0.0
  %2610 = vmatprep.subr.mxu0 0.0
  %2611 = vmatpush1.msra.mxu0 0.0
  %2612 = vmatprep.subr.mxu0 0.0
  %2613 = vmatpush1.msra.mxu0 0.0
  %2614 = vmatprep.subr.mxu0 0.0
  %2615 = vmatpush1.msra.mxu0 0.0
  %2616 = vmatprep.subr.mxu0 0.0
  %2617 = vmatpush1.msra.mxu0 0.0
  %2618 = vmatprep.subr.mxu0 0.0
  %2619 = vmatpush1.msra.mxu0 0.0
  %2620 = vmatprep.subr.mxu0 0.0
  %2621 = vmatpush1.msra.mxu0 0.0
  %2622 = vmatprep.subr.mxu0 0.0
  %2623 = vmatpush1.msra.mxu0 0.0
  %2624 = vmatprep.subr.mxu0 0.0
  %2625 = vmatpush1.msra.mxu0 0.0
  %2626 = vmatprep.subr.mxu0 0.0
  %2627 = vmatpush1.msra.mxu0 0.0
  %2628 = vmatprep.subr.mxu0 0.0
  %2629 = vmatpush1.msra.mxu0 0.0
  %2630 = vmatprep.subr.mxu0 0.0
  %2631 = vmatpush1.msra.mxu0 0.0
  %2632 = vmatprep.subr.mxu0 0.0
  %2633 = vmatpush1.msra.mxu0 0.0
  %2634 = vmatprep.subr.mxu0 0.0
  %2635 = vmatpush1.msra.mxu0 0.0
  %2636 = vmatprep.subr.mxu0 0.0
  %2637 = vmatpush1.msra.mxu0 0.0
  %2638 = vmatprep.subr.mxu0 0.0
  %2639 = vmatpush1.msra.mxu0 0.0
  %2640 = vmatprep.subr.mxu0 0.0
  %2641 = vmatpush1.msra.mxu0 0.0
  %2642 = vmatprep.subr.mxu0 0.0
  %2643 = vmatpush1.msra.mxu0 0.0
  %2644 = vmatprep.subr.mxu0 0.0
  %2645 = vmatpush1.msra.mxu0 0.0
  %2646 = vmatprep.subr.mxu0 0.0
  %2647 = vmatpush1.msra.mxu0 0.0
  %2648 = vmatprep.subr.mxu0 0.0
  %2649 = vmatpush1.msra.mxu0 0.0
  %2650 = vmatprep.subr.mxu0 0.0
  %2651 = vmatpush1.msra.mxu0 0.0
  %2652 = vmatprep.subr.mxu0 0.0
  %2653 = vmatpush1.msra.mxu0 0.0
  %2654 = vmatprep.subr.mxu0 0.0
  %2655 = vmatpush1.msra.mxu0 0.0
  %2656 = vmatprep.subr.mxu0 0.0
  %2657 = vmatpush1.msra.mxu0 0.0
  %2658 = vmatprep.subr.mxu0 0.0
  %2659 = vmatpush1.msra.mxu0 0.0
  %2660 = vmatprep.subr.mxu0 0.0
  %2661 = vmatpush1.msra.mxu0 0.0
  %2662 = vmatprep.subr.mxu0 0.0
  %2663 = vmatpush1.msra.mxu0 0.0
  %2664 = vmatprep.subr.mxu0 0.0
  %2665 = vmatpush1.msra.mxu0 0.0
  %2666 = vmatprep.subr.mxu0 0.0
  %2667 = vmatpush1.msra.mxu0 0.0
  %2668 = vmatprep.mubr.f32.mxu0 0.0
  %v2669 = vand.u32 %v2283, 4294901760
  %2670 = vmatmul.mubr.f32.gmra.mrb[0].mxu0 %v2669
  %v2671 = vpop.f32.mrb[0].mxu0
  %v2672 = vadd.f32 %v2594, %v2671
  %v2673 = vpop.f32.mrb[0].mxu0
  %v2674 = vadd.f32 %v2596, %v2673
  %2675 = vdwg.mxu0
  %v2676 = vand.u32 %v2281, 4294901760
  %2677 = vmatprep.subr.mxu0 %v2676
  %v2678 = vand.u32 %v2280, 4294901760
  %2679 = vmatpush1.msra.mxu0 %v2678
  %2680 = vmatprep.subr.mxu0 0.0
  %2681 = vmatpush1.msra.mxu0 0.0
  %2682 = vmatprep.subr.mxu0 0.0
  %2683 = vmatpush1.msra.mxu0 0.0
  %2684 = vmatprep.subr.mxu0 0.0
  %2685 = vmatpush1.msra.mxu0 0.0
  %2686 = vmatprep.subr.mxu0 0.0
  %2687 = vmatpush1.msra.mxu0 0.0
  %2688 = vmatprep.subr.mxu0 0.0
  %2689 = vmatpush1.msra.mxu0 0.0
  %2690 = vmatprep.subr.mxu0 0.0
  %2691 = vmatpush1.msra.mxu0 0.0
  %2692 = vmatprep.subr.mxu0 0.0
  %2693 = vmatpush1.msra.mxu0 0.0
  %2694 = vmatprep.subr.mxu0 0.0
  %2695 = vmatpush1.msra.mxu0 0.0
  %2696 = vmatprep.subr.mxu0 0.0
  %2697 = vmatpush1.msra.mxu0 0.0
  %2698 = vmatprep.subr.mxu0 0.0
  %2699 = vmatpush1.msra.mxu0 0.0
  %2700 = vmatprep.subr.mxu0 0.0
  %2701 = vmatpush1.msra.mxu0 0.0
  %2702 = vmatprep.subr.mxu0 0.0
  %2703 = vmatpush1.msra.mxu0 0.0
  %2704 = vmatprep.subr.mxu0 0.0
  %2705 = vmatpush1.msra.mxu0 0.0
  %2706 = vmatprep.subr.mxu0 0.0
  %2707 = vmatpush1.msra.mxu0 0.0
  %2708 = vmatprep.subr.mxu0 0.0
  %2709 = vmatpush1.msra.mxu0 0.0
  %2710 = vmatprep.subr.mxu0 0.0
  %2711 = vmatpush1.msra.mxu0 0.0
  %2712 = vmatprep.subr.mxu0 0.0
  %2713 = vmatpush1.msra.mxu0 0.0
  %2714 = vmatprep.subr.mxu0 0.0
  %2715 = vmatpush1.msra.mxu0 0.0
  %2716 = vmatprep.subr.mxu0 0.0
  %2717 = vmatpush1.msra.mxu0 0.0
  %2718 = vmatprep.subr.mxu0 0.0
  %2719 = vmatpush1.msra.mxu0 0.0
  %2720 = vmatprep.subr.mxu0 0.0
  %2721 = vmatpush1.msra.mxu0 0.0
  %2722 = vmatprep.subr.mxu0 0.0
  %2723 = vmatpush1.msra.mxu0 0.0
  %2724 = vmatprep.subr.mxu0 0.0
  %2725 = vmatpush1.msra.mxu0 0.0
  %2726 = vmatprep.subr.mxu0 0.0
  %2727 = vmatpush1.msra.mxu0 0.0
  %2728 = vmatprep.subr.mxu0 0.0
  %2729 = vmatpush1.msra.mxu0 0.0
  %2730 = vmatprep.subr.mxu0 0.0
  %2731 = vmatpush1.msra.mxu0 0.0
  %2732 = vmatprep.subr.mxu0 0.0
  %2733 = vmatpush1.msra.mxu0 0.0
  %2734 = vmatprep.subr.mxu0 0.0
  %2735 = vmatpush1.msra.mxu0 0.0
  %2736 = vmatprep.subr.mxu0 0.0
  %2737 = vmatpush1.msra.mxu0 0.0
  %2738 = vmatprep.subr.mxu0 0.0
  %2739 = vmatpush1.msra.mxu0 0.0
  %2740 = vmatprep.subr.mxu0 0.0
  %2741 = vmatpush1.msra.mxu0 0.0
  %2742 = vmatprep.mubr.f32.mxu0 0.0
  %v2743 = vand.u32 %v2283, 4294901760
  %2744 = vmatmul.mubr.f32.gmra.mrb[0].mxu0 %v2743
  %v2745 = vpop.f32.mrb[0].mxu0
  %v2746 = vadd.f32 %v2672, %v2745
  %v2747 = vpop.f32.mrb[0].mxu0
  %v2748 = vadd.f32 %v2674, %v2747
  %2749 = vdwg.mxu0
  %v2750 = vadd.f32 %v2200, %v2746
  %v2751 = vadd.f32 %v2201, %v2748
  %2753 = vset.pattern.permute.xlu0 0
  %2754 = vperm.xlu0 %2753, %v40
  %v2755 = vpop.permute.xlu0 %2754
  %v2757 = vadd.f32 %v2750, %v2755
  %v2758 = vadd.f32 %v2751, %v2755
  %v2759 = vxor.u32 %v2757, 2147483648
  %v2760 = vxor.u32 %v2758, 2147483648
  %v2761 = vmul.f32 %v2759, 1.442695
  %v2762 = vpow.pop %v2761
  %v2763 = vmul.f32 %v2760, 1.442695
  %v2764 = vpow.pop %v2763
  %v2765 = vadd.f32 %v2762, 1.0
  %v2766 = vadd.f32 %v2764, 1.0
  %v2767 = vrcp.pop %v2765
  %v2768 = vmul.f32 1.0, %v2767
  %v2769 = vrcp.pop %v2766
  %v2770 = vmul.f32 1.0, %v2769
  %v2771 = vmul.f32 %v2757, %v2768
  %v2772 = vmul.f32 %v2758, %v2770
  %2773 = vst [vmem:[%s6] sm:$0xff] %v2771
  %2774 = vst [vmem:[%s6 + $0x8] sm:$0xff] %v2772
  %s2775 = scalar_lea.vmem %s0, 16
  %v2776 = vld [vmem:[%s2775] sm:$0xff]
  %v2777 = vld [vmem:[%s2775 + $0x8] sm:$0xff]
  %v2778 = vand.u32 %v2777, 4294901760
  %2779 = vmatprep.subr.mxu0 %v2778
  %v2780 = vand.u32 %v2776, 4294901760
  %2781 = vmatpush1.msra.mxu0 %v2780
  %2782 = vmatprep.subr.mxu0 0.0
  %2783 = vmatpush1.msra.mxu0 0.0
  %2784 = vmatprep.subr.mxu0 0.0
  %2785 = vmatpush1.msra.mxu0 0.0
  %2786 = vmatprep.subr.mxu0 0.0
  %2787 = vmatpush1.msra.mxu0 0.0
  %2788 = vmatprep.subr.mxu0 0.0
  %2789 = vmatpush1.msra.mxu0 0.0
  %2790 = vmatprep.subr.mxu0 0.0
  %2791 = vmatpush1.msra.mxu0 0.0
  %2792 = vmatprep.subr.mxu0 0.0
  %2793 = vmatpush1.msra.mxu0 0.0
  %2794 = vmatprep.subr.mxu0 0.0
  %2795 = vmatpush1.msra.mxu0 0.0
  %2796 = vmatprep.subr.mxu0 0.0
  %2797 = vmatpush1.msra.mxu0 0.0
  %2798 = vmatprep.subr.mxu0 0.0
  %2799 = vmatpush1.msra.mxu0 0.0
  %2800 = vmatprep.subr.mxu0 0.0
  %2801 = vmatpush1.msra.mxu0 0.0
  %2802 = vmatprep.subr.mxu0 0.0
  %2803 = vmatpush1.msra.mxu0 0.0
  %2804 = vmatprep.subr.mxu0 0.0
  %2805 = vmatpush1.msra.mxu0 0.0
  %2806 = vmatprep.subr.mxu0 0.0
  %2807 = vmatpush1.msra.mxu0 0.0
  %2808 = vmatprep.subr.mxu0 0.0
  %2809 = vmatpush1.msra.mxu0 0.0
  %2810 = vmatprep.subr.mxu0 0.0
  %2811 = vmatpush1.msra.mxu0 0.0
  %2812 = vmatprep.subr.mxu0 0.0
  %2813 = vmatpush1.msra.mxu0 0.0
  %2814 = vmatprep.subr.mxu0 0.0
  %2815 = vmatpush1.msra.mxu0 0.0
  %2816 = vmatprep.subr.mxu0 0.0
  %2817 = vmatpush1.msra.mxu0 0.0
  %2818 = vmatprep.subr.mxu0 0.0
  %2819 = vmatpush1.msra.mxu0 0.0
  %2820 = vmatprep.subr.mxu0 0.0
  %2821 = vmatpush1.msra.mxu0 0.0
  %2822 = vmatprep.subr.mxu0 0.0
  %2823 = vmatpush1.msra.mxu0 0.0
  %2824 = vmatprep.subr.mxu0 0.0
  %2825 = vmatpush1.msra.mxu0 0.0
  %2826 = vmatprep.subr.mxu0 0.0
  %2827 = vmatpush1.msra.mxu0 0.0
  %2828 = vmatprep.subr.mxu0 0.0
  %2829 = vmatpush1.msra.mxu0 0.0
  %2830 = vmatprep.subr.mxu0 0.0
  %2831 = vmatpush1.msra.mxu0 0.0
  %2832 = vmatprep.subr.mxu0 0.0
  %2833 = vmatpush1.msra.mxu0 0.0
  %2834 = vmatprep.subr.mxu0 0.0
  %2835 = vmatpush1.msra.mxu0 0.0
  %2836 = vmatprep.subr.mxu0 0.0
  %2837 = vmatpush1.msra.mxu0 0.0
  %2838 = vmatprep.subr.mxu0 0.0
  %2839 = vmatpush1.msra.mxu0 0.0
  %2840 = vmatprep.subr.mxu0 0.0
  %2841 = vmatpush1.msra.mxu0 0.0
  %2842 = vmatprep.subr.mxu0 0.0
  %2843 = vmatpush1.msra.mxu0 0.0
  %2844 = vmatprep.mubr.f32.mxu0 0.0
  %v2845 = vand.u32 %v57, 4294901760
  %v2846 = vsub.f32 %v57, %v2845
  %v2847 = vand.u32 %v2846, 4294901760
  %v2848 = vsub.f32 %v2846, %v2847
  %v2849 = vand.u32 %v2848, 4294901760
  %2850 = vmatmul.mubr.f32.gmra.mrb[0].mxu0 %v2849
  %v2851 = vpop.f32.mrb[0].mxu0
  %v2852 = vadd.f32 %v53, %v2851
  %v2853 = vpop.f32.mrb[0].mxu0
  %v2854 = vadd.f32 %v53, %v2853
  %2855 = vdwg.mxu0
  %v2856 = vand.u32 %v2777, 4294901760
  %v2857 = vsub.f32 %v2777, %v2856
  %v2858 = vand.u32 %v2857, 4294901760
  %v2859 = vsub.f32 %v2857, %v2858
  %v2860 = vand.u32 %v2859, 4294901760
  %2861 = vmatprep.subr.mxu0 %v2860
  %v2862 = vand.u32 %v2776, 4294901760
  %v2863 = vsub.f32 %v2776, %v2862
  %v2864 = vand.u32 %v2863, 4294901760
  %v2865 = vsub.f32 %v2863, %v2864
  %v2866 = vand.u32 %v2865, 4294901760
  %2867 = vmatpush1.msra.mxu0 %v2866
  %2868 = vmatprep.subr.mxu0 0.0
  %2869 = vmatpush1.msra.mxu0 0.0
  %2870 = vmatprep.subr.mxu0 0.0
  %2871 = vmatpush1.msra.mxu0 0.0
  %2872 = vmatprep.subr.mxu0 0.0
  %2873 = vmatpush1.msra.mxu0 0.0
  %2874 = vmatprep.subr.mxu0 0.0
  %2875 = vmatpush1.msra.mxu0 0.0
  %2876 = vmatprep.subr.mxu0 0.0
  %2877 = vmatpush1.msra.mxu0 0.0
  %2878 = vmatprep.subr.mxu0 0.0
  %2879 = vmatpush1.msra.mxu0 0.0
  %2880 = vmatprep.subr.mxu0 0.0
  %2881 = vmatpush1.msra.mxu0 0.0
  %2882 = vmatprep.subr.mxu0 0.0
  %2883 = vmatpush1.msra.mxu0 0.0
  %2884 = vmatprep.subr.mxu0 0.0
  %2885 = vmatpush1.msra.mxu0 0.0
  %2886 = vmatprep.subr.mxu0 0.0
  %2887 = vmatpush1.msra.mxu0 0.0
  %2888 = vmatprep.subr.mxu0 0.0
  %2889 = vmatpush1.msra.mxu0 0.0
  %2890 = vmatprep.subr.mxu0 0.0
  %2891 = vmatpush1.msra.mxu0 0.0
  %2892 = vmatprep.subr.mxu0 0.0
  %2893 = vmatpush1.msra.mxu0 0.0
  %2894 = vmatprep.subr.mxu0 0.0
  %2895 = vmatpush1.msra.mxu0 0.0
  %2896 = vmatprep.subr.mxu0 0.0
  %2897 = vmatpush1.msra.mxu0 0.0
  %2898 = vmatprep.subr.mxu0 0.0
  %2899 = vmatpush1.msra.mxu0 0.0
  %2900 = vmatprep.subr.mxu0 0.0
  %2901 = vmatpush1.msra.mxu0 0.0
  %2902 = vmatprep.subr.mxu0 0.0
  %2903 = vmatpush1.msra.mxu0 0.0
  %2904 = vmatprep.subr.mxu0 0.0
  %2905 = vmatpush1.msra.mxu0 0.0
  %2906 = vmatprep.subr.mxu0 0.0
  %2907 = vmatpush1.msra.mxu0 0.0
  %2908 = vmatprep.subr.mxu0 0.0
  %2909 = vmatpush1.msra.mxu0 0.0
  %2910 = vmatprep.subr.mxu0 0.0
  %2911 = vmatpush1.msra.mxu0 0.0
  %2912 = vmatprep.subr.mxu0 0.0
  %2913 = vmatpush1.msra.mxu0 0.0
  %2914 = vmatprep.subr.mxu0 0.0
  %2915 = vmatpush1.msra.mxu0 0.0
  %2916 = vmatprep.subr.mxu0 0.0
  %2917 = vmatpush1.msra.mxu0 0.0
  %2918 = vmatprep.subr.mxu0 0.0
  %2919 = vmatpush1.msra.mxu0 0.0
  %2920 = vmatprep.subr.mxu0 0.0
  %2921 = vmatpush1.msra.mxu0 0.0
  %2922 = vmatprep.subr.mxu0 0.0
  %2923 = vmatpush1.msra.mxu0 0.0
  %2924 = vmatprep.subr.mxu0 0.0
  %2925 = vmatpush1.msra.mxu0 0.0
  %2926 = vmatprep.subr.mxu0 0.0
  %2927 = vmatpush1.msra.mxu0 0.0
  %2928 = vmatprep.subr.mxu0 0.0
  %2929 = vmatpush1.msra.mxu0 0.0
  %2930 = vmatprep.mubr.f32.mxu0 0.0
  %v2931 = vand.u32 %v57, 4294901760
  %2932 = vmatmul.mubr.f32.gmra.mrb[0].mxu0 %v2931
  %v2933 = vpop.f32.mrb[0].mxu0
  %v2934 = vadd.f32 %v2852, %v2933
  %v2935 = vpop.f32.mrb[0].mxu0
  %v2936 = vadd.f32 %v2854, %v2935
  %2937 = vdwg.mxu0
  %v2938 = vand.u32 %v2777, 4294901760
  %v2939 = vsub.f32 %v2777, %v2938
  %2940 = vmatprep.subr.mxu0 %v2939
  %v2941 = vand.u32 %v2776, 4294901760
  %v2942 = vsub.f32 %v2776, %v2941
  %2943 = vmatpush1.msra.mxu0 %v2942
  %2944 = vmatprep.subr.mxu0 0.0
  %2945 = vmatpush1.msra.mxu0 0.0
  %2946 = vmatprep.subr.mxu0 0.0
  %2947 = vmatpush1.msra.mxu0 0.0
  %2948 = vmatprep.subr.mxu0 0.0
  %2949 = vmatpush1.msra.mxu0 0.0
  %2950 = vmatprep.subr.mxu0 0.0
  %2951 = vmatpush1.msra.mxu0 0.0
  %2952 = vmatprep.subr.mxu0 0.0
  %2953 = vmatpush1.msra.mxu0 0.0
  %2954 = vmatprep.subr.mxu0 0.0
  %2955 = vmatpush1.msra.mxu0 0.0
  %2956 = vmatprep.subr.mxu0 0.0
  %2957 = vmatpush1.msra.mxu0 0.0
  %2958 = vmatprep.subr.mxu0 0.0
  %2959 = vmatpush1.msra.mxu0 0.0
  %2960 = vmatprep.subr.mxu0 0.0
  %2961 = vmatpush1.msra.mxu0 0.0
  %2962 = vmatprep.subr.mxu0 0.0
  %2963 = vmatpush1.msra.mxu0 0.0
  %2964 = vmatprep.subr.mxu0 0.0
  %2965 = vmatpush1.msra.mxu0 0.0
  %2966 = vmatprep.subr.mxu0 0.0
  %2967 = vmatpush1.msra.mxu0 0.0
  %2968 = vmatprep.subr.mxu0 0.0
  %2969 = vmatpush1.msra.mxu0 0.0
  %2970 = vmatprep.subr.mxu0 0.0
  %2971 = vmatpush1.msra.mxu0 0.0
  %2972 = vmatprep.subr.mxu0 0.0
  %2973 = vmatpush1.msra.mxu0 0.0
  %2974 = vmatprep.subr.mxu0 0.0
  %2975 = vmatpush1.msra.mxu0 0.0
  %2976 = vmatprep.subr.mxu0 0.0
  %2977 = vmatpush1.msra.mxu0 0.0
  %2978 = vmatprep.subr.mxu0 0.0
  %2979 = vmatpush1.msra.mxu0 0.0
  %2980 = vmatprep.subr.mxu0 0.0
  %2981 = vmatpush1.msra.mxu0 0.0
  %2982 = vmatprep.subr.mxu0 0.0
  %2983 = vmatpush1.msra.mxu0 0.0
  %2984 = vmatprep.subr.mxu0 0.0
  %2985 = vmatpush1.msra.mxu0 0.0
  %2986 = vmatprep.subr.mxu0 0.0
  %2987 = vmatpush1.msra.mxu0 0.0
  %2988 = vmatprep.subr.mxu0 0.0
  %2989 = vmatpush1.msra.mxu0 0.0
  %2990 = vmatprep.subr.mxu0 0.0
  %2991 = vmatpush1.msra.mxu0 0.0
  %2992 = vmatprep.subr.mxu0 0.0
  %2993 = vmatpush1.msra.mxu0 0.0
  %2994 = vmatprep.subr.mxu0 0.0
  %2995 = vmatpush1.msra.mxu0 0.0
  %2996 = vmatprep.subr.mxu0 0.0
  %2997 = vmatpush1.msra.mxu0 0.0
  %2998 = vmatprep.subr.mxu0 0.0
  %2999 = vmatpush1.msra.mxu0 0.0
  %3000 = vmatprep.subr.mxu0 0.0
  %3001 = vmatpush1.msra.mxu0 0.0
  %3002 = vmatprep.subr.mxu0 0.0
  %3003 = vmatpush1.msra.mxu0 0.0
  %3004 = vmatprep.subr.mxu0 0.0
  %3005 = vmatpush1.msra.mxu0 0.0
  %3006 = vmatprep.mubr.f32.mxu0 0.0
  %v3007 = vand.u32 %v57, 4294901760
  %v3008 = vsub.f32 %v57, %v3007
  %3009 = vmatmul.mubr.f32.gmra.mrb[0].mxu0 %v3008
  %v3010 = vpop.f32.mrb[0].mxu0
  %v3011 = vadd.f32 %v2934, %v3010
  %v3012 = vpop.f32.mrb[0].mxu0
  %v3013 = vadd.f32 %v2936, %v3012
  %3014 = vdwg.mxu0
  %v3015 = vand.u32 %v2777, 4294901760
  %3016 = vmatprep.subr.mxu0 %v3015
  %v3017 = vand.u32 %v2776, 4294901760
  %3018 = vmatpush1.msra.mxu0 %v3017
  %3019 = vmatprep.subr.mxu0 0.0
  %3020 = vmatpush1.msra.mxu0 0.0
  %3021 = vmatprep.subr.mxu0 0.0
  %3022 = vmatpush1.msra.mxu0 0.0
  %3023 = vmatprep.subr.mxu0 0.0
  %3024 = vmatpush1.msra.mxu0 0.0
  %3025 = vmatprep.subr.mxu0 0.0
  %3026 = vmatpush1.msra.mxu0 0.0
  %3027 = vmatprep.subr.mxu0 0.0
  %3028 = vmatpush1.msra.mxu0 0.0
  %3029 = vmatprep.subr.mxu0 0.0
  %3030 = vmatpush1.msra.mxu0 0.0
  %3031 = vmatprep.subr.mxu0 0.0
  %3032 = vmatpush1.msra.mxu0 0.0
  %3033 = vmatprep.subr.mxu0 0.0
  %3034 = vmatpush1.msra.mxu0 0.0
  %3035 = vmatprep.subr.mxu0 0.0
  %3036 = vmatpush1.msra.mxu0 0.0
  %3037 = vmatprep.subr.mxu0 0.0
  %3038 = vmatpush1.msra.mxu0 0.0
  %3039 = vmatprep.subr.mxu0 0.0
  %3040 = vmatpush1.msra.mxu0 0.0
  %3041 = vmatprep.subr.mxu0 0.0
  %3042 = vmatpush1.msra.mxu0 0.0
  %3043 = vmatprep.subr.mxu0 0.0
  %3044 = vmatpush1.msra.mxu0 0.0
  %3045 = vmatprep.subr.mxu0 0.0
  %3046 = vmatpush1.msra.mxu0 0.0
  %3047 = vmatprep.subr.mxu0 0.0
  %3048 = vmatpush1.msra.mxu0 0.0
  %3049 = vmatprep.subr.mxu0 0.0
  %3050 = vmatpush1.msra.mxu0 0.0
  %3051 = vmatprep.subr.mxu0 0.0
  %3052 = vmatpush1.msra.mxu0 0.0
  %3053 = vmatprep.subr.mxu0 0.0
  %3054 = vmatpush1.msra.mxu0 0.0
  %3055 = vmatprep.subr.mxu0 0.0
  %3056 = vmatpush1.msra.mxu0 0.0
  %3057 = vmatprep.subr.mxu0 0.0
  %3058 = vmatpush1.msra.mxu0 0.0
  %3059 = vmatprep.subr.mxu0 0.0
  %3060 = vmatpush1.msra.mxu0 0.0
  %3061 = vmatprep.subr.mxu0 0.0
  %3062 = vmatpush1.msra.mxu0 0.0
  %3063 = vmatprep.subr.mxu0 0.0
  %3064 = vmatpush1.msra.mxu0 0.0
  %3065 = vmatprep.subr.mxu0 0.0
  %3066 = vmatpush1.msra.mxu0 0.0
  %3067 = vmatprep.subr.mxu0 0.0
  %3068 = vmatpush1.msra.mxu0 0.0
  %3069 = vmatprep.subr.mxu0 0.0
  %3070 = vmatpush1.msra.mxu0 0.0
  %3071 = vmatprep.subr.mxu0 0.0
  %3072 = vmatpush1.msra.mxu0 0.0
  %3073 = vmatprep.subr.mxu0 0.0
  %3074 = vmatpush1.msra.mxu0 0.0
  %3075 = vmatprep.subr.mxu0 0.0
  %3076 = vmatpush1.msra.mxu0 0.0
  %3077 = vmatprep.subr.mxu0 0.0
  %3078 = vmatpush1.msra.mxu0 0.0
  %3079 = vmatprep.subr.mxu0 0.0
  %3080 = vmatpush1.msra.mxu0 0.0
  %3081 = vmatprep.mubr.f32.mxu0 0.0
  %v3082 = vand.u32 %v57, 4294901760
  %v3083 = vsub.f32 %v57, %v3082
  %v3084 = vand.u32 %v3083, 4294901760
  %3085 = vmatmul.mubr.f32.gmra.mrb[0].mxu0 %v3084
  %v3086 = vpop.f32.mrb[0].mxu0
  %v3087 = vadd.f32 %v3011, %v3086
  %v3088 = vpop.f32.mrb[0].mxu0
  %v3089 = vadd.f32 %v3013, %v3088
  %3090 = vdwg.mxu0
  %v3091 = vand.u32 %v2777, 4294901760
  %v3092 = vsub.f32 %v2777, %v3091
  %v3093 = vand.u32 %v3092, 4294901760
  %3094 = vmatprep.subr.mxu0 %v3093
  %v3095 = vand.u32 %v2776, 4294901760
  %v3096 = vsub.f32 %v2776, %v3095
  %v3097 = vand.u32 %v3096, 4294901760
  %3098 = vmatpush1.msra.mxu0 %v3097
  %3099 = vmatprep.subr.mxu0 0.0
  %3100 = vmatpush1.msra.mxu0 0.0
  %3101 = vmatprep.subr.mxu0 0.0
  %3102 = vmatpush1.msra.mxu0 0.0
  %3103 = vmatprep.subr.mxu0 0.0
  %3104 = vmatpush1.msra.mxu0 0.0
  %3105 = vmatprep.subr.mxu0 0.0
  %3106 = vmatpush1.msra.mxu0 0.0
  %3107 = vmatprep.subr.mxu0 0.0
  %3108 = vmatpush1.msra.mxu0 0.0
  %3109 = vmatprep.subr.mxu0 0.0
  %3110 = vmatpush1.msra.mxu0 0.0
  %3111 = vmatprep.subr.mxu0 0.0
  %3112 = vmatpush1.msra.mxu0 0.0
  %3113 = vmatprep.subr.mxu0 0.0
  %3114 = vmatpush1.msra.mxu0 0.0
  %3115 = vmatprep.subr.mxu0 0.0
  %3116 = vmatpush1.msra.mxu0 0.0
  %3117 = vmatprep.subr.mxu0 0.0
  %3118 = vmatpush1.msra.mxu0 0.0
  %3119 = vmatprep.subr.mxu0 0.0
  %3120 = vmatpush1.msra.mxu0 0.0
  %3121 = vmatprep.subr.mxu0 0.0
  %3122 = vmatpush1.msra.mxu0 0.0
  %3123 = vmatprep.subr.mxu0 0.0
  %3124 = vmatpush1.msra.mxu0 0.0
  %3125 = vmatprep.subr.mxu0 0.0
  %3126 = vmatpush1.msra.mxu0 0.0
  %3127 = vmatprep.subr.mxu0 0.0
  %3128 = vmatpush1.msra.mxu0 0.0
  %3129 = vmatprep.subr.mxu0 0.0
  %3130 = vmatpush1.msra.mxu0 0.0
  %3131 = vmatprep.subr.mxu0 0.0
  %3132 = vmatpush1.msra.mxu0 0.0
  %3133 = vmatprep.subr.mxu0 0.0
  %3134 = vmatpush1.msra.mxu0 0.0
  %3135 = vmatprep.subr.mxu0 0.0
  %3136 = vmatpush1.msra.mxu0 0.0
  %3137 = vmatprep.subr.mxu0 0.0
  %3138 = vmatpush1.msra.mxu0 0.0
  %3139 = vmatprep.subr.mxu0 0.0
  %3140 = vmatpush1.msra.mxu0 0.0
  %3141 = vmatprep.subr.mxu0 0.0
  %3142 = vmatpush1.msra.mxu0 0.0
  %3143 = vmatprep.subr.mxu0 0.0
  %3144 = vmatpush1.msra.mxu0 0.0
  %3145 = vmatprep.subr.mxu0 0.0
  %3146 = vmatpush1.msra.mxu0 0.0
  %3147 = vmatprep.subr.mxu0 0.0
  %3148 = vmatpush1.msra.mxu0 0.0
  %3149 = vmatprep.subr.mxu0 0.0
  %3150 = vmatpush1.msra.mxu0 0.0
  %3151 = vmatprep.subr.mxu0 0.0
  %3152 = vmatpush1.msra.mxu0 0.0
  %3153 = vmatprep.subr.mxu0 0.0
  %3154 = vmatpush1.msra.mxu0 0.0
  %3155 = vmatprep.subr.mxu0 0.0
  %3156 = vmatpush1.msra.mxu0 0.0
  %3157 = vmatprep.subr.mxu0 0.0
  %3158 = vmatpush1.msra.mxu0 0.0
  %3159 = vmatprep.subr.mxu0 0.0
  %3160 = vmatpush1.msra.mxu0 0.0
  %3161 = vmatprep.mubr.f32.mxu0 0.0
  %v3162 = vand.u32 %v57, 4294901760
  %3163 = vmatmul.mubr.f32.gmra.mrb[0].mxu0 %v3162
  %v3164 = vpop.f32.mrb[0].mxu0
  %v3165 = vadd.f32 %v3087, %v3164
  %v3166 = vpop.f32.mrb[0].mxu0
  %v3167 = vadd.f32 %v3089, %v3166
  %3168 = vdwg.mxu0
  %v3169 = vand.u32 %v2777, 4294901760
  %3170 = vmatprep.subr.mxu0 %v3169
  %v3171 = vand.u32 %v2776, 4294901760
  %3172 = vmatpush1.msra.mxu0 %v3171
  %3173 = vmatprep.subr.mxu0 0.0
  %3174 = vmatpush1.msra.mxu0 0.0
  %3175 = vmatprep.subr.mxu0 0.0
  %3176 = vmatpush1.msra.mxu0 0.0
  %3177 = vmatprep.subr.mxu0 0.0
  %3178 = vmatpush1.msra.mxu0 0.0
  %3179 = vmatprep.subr.mxu0 0.0
  %3180 = vmatpush1.msra.mxu0 0.0
  %3181 = vmatprep.subr.mxu0 0.0
  %3182 = vmatpush1.msra.mxu0 0.0
  %3183 = vmatprep.subr.mxu0 0.0
  %3184 = vmatpush1.msra.mxu0 0.0
  %3185 = vmatprep.subr.mxu0 0.0
  %3186 = vmatpush1.msra.mxu0 0.0
  %3187 = vmatprep.subr.mxu0 0.0
  %3188 = vmatpush1.msra.mxu0 0.0
  %3189 = vmatprep.subr.mxu0 0.0
  %3190 = vmatpush1.msra.mxu0 0.0
  %3191 = vmatprep.subr.mxu0 0.0
  %3192 = vmatpush1.msra.mxu0 0.0
  %3193 = vmatprep.subr.mxu0 0.0
  %3194 = vmatpush1.msra.mxu0 0.0
  %3195 = vmatprep.subr.mxu0 0.0
  %3196 = vmatpush1.msra.mxu0 0.0
  %3197 = vmatprep.subr.mxu0 0.0
  %3198 = vmatpush1.msra.mxu0 0.0
  %3199 = vmatprep.subr.mxu0 0.0
  %3200 = vmatpush1.msra.mxu0 0.0
  %3201 = vmatprep.subr.mxu0 0.0
  %3202 = vmatpush1.msra.mxu0 0.0
  %3203 = vmatprep.subr.mxu0 0.0
  %3204 = vmatpush1.msra.mxu0 0.0
  %3205 = vmatprep.subr.mxu0 0.0
  %3206 = vmatpush1.msra.mxu0 0.0
  %3207 = vmatprep.subr.mxu0 0.0
  %3208 = vmatpush1.msra.mxu0 0.0
  %3209 = vmatprep.subr.mxu0 0.0
  %3210 = vmatpush1.msra.mxu0 0.0
  %3211 = vmatprep.subr.mxu0 0.0
  %3212 = vmatpush1.msra.mxu0 0.0
  %3213 = vmatprep.subr.mxu0 0.0
  %3214 = vmatpush1.msra.mxu0 0.0
  %3215 = vmatprep.subr.mxu0 0.0
  %3216 = vmatpush1.msra.mxu0 0.0
  %3217 = vmatprep.subr.mxu0 0.0
  %3218 = vmatpush1.msra.mxu0 0.0
  %3219 = vmatprep.subr.mxu0 0.0
  %3220 = vmatpush1.msra.mxu0 0.0
  %3221 = vmatprep.subr.mxu0 0.0
  %3222 = vmatpush1.msra.mxu0 0.0
  %3223 = vmatprep.subr.mxu0 0.0
  %3224 = vmatpush1.msra.mxu0 0.0
  %3225 = vmatprep.subr.mxu0 0.0
  %3226 = vmatpush1.msra.mxu0 0.0
  %3227 = vmatprep.subr.mxu0 0.0
  %3228 = vmatpush1.msra.mxu0 0.0
  %3229 = vmatprep.subr.mxu0 0.0
  %3230 = vmatpush1.msra.mxu0 0.0
  %3231 = vmatprep.subr.mxu0 0.0
  %3232 = vmatpush1.msra.mxu0 0.0
  %3233 = vmatprep.subr.mxu0 0.0
  %3234 = vmatpush1.msra.mxu0 0.0
  %3235 = vmatprep.mubr.f32.mxu0 0.0
  %v3236 = vand.u32 %v57, 4294901760
  %3237 = vmatmul.mubr.f32.gmra.mrb[0].mxu0 %v3236
  %v3238 = vpop.f32.mrb[0].mxu0
  %v3239 = vadd.f32 %v3165, %v3238
  %v3240 = vpop.f32.mrb[0].mxu0
  %v3241 = vadd.f32 %v3167, %v3240
  %3242 = vdwg.mxu0
  %v3243 = vxor.u32 %v3239, 2147483648
  %v3244 = vxor.u32 %v3241, 2147483648
  %v3245 = vmul.f32 %v3243, 1.442695
  %v3246 = vpow.pop %v3245
  %v3247 = vmul.f32 %v3244, 1.442695
  %v3248 = vpow.pop %v3247
  %v3249 = vadd.f32 %v3246, 1.0
  %v3250 = vadd.f32 %v3248, 1.0
  %v3251 = vrcp.pop %v3249
  %v3252 = vmul.f32 1.0, %v3251
  %v3253 = vrcp.pop %v3250
  %v3254 = vmul.f32 1.0, %v3253
  %v3255 = vmul.f32 %v3239, %v3252
  %v3256 = vmul.f32 %v3241, %v3254
  %3257 = vrot.lane.b32.xlu0 %v3255, 16
  %v3258 = vpop.permute.xlu0 %3257
  %3259 = vrot.lane.b32.xlu0 %v3256, 16
  %v3260 = vpop.permute.xlu0 %3259
  %v3261 = vsel %vm544, %v3258, %v3260
  %v3262 = vsel %vm544, %v3260, %v3258
  %v3263 = vadd.f32 %v3262, %v551
  %v3264 = vadd.f32 %v3261, %v555
  %3265 = vrot.lane.b32.xlu0 %v3255, 112
  %v3266 = vpop.permute.xlu0 %3265
  %3267 = vrot.lane.b32.xlu0 %v3256, 112
  %v3268 = vpop.permute.xlu0 %3267
  %v3269 = vsel %vm564, %v3266, %v3268
  %v3270 = vsel %vm564, %v3268, %v3266
  %v3271 = vadd.f32 %v3269, %v571
  %v3272 = vadd.f32 %v3270, %v575
  %v3273 = vmax.f32 %v3263, %v3271
  %v3274 = vmax.f32 %v3264, %v3272
  %v3275 = vmax.f32 %v3255, %v3273
  %v3276 = vmax.f32 %v3256, %v3274
  %3277 = vrot.lane.b32.xlu0 %v3255, 32
  %v3278 = vpop.permute.xlu0 %3277
  %3279 = vrot.lane.b32.xlu0 %v3256, 32
  %v3280 = vpop.permute.xlu0 %3279
  %v3281 = vsel %vm588, %v3278, %v3280
  %v3282 = vsel %vm588, %v3280, %v3278
  %v3283 = vadd.f32 %v3282, %v595
  %v3284 = vadd.f32 %v3281, %v599
  %3285 = vrot.lane.b32.xlu0 %v3255, 96
  %v3286 = vpop.permute.xlu0 %3285
  %3287 = vrot.lane.b32.xlu0 %v3256, 96
  %v3288 = vpop.permute.xlu0 %3287
  %v3289 = vsel %vm608, %v3286, %v3288
  %v3290 = vsel %vm608, %v3288, %v3286
  %v3291 = vadd.f32 %v3289, %v615
  %v3292 = vadd.f32 %v3290, %v619
  %v3293 = vmax.f32 %v3283, %v3291
  %v3294 = vmax.f32 %v3284, %v3292
  %v3295 = vmax.f32 %v3275, %v3293
  %v3296 = vmax.f32 %v3276, %v3294
  %3297 = vrot.lane.b32.xlu0 %v3295, 1
  %v3298 = vpop.permute.xlu0 %3297
  %3299 = vrot.lane.b32.xlu0 %v3296, 1
  %v3300 = vpop.permute.xlu0 %3299
  %v3301 = vsel %vm632, %v3298, %v3300
  %v3302 = vsel %vm632, %v3300, %v3298
  %v3303 = vadd.f32 %v3302, %v639
  %v3304 = vadd.f32 %v3301, %v643
  %3305 = vrot.lane.b32.xlu0 %v3295, 127
  %v3306 = vpop.permute.xlu0 %3305
  %3307 = vrot.lane.b32.xlu0 %v3296, 127
  %v3308 = vpop.permute.xlu0 %3307
  %v3309 = vsel %vm652, %v3306, %v3308
  %v3310 = vsel %vm652, %v3308, %v3306
  %v3311 = vadd.f32 %v3309, %v659
  %v3312 = vadd.f32 %v3310, %v663
  %v3313 = vmax.f32 %v3303, %v3311
  %v3314 = vmax.f32 %v3304, %v3312
  %v3315 = vmax.f32 %v3295, %v3313
  %v3316 = vmax.f32 %v3296, %v3314
  %3317 = vrot.lane.b32.xlu0 %v3295, 2
  %v3318 = vpop.permute.xlu0 %3317
  %3319 = vrot.lane.b32.xlu0 %v3296, 2
  %v3320 = vpop.permute.xlu0 %3319
  %v3321 = vsel %vm676, %v3318, %v3320
  %v3322 = vsel %vm676, %v3320, %v3318
  %v3323 = vadd.f32 %v3322, %v683
  %v3324 = vadd.f32 %v3321, %v687
  %3325 = vrot.lane.b32.xlu0 %v3295, 126
  %v3326 = vpop.permute.xlu0 %3325
  %3327 = vrot.lane.b32.xlu0 %v3296, 126
  %v3328 = vpop.permute.xlu0 %3327
  %v3329 = vsel %vm696, %v3326, %v3328
  %v3330 = vsel %vm696, %v3328, %v3326
  %v3331 = vadd.f32 %v3329, %v703
  %v3332 = vadd.f32 %v3330, %v707
  %v3333 = vmax.f32 %v3323, %v3331
  %v3334 = vmax.f32 %v3324, %v3332
  %v3335 = vmax.f32 %v3315, %v3333
  %v3336 = vmax.f32 %v3316, %v3334
  %v3337 = vand.u32 %v3336, 4294901760
  %3338 = vmatprep.subr.mxu0 %v3337
  %v3339 = vand.u32 %v3335, 4294901760
  %3340 = vmatpush1.msra.mxu0 %v3339
  %3341 = vmatprep.subr.mxu0 0.0
  %3342 = vmatpush1.msra.mxu0 0.0
  %3343 = vmatprep.subr.mxu0 0.0
  %3344 = vmatpush1.msra.mxu0 0.0
  %3345 = vmatprep.subr.mxu0 0.0
  %3346 = vmatpush1.msra.mxu0 0.0
  %3347 = vmatprep.subr.mxu0 0.0
  %3348 = vmatpush1.msra.mxu0 0.0
  %3349 = vmatprep.subr.mxu0 0.0
  %3350 = vmatpush1.msra.mxu0 0.0
  %3351 = vmatprep.subr.mxu0 0.0
  %3352 = vmatpush1.msra.mxu0 0.0
  %3353 = vmatprep.subr.mxu0 0.0
  %3354 = vmatpush1.msra.mxu0 0.0
  %3355 = vmatprep.subr.mxu0 0.0
  %3356 = vmatpush1.msra.mxu0 0.0
  %3357 = vmatprep.subr.mxu0 0.0
  %3358 = vmatpush1.msra.mxu0 0.0
  %3359 = vmatprep.subr.mxu0 0.0
  %3360 = vmatpush1.msra.mxu0 0.0
  %3361 = vmatprep.subr.mxu0 0.0
  %3362 = vmatpush1.msra.mxu0 0.0
  %3363 = vmatprep.subr.mxu0 0.0
  %3364 = vmatpush1.msra.mxu0 0.0
  %3365 = vmatprep.subr.mxu0 0.0
  %3366 = vmatpush1.msra.mxu0 0.0
  %3367 = vmatprep.subr.mxu0 0.0
  %3368 = vmatpush1.msra.mxu0 0.0
  %3369 = vmatprep.subr.mxu0 0.0
  %3370 = vmatpush1.msra.mxu0 0.0
  %3371 = vmatprep.subr.mxu0 0.0
  %3372 = vmatpush1.msra.mxu0 0.0
  %3373 = vmatprep.subr.mxu0 0.0
  %3374 = vmatpush1.msra.mxu0 0.0
  %3375 = vmatprep.subr.mxu0 0.0
  %3376 = vmatpush1.msra.mxu0 0.0
  %3377 = vmatprep.subr.mxu0 0.0
  %3378 = vmatpush1.msra.mxu0 0.0
  %3379 = vmatprep.subr.mxu0 0.0
  %3380 = vmatpush1.msra.mxu0 0.0
  %3381 = vmatprep.subr.mxu0 0.0
  %3382 = vmatpush1.msra.mxu0 0.0
  %3383 = vmatprep.subr.mxu0 0.0
  %3384 = vmatpush1.msra.mxu0 0.0
  %3385 = vmatprep.subr.mxu0 0.0
  %3386 = vmatpush1.msra.mxu0 0.0
  %3387 = vmatprep.subr.mxu0 0.0
  %3388 = vmatpush1.msra.mxu0 0.0
  %3389 = vmatprep.subr.mxu0 0.0
  %3390 = vmatpush1.msra.mxu0 0.0
  %3391 = vmatprep.subr.mxu0 0.0
  %3392 = vmatpush1.msra.mxu0 0.0
  %3393 = vmatprep.subr.mxu0 0.0
  %3394 = vmatpush1.msra.mxu0 0.0
  %3395 = vmatprep.subr.mxu0 0.0
  %3396 = vmatpush1.msra.mxu0 0.0
  %3397 = vmatprep.subr.mxu0 0.0
  %3398 = vmatpush1.msra.mxu0 0.0
  %3399 = vmatprep.subr.mxu0 0.0
  %3400 = vmatpush1.msra.mxu0 0.0
  %3401 = vmatprep.subr.mxu0 0.0
  %3402 = vmatpush1.msra.mxu0 0.0
  %3403 = vmatprep.mubr.f32.mxu0 0.0
  %v3404 = vand.u32 %v717, 4294901760
  %v3405 = vsub.f32 %v717, %v3404
  %v3406 = vand.u32 %v3405, 4294901760
  %v3407 = vsub.f32 %v3405, %v3406
  %v3408 = vand.u32 %v3407, 4294901760
  %3409 = vmatmul.mubr.f32.gmra.mrb[0].mxu0 %v3408
  %v3410 = vpop.f32.mrb[0].mxu0
  %v3411 = vadd.f32 0.0, %v3410
  %v3412 = vpop.f32.mrb[0].mxu0
  %v3413 = vadd.f32 0.0, %v3412
  %3414 = vdwg.mxu0
  %v3415 = vand.u32 %v3336, 4294901760
  %v3416 = vsub.f32 %v3336, %v3415
  %v3417 = vand.u32 %v3416, 4294901760
  %v3418 = vsub.f32 %v3416, %v3417
  %v3419 = vand.u32 %v3418, 4294901760
  %3420 = vmatprep.subr.mxu0 %v3419
  %v3421 = vand.u32 %v3335, 4294901760
  %v3422 = vsub.f32 %v3335, %v3421
  %v3423 = vand.u32 %v3422, 4294901760
  %v3424 = vsub.f32 %v3422, %v3423
  %v3425 = vand.u32 %v3424, 4294901760
  %3426 = vmatpush1.msra.mxu0 %v3425
  %3427 = vmatprep.subr.mxu0 0.0
  %3428 = vmatpush1.msra.mxu0 0.0
  %3429 = vmatprep.subr.mxu0 0.0
  %3430 = vmatpush1.msra.mxu0 0.0
  %3431 = vmatprep.subr.mxu0 0.0
  %3432 = vmatpush1.msra.mxu0 0.0
  %3433 = vmatprep.subr.mxu0 0.0
  %3434 = vmatpush1.msra.mxu0 0.0
  %3435 = vmatprep.subr.mxu0 0.0
  %3436 = vmatpush1.msra.mxu0 0.0
  %3437 = vmatprep.subr.mxu0 0.0
  %3438 = vmatpush1.msra.mxu0 0.0
  %3439 = vmatprep.subr.mxu0 0.0
  %3440 = vmatpush1.msra.mxu0 0.0
  %3441 = vmatprep.subr.mxu0 0.0
  %3442 = vmatpush1.msra.mxu0 0.0
  %3443 = vmatprep.subr.mxu0 0.0
  %3444 = vmatpush1.msra.mxu0 0.0
  %3445 = vmatprep.subr.mxu0 0.0
  %3446 = vmatpush1.msra.mxu0 0.0
  %3447 = vmatprep.subr.mxu0 0.0
  %3448 = vmatpush1.msra.mxu0 0.0
  %3449 = vmatprep.subr.mxu0 0.0
  %3450 = vmatpush1.msra.mxu0 0.0
  %3451 = vmatprep.subr.mxu0 0.0
  %3452 = vmatpush1.msra.mxu0 0.0
  %3453 = vmatprep.subr.mxu0 0.0
  %3454 = vmatpush1.msra.mxu0 0.0
  %3455 = vmatprep.subr.mxu0 0.0
  %3456 = vmatpush1.msra.mxu0 0.0
  %3457 = vmatprep.subr.mxu0 0.0
  %3458 = vmatpush1.msra.mxu0 0.0
  %3459 = vmatprep.subr.mxu0 0.0
  %3460 = vmatpush1.msra.mxu0 0.0
  %3461 = vmatprep.subr.mxu0 0.0
  %3462 = vmatpush1.msra.mxu0 0.0
  %3463 = vmatprep.subr.mxu0 0.0
  %3464 = vmatpush1.msra.mxu0 0.0
  %3465 = vmatprep.subr.mxu0 0.0
  %3466 = vmatpush1.msra.mxu0 0.0
  %3467 = vmatprep.subr.mxu0 0.0
  %3468 = vmatpush1.msra.mxu0 0.0
  %3469 = vmatprep.subr.mxu0 0.0
  %3470 = vmatpush1.msra.mxu0 0.0
  %3471 = vmatprep.subr.mxu0 0.0
  %3472 = vmatpush1.msra.mxu0 0.0
  %3473 = vmatprep.subr.mxu0 0.0
  %3474 = vmatpush1.msra.mxu0 0.0
  %3475 = vmatprep.subr.mxu0 0.0
  %3476 = vmatpush1.msra.mxu0 0.0
  %3477 = vmatprep.subr.mxu0 0.0
  %3478 = vmatpush1.msra.mxu0 0.0
  %3479 = vmatprep.subr.mxu0 0.0
  %3480 = vmatpush1.msra.mxu0 0.0
  %3481 = vmatprep.subr.mxu0 0.0
  %3482 = vmatpush1.msra.mxu0 0.0
  %3483 = vmatprep.subr.mxu0 0.0
  %3484 = vmatpush1.msra.mxu0 0.0
  %3485 = vmatprep.subr.mxu0 0.0
  %3486 = vmatpush1.msra.mxu0 0.0
  %3487 = vmatprep.subr.mxu0 0.0
  %3488 = vmatpush1.msra.mxu0 0.0
  %3489 = vmatprep.mubr.f32.mxu0 0.0
  %v3490 = vand.u32 %v717, 4294901760
  %3491 = vmatmul.mubr.f32.gmra.mrb[0].mxu0 %v3490
  %v3492 = vpop.f32.mrb[0].mxu0
  %v3493 = vadd.f32 %v3411, %v3492
  %v3494 = vpop.f32.mrb[0].mxu0
  %v3495 = vadd.f32 %v3413, %v3494
  %3496 = vdwg.mxu0
  %v3497 = vand.u32 %v3336, 4294901760
  %v3498 = vsub.f32 %v3336, %v3497
  %3499 = vmatprep.subr.mxu0 %v3498
  %v3500 = vand.u32 %v3335, 4294901760
  %v3501 = vsub.f32 %v3335, %v3500
  %3502 = vmatpush1.msra.mxu0 %v3501
  %3503 = vmatprep.subr.mxu0 0.0
  %3504 = vmatpush1.msra.mxu0 0.0
  %3505 = vmatprep.subr.mxu0 0.0
  %3506 = vmatpush1.msra.mxu0 0.0
  %3507 = vmatprep.subr.mxu0 0.0
  %3508 = vmatpush1.msra.mxu0 0.0
  %3509 = vmatprep.subr.mxu0 0.0
  %3510 = vmatpush1.msra.mxu0 0.0
  %3511 = vmatprep.subr.mxu0 0.0
  %3512 = vmatpush1.msra.mxu0 0.0
  %3513 = vmatprep.subr.mxu0 0.0
  %3514 = vmatpush1.msra.mxu0 0.0
  %3515 = vmatprep.subr.mxu0 0.0
  %3516 = vmatpush1.msra.mxu0 0.0
  %3517 = vmatprep.subr.mxu0 0.0
  %3518 = vmatpush1.msra.mxu0 0.0
  %3519 = vmatprep.subr.mxu0 0.0
  %3520 = vmatpush1.msra.mxu0 0.0
  %3521 = vmatprep.subr.mxu0 0.0
  %3522 = vmatpush1.msra.mxu0 0.0
  %3523 = vmatprep.subr.mxu0 0.0
  %3524 = vmatpush1.msra.mxu0 0.0
  %3525 = vmatprep.subr.mxu0 0.0
  %3526 = vmatpush1.msra.mxu0 0.0
  %3527 = vmatprep.subr.mxu0 0.0
  %3528 = vmatpush1.msra.mxu0 0.0
  %3529 = vmatprep.subr.mxu0 0.0
  %3530 = vmatpush1.msra.mxu0 0.0
  %3531 = vmatprep.subr.mxu0 0.0
  %3532 = vmatpush1.msra.mxu0 0.0
  %3533 = vmatprep.subr.mxu0 0.0
  %3534 = vmatpush1.msra.mxu0 0.0
  %3535 = vmatprep.subr.mxu0 0.0
  %3536 = vmatpush1.msra.mxu0 0.0
  %3537 = vmatprep.subr.mxu0 0.0
  %3538 = vmatpush1.msra.mxu0 0.0
  %3539 = vmatprep.subr.mxu0 0.0
  %3540 = vmatpush1.msra.mxu0 0.0
  %3541 = vmatprep.subr.mxu0 0.0
  %3542 = vmatpush1.msra.mxu0 0.0
  %3543 = vmatprep.subr.mxu0 0.0
  %3544 = vmatpush1.msra.mxu0 0.0
  %3545 = vmatprep.subr.mxu0 0.0
  %3546 = vmatpush1.msra.mxu0 0.0
  %3547 = vmatprep.subr.mxu0 0.0
  %3548 = vmatpush1.msra.mxu0 0.0
  %3549 = vmatprep.subr.mxu0 0.0
  %3550 = vmatpush1.msra.mxu0 0.0
  %3551 = vmatprep.subr.mxu0 0.0
  %3552 = vmatpush1.msra.mxu0 0.0
  %3553 = vmatprep.subr.mxu0 0.0
  %3554 = vmatpush1.msra.mxu0 0.0
  %3555 = vmatprep.subr.mxu0 0.0
  %3556 = vmatpush1.msra.mxu0 0.0
  %3557 = vmatprep.subr.mxu0 0.0
  %3558 = vmatpush1.msra.mxu0 0.0
  %3559 = vmatprep.subr.mxu0 0.0
  %3560 = vmatpush1.msra.mxu0 0.0
  %3561 = vmatprep.subr.mxu0 0.0
  %3562 = vmatpush1.msra.mxu0 0.0
  %3563 = vmatprep.subr.mxu0 0.0
  %3564 = vmatpush1.msra.mxu0 0.0
  %3565 = vmatprep.mubr.f32.mxu0 0.0
  %v3566 = vand.u32 %v717, 4294901760
  %v3567 = vsub.f32 %v717, %v3566
  %3568 = vmatmul.mubr.f32.gmra.mrb[0].mxu0 %v3567
  %v3569 = vpop.f32.mrb[0].mxu0
  %v3570 = vadd.f32 %v3493, %v3569
  %v3571 = vpop.f32.mrb[0].mxu0
  %v3572 = vadd.f32 %v3495, %v3571
  %3573 = vdwg.mxu0
  %v3574 = vand.u32 %v3336, 4294901760
  %3575 = vmatprep.subr.mxu0 %v3574
  %v3576 = vand.u32 %v3335, 4294901760
  %3577 = vmatpush1.msra.mxu0 %v3576
  %3578 = vmatprep.subr.mxu0 0.0
  %3579 = vmatpush1.msra.mxu0 0.0
  %3580 = vmatprep.subr.mxu0 0.0
  %3581 = vmatpush1.msra.mxu0 0.0
  %3582 = vmatprep.subr.mxu0 0.0
  %3583 = vmatpush1.msra.mxu0 0.0
  %3584 = vmatprep.subr.mxu0 0.0
  %3585 = vmatpush1.msra.mxu0 0.0
  %3586 = vmatprep.subr.mxu0 0.0
  %3587 = vmatpush1.msra.mxu0 0.0
  %3588 = vmatprep.subr.mxu0 0.0
  %3589 = vmatpush1.msra.mxu0 0.0
  %3590 = vmatprep.subr.mxu0 0.0
  %3591 = vmatpush1.msra.mxu0 0.0
  %3592 = vmatprep.subr.mxu0 0.0
  %3593 = vmatpush1.msra.mxu0 0.0
  %3594 = vmatprep.subr.mxu0 0.0
  %3595 = vmatpush1.msra.mxu0 0.0
  %3596 = vmatprep.subr.mxu0 0.0
  %3597 = vmatpush1.msra.mxu0 0.0
  %3598 = vmatprep.subr.mxu0 0.0
  %3599 = vmatpush1.msra.mxu0 0.0
  %3600 = vmatprep.subr.mxu0 0.0
  %3601 = vmatpush1.msra.mxu0 0.0
  %3602 = vmatprep.subr.mxu0 0.0
  %3603 = vmatpush1.msra.mxu0 0.0
  %3604 = vmatprep.subr.mxu0 0.0
  %3605 = vmatpush1.msra.mxu0 0.0
  %3606 = vmatprep.subr.mxu0 0.0
  %3607 = vmatpush1.msra.mxu0 0.0
  %3608 = vmatprep.subr.mxu0 0.0
  %3609 = vmatpush1.msra.mxu0 0.0
  %3610 = vmatprep.subr.mxu0 0.0
  %3611 = vmatpush1.msra.mxu0 0.0
  %3612 = vmatprep.subr.mxu0 0.0
  %3613 = vmatpush1.msra.mxu0 0.0
  %3614 = vmatprep.subr.mxu0 0.0
  %3615 = vmatpush1.msra.mxu0 0.0
  %3616 = vmatprep.subr.mxu0 0.0
  %3617 = vmatpush1.msra.mxu0 0.0
  %3618 = vmatprep.subr.mxu0 0.0
  %3619 = vmatpush1.msra.mxu0 0.0
  %3620 = vmatprep.subr.mxu0 0.0
  %3621 = vmatpush1.msra.mxu0 0.0
  %3622 = vmatprep.subr.mxu0 0.0
  %3623 = vmatpush1.msra.mxu0 0.0
  %3624 = vmatprep.subr.mxu0 0.0
  %3625 = vmatpush1.msra.mxu0 0.0
  %3626 = vmatprep.subr.mxu0 0.0
  %3627 = vmatpush1.msra.mxu0 0.0
  %3628 = vmatprep.subr.mxu0 0.0
  %3629 = vmatpush1.msra.mxu0 0.0
  %3630 = vmatprep.subr.mxu0 0.0
  %3631 = vmatpush1.msra.mxu0 0.0
  %3632 = vmatprep.subr.mxu0 0.0
  %3633 = vmatpush1.msra.mxu0 0.0
  %3634 = vmatprep.subr.mxu0 0.0
  %3635 = vmatpush1.msra.mxu0 0.0
  %3636 = vmatprep.subr.mxu0 0.0
  %3637 = vmatpush1.msra.mxu0 0.0
  %3638 = vmatprep.subr.mxu0 0.0
  %3639 = vmatpush1.msra.mxu0 0.0
  %3640 = vmatprep.mubr.f32.mxu0 0.0
  %v3641 = vand.u32 %v717, 4294901760
  %v3642 = vsub.f32 %v717, %v3641
  %v3643 = vand.u32 %v3642, 4294901760
  %3644 = vmatmul.mubr.f32.gmra.mrb[0].mxu0 %v3643
  %v3645 = vpop.f32.mrb[0].mxu0
  %v3646 = vadd.f32 %v3570, %v3645
  %v3647 = vpop.f32.mrb[0].mxu0
  %v3648 = vadd.f32 %v3572, %v3647
  %3649 = vdwg.mxu0
  %v3650 = vand.u32 %v3336, 4294901760
  %v3651 = vsub.f32 %v3336, %v3650
  %v3652 = vand.u32 %v3651, 4294901760
  %3653 = vmatprep.subr.mxu0 %v3652
  %v3654 = vand.u32 %v3335, 4294901760
  %v3655 = vsub.f32 %v3335, %v3654
  %v3656 = vand.u32 %v3655, 4294901760
  %3657 = vmatpush1.msra.mxu0 %v3656
  %3658 = vmatprep.subr.mxu0 0.0
  %3659 = vmatpush1.msra.mxu0 0.0
  %3660 = vmatprep.subr.mxu0 0.0
  %3661 = vmatpush1.msra.mxu0 0.0
  %3662 = vmatprep.subr.mxu0 0.0
  %3663 = vmatpush1.msra.mxu0 0.0
  %3664 = vmatprep.subr.mxu0 0.0
  %3665 = vmatpush1.msra.mxu0 0.0
  %3666 = vmatprep.subr.mxu0 0.0
  %3667 = vmatpush1.msra.mxu0 0.0
  %3668 = vmatprep.subr.mxu0 0.0
  %3669 = vmatpush1.msra.mxu0 0.0
  %3670 = vmatprep.subr.mxu0 0.0
  %3671 = vmatpush1.msra.mxu0 0.0
  %3672 = vmatprep.subr.mxu0 0.0
  %3673 = vmatpush1.msra.mxu0 0.0
  %3674 = vmatprep.subr.mxu0 0.0
  %3675 = vmatpush1.msra.mxu0 0.0
  %3676 = vmatprep.subr.mxu0 0.0
  %3677 = vmatpush1.msra.mxu0 0.0
  %3678 = vmatprep.subr.mxu0 0.0
  %3679 = vmatpush1.msra.mxu0 0.0
  %3680 = vmatprep.subr.mxu0 0.0
  %3681 = vmatpush1.msra.mxu0 0.0
  %3682 = vmatprep.subr.mxu0 0.0
  %3683 = vmatpush1.msra.mxu0 0.0
  %3684 = vmatprep.subr.mxu0 0.0
  %3685 = vmatpush1.msra.mxu0 0.0
  %3686 = vmatprep.subr.mxu0 0.0
  %3687 = vmatpush1.msra.mxu0 0.0
  %3688 = vmatprep.subr.mxu0 0.0
  %3689 = vmatpush1.msra.mxu0 0.0
  %3690 = vmatprep.subr.mxu0 0.0
  %3691 = vmatpush1.msra.mxu0 0.0
  %3692 = vmatprep.subr.mxu0 0.0
  %3693 = vmatpush1.msra.mxu0 0.0
  %3694 = vmatprep.subr.mxu0 0.0
  %3695 = vmatpush1.msra.mxu0 0.0
  %3696 = vmatprep.subr.mxu0 0.0
  %3697 = vmatpush1.msra.mxu0 0.0
  %3698 = vmatprep.subr.mxu0 0.0
  %3699 = vmatpush1.msra.mxu0 0.0
  %3700 = vmatprep.subr.mxu0 0.0
  %3701 = vmatpush1.msra.mxu0 0.0
  %3702 = vmatprep.subr.mxu0 0.0
  %3703 = vmatpush1.msra.mxu0 0.0
  %3704 = vmatprep.subr.mxu0 0.0
  %3705 = vmatpush1.msra.mxu0 0.0
  %3706 = vmatprep.subr.mxu0 0.0
  %3707 = vmatpush1.msra.mxu0 0.0
  %3708 = vmatprep.subr.mxu0 0.0
  %3709 = vmatpush1.msra.mxu0 0.0
  %3710 = vmatprep.subr.mxu0 0.0
  %3711 = vmatpush1.msra.mxu0 0.0
  %3712 = vmatprep.subr.mxu0 0.0
  %3713 = vmatpush1.msra.mxu0 0.0
  %3714 = vmatprep.subr.mxu0 0.0
  %3715 = vmatpush1.msra.mxu0 0.0
  %3716 = vmatprep.subr.mxu0 0.0
  %3717 = vmatpush1.msra.mxu0 0.0
  %3718 = vmatprep.subr.mxu0 0.0
  %3719 = vmatpush1.msra.mxu0 0.0
  %3720 = vmatprep.mubr.f32.mxu0 0.0
  %v3721 = vand.u32 %v717, 4294901760
  %3722 = vmatmul.mubr.f32.gmra.mrb[0].mxu0 %v3721
  %v3723 = vpop.f32.mrb[0].mxu0
  %v3724 = vadd.f32 %v3646, %v3723
  %v3725 = vpop.f32.mrb[0].mxu0
  %v3726 = vadd.f32 %v3648, %v3725
  %3727 = vdwg.mxu0
  %v3728 = vand.u32 %v3336, 4294901760
  %3729 = vmatprep.subr.mxu0 %v3728
  %v3730 = vand.u32 %v3335, 4294901760
  %3731 = vmatpush1.msra.mxu0 %v3730
  %3732 = vmatprep.subr.mxu0 0.0
  %3733 = vmatpush1.msra.mxu0 0.0
  %3734 = vmatprep.subr.mxu0 0.0
  %3735 = vmatpush1.msra.mxu0 0.0
  %3736 = vmatprep.subr.mxu0 0.0
  %3737 = vmatpush1.msra.mxu0 0.0
  %3738 = vmatprep.subr.mxu0 0.0
  %3739 = vmatpush1.msra.mxu0 0.0
  %3740 = vmatprep.subr.mxu0 0.0
  %3741 = vmatpush1.msra.mxu0 0.0
  %3742 = vmatprep.subr.mxu0 0.0
  %3743 = vmatpush1.msra.mxu0 0.0
  %3744 = vmatprep.subr.mxu0 0.0
  %3745 = vmatpush1.msra.mxu0 0.0
  %3746 = vmatprep.subr.mxu0 0.0
  %3747 = vmatpush1.msra.mxu0 0.0
  %3748 = vmatprep.subr.mxu0 0.0
  %3749 = vmatpush1.msra.mxu0 0.0
  %3750 = vmatprep.subr.mxu0 0.0
  %3751 = vmatpush1.msra.mxu0 0.0
  %3752 = vmatprep.subr.mxu0 0.0
  %3753 = vmatpush1.msra.mxu0 0.0
  %3754 = vmatprep.subr.mxu0 0.0
  %3755 = vmatpush1.msra.mxu0 0.0
  %3756 = vmatprep.subr.mxu0 0.0
  %3757 = vmatpush1.msra.mxu0 0.0
  %3758 = vmatprep.subr.mxu0 0.0
  %3759 = vmatpush1.msra.mxu0 0.0
  %3760 = vmatprep.subr.mxu0 0.0
  %3761 = vmatpush1.msra.mxu0 0.0
  %3762 = vmatprep.subr.mxu0 0.0
  %3763 = vmatpush1.msra.mxu0 0.0
  %3764 = vmatprep.subr.mxu0 0.0
  %3765 = vmatpush1.msra.mxu0 0.0
  %3766 = vmatprep.subr.mxu0 0.0
  %3767 = vmatpush1.msra.mxu0 0.0
  %3768 = vmatprep.subr.mxu0 0.0
  %3769 = vmatpush1.msra.mxu0 0.0
  %3770 = vmatprep.subr.mxu0 0.0
  %3771 = vmatpush1.msra.mxu0 0.0
  %3772 = vmatprep.subr.mxu0 0.0
  %3773 = vmatpush1.msra.mxu0 0.0
  %3774 = vmatprep.subr.mxu0 0.0
  %3775 = vmatpush1.msra.mxu0 0.0
  %3776 = vmatprep.subr.mxu0 0.0
  %3777 = vmatpush1.msra.mxu0 0.0
  %3778 = vmatprep.subr.mxu0 0.0
  %3779 = vmatpush1.msra.mxu0 0.0
  %3780 = vmatprep.subr.mxu0 0.0
  %3781 = vmatpush1.msra.mxu0 0.0
  %3782 = vmatprep.subr.mxu0 0.0
  %3783 = vmatpush1.msra.mxu0 0.0
  %3784 = vmatprep.subr.mxu0 0.0
  %3785 = vmatpush1.msra.mxu0 0.0
  %3786 = vmatprep.subr.mxu0 0.0
  %3787 = vmatpush1.msra.mxu0 0.0
  %3788 = vmatprep.subr.mxu0 0.0
  %3789 = vmatpush1.msra.mxu0 0.0
  %3790 = vmatprep.subr.mxu0 0.0
  %3791 = vmatpush1.msra.mxu0 0.0
  %3792 = vmatprep.subr.mxu0 0.0
  %3793 = vmatpush1.msra.mxu0 0.0
  %3794 = vmatprep.mubr.f32.mxu0 0.0
  %v3795 = vand.u32 %v717, 4294901760
  %3796 = vmatmul.mubr.f32.gmra.mrb[0].mxu0 %v3795
  %v3797 = vpop.f32.mrb[0].mxu0
  %v3798 = vadd.f32 %v3724, %v3797
  %v3799 = vpop.f32.mrb[0].mxu0
  %v3800 = vadd.f32 %v3726, %v3799
  %3801 = vdwg.mxu0
  %v3802 = vand.u32 %v3256, 4294901760
  %3803 = vmatprep.subr.mxu0 %v3802
  %v3804 = vand.u32 %v3255, 4294901760
  %3805 = vmatpush1.msra.mxu0 %v3804
  %3806 = vmatprep.subr.mxu0 0.0
  %3807 = vmatpush1.msra.mxu0 0.0
  %3808 = vmatprep.subr.mxu0 0.0
  %3809 = vmatpush1.msra.mxu0 0.0
  %3810 = vmatprep.subr.mxu0 0.0
  %3811 = vmatpush1.msra.mxu0 0.0
  %3812 = vmatprep.subr.mxu0 0.0
  %3813 = vmatpush1.msra.mxu0 0.0
  %3814 = vmatprep.subr.mxu0 0.0
  %3815 = vmatpush1.msra.mxu0 0.0
  %3816 = vmatprep.subr.mxu0 0.0
  %3817 = vmatpush1.msra.mxu0 0.0
  %3818 = vmatprep.subr.mxu0 0.0
  %3819 = vmatpush1.msra.mxu0 0.0
  %3820 = vmatprep.subr.mxu0 0.0
  %3821 = vmatpush1.msra.mxu0 0.0
  %3822 = vmatprep.subr.mxu0 0.0
  %3823 = vmatpush1.msra.mxu0 0.0
  %3824 = vmatprep.subr.mxu0 0.0
  %3825 = vmatpush1.msra.mxu0 0.0
  %3826 = vmatprep.subr.mxu0 0.0
  %3827 = vmatpush1.msra.mxu0 0.0
  %3828 = vmatprep.subr.mxu0 0.0
  %3829 = vmatpush1.msra.mxu0 0.0
  %3830 = vmatprep.subr.mxu0 0.0
  %3831 = vmatpush1.msra.mxu0 0.0
  %3832 = vmatprep.subr.mxu0 0.0
  %3833 = vmatpush1.msra.mxu0 0.0
  %3834 = vmatprep.subr.mxu0 0.0
  %3835 = vmatpush1.msra.mxu0 0.0
  %3836 = vmatprep.subr.mxu0 0.0
  %3837 = vmatpush1.msra.mxu0 0.0
  %3838 = vmatprep.subr.mxu0 0.0
  %3839 = vmatpush1.msra.mxu0 0.0
  %3840 = vmatprep.subr.mxu0 0.0
  %3841 = vmatpush1.msra.mxu0 0.0
  %3842 = vmatprep.subr.mxu0 0.0
  %3843 = vmatpush1.msra.mxu0 0.0
  %3844 = vmatprep.subr.mxu0 0.0
  %3845 = vmatpush1.msra.mxu0 0.0
  %3846 = vmatprep.subr.mxu0 0.0
  %3847 = vmatpush1.msra.mxu0 0.0
  %3848 = vmatprep.subr.mxu0 0.0
  %3849 = vmatpush1.msra.mxu0 0.0
  %3850 = vmatprep.subr.mxu0 0.0
  %3851 = vmatpush1.msra.mxu0 0.0
  %3852 = vmatprep.subr.mxu0 0.0
  %3853 = vmatpush1.msra.mxu0 0.0
  %3854 = vmatprep.subr.mxu0 0.0
  %3855 = vmatpush1.msra.mxu0 0.0
  %3856 = vmatprep.subr.mxu0 0.0
  %3857 = vmatpush1.msra.mxu0 0.0
  %3858 = vmatprep.subr.mxu0 0.0
  %3859 = vmatpush1.msra.mxu0 0.0
  %3860 = vmatprep.subr.mxu0 0.0
  %3861 = vmatpush1.msra.mxu0 0.0
  %3862 = vmatprep.subr.mxu0 0.0
  %3863 = vmatpush1.msra.mxu0 0.0
  %3864 = vmatprep.subr.mxu0 0.0
  %3865 = vmatpush1.msra.mxu0 0.0
  %3866 = vmatprep.subr.mxu0 0.0
  %3867 = vmatpush1.msra.mxu0 0.0
  %3868 = vmatprep.mubr.f32.mxu0 0.0
  %v3869 = vand.u32 %v1185, 4294901760
  %v3870 = vsub.f32 %v1185, %v3869
  %v3871 = vand.u32 %v3870, 4294901760
  %v3872 = vsub.f32 %v3870, %v3871
  %v3873 = vand.u32 %v3872, 4294901760
  %3874 = vmatmul.mubr.f32.gmra.mrb[0].mxu0 %v3873
  %v3875 = vpop.f32.mrb[0].mxu0
  %v3876 = vadd.f32 %v3798, %v3875
  %v3877 = vpop.f32.mrb[0].mxu0
  %v3878 = vadd.f32 %v3800, %v3877
  %3879 = vdwg.mxu0
  %v3880 = vand.u32 %v3256, 4294901760
  %v3881 = vsub.f32 %v3256, %v3880
  %v3882 = vand.u32 %v3881, 4294901760
  %v3883 = vsub.f32 %v3881, %v3882
  %v3884 = vand.u32 %v3883, 4294901760
  %3885 = vmatprep.subr.mxu0 %v3884
  %v3886 = vand.u32 %v3255, 4294901760
  %v3887 = vsub.f32 %v3255, %v3886
  %v3888 = vand.u32 %v3887, 4294901760
  %v3889 = vsub.f32 %v3887, %v3888
  %v3890 = vand.u32 %v3889, 4294901760
  %3891 = vmatpush1.msra.mxu0 %v3890
  %3892 = vmatprep.subr.mxu0 0.0
  %3893 = vmatpush1.msra.mxu0 0.0
  %3894 = vmatprep.subr.mxu0 0.0
  %3895 = vmatpush1.msra.mxu0 0.0
  %3896 = vmatprep.subr.mxu0 0.0
  %3897 = vmatpush1.msra.mxu0 0.0
  %3898 = vmatprep.subr.mxu0 0.0
  %3899 = vmatpush1.msra.mxu0 0.0
  %3900 = vmatprep.subr.mxu0 0.0
  %3901 = vmatpush1.msra.mxu0 0.0
  %3902 = vmatprep.subr.mxu0 0.0
  %3903 = vmatpush1.msra.mxu0 0.0
  %3904 = vmatprep.subr.mxu0 0.0
  %3905 = vmatpush1.msra.mxu0 0.0
  %3906 = vmatprep.subr.mxu0 0.0
  %3907 = vmatpush1.msra.mxu0 0.0
  %3908 = vmatprep.subr.mxu0 0.0
  %3909 = vmatpush1.msra.mxu0 0.0
  %3910 = vmatprep.subr.mxu0 0.0
  %3911 = vmatpush1.msra.mxu0 0.0
  %3912 = vmatprep.subr.mxu0 0.0
  %3913 = vmatpush1.msra.mxu0 0.0
  %3914 = vmatprep.subr.mxu0 0.0
  %3915 = vmatpush1.msra.mxu0 0.0
  %3916 = vmatprep.subr.mxu0 0.0
  %3917 = vmatpush1.msra.mxu0 0.0
  %3918 = vmatprep.subr.mxu0 0.0
  %3919 = vmatpush1.msra.mxu0 0.0
  %3920 = vmatprep.subr.mxu0 0.0
  %3921 = vmatpush1.msra.mxu0 0.0
  %3922 = vmatprep.subr.mxu0 0.0
  %3923 = vmatpush1.msra.mxu0 0.0
  %3924 = vmatprep.subr.mxu0 0.0
  %3925 = vmatpush1.msra.mxu0 0.0
  %3926 = vmatprep.subr.mxu0 0.0
  %3927 = vmatpush1.msra.mxu0 0.0
  %3928 = vmatprep.subr.mxu0 0.0
  %3929 = vmatpush1.msra.mxu0 0.0
  %3930 = vmatprep.subr.mxu0 0.0
  %3931 = vmatpush1.msra.mxu0 0.0
  %3932 = vmatprep.subr.mxu0 0.0
  %3933 = vmatpush1.msra.mxu0 0.0
  %3934 = vmatprep.subr.mxu0 0.0
  %3935 = vmatpush1.msra.mxu0 0.0
  %3936 = vmatprep.subr.mxu0 0.0
  %3937 = vmatpush1.msra.mxu0 0.0
  %3938 = vmatprep.subr.mxu0 0.0
  %3939 = vmatpush1.msra.mxu0 0.0
  %3940 = vmatprep.subr.mxu0 0.0
  %3941 = vmatpush1.msra.mxu0 0.0
  %3942 = vmatprep.subr.mxu0 0.0
  %3943 = vmatpush1.msra.mxu0 0.0
  %3944 = vmatprep.subr.mxu0 0.0
  %3945 = vmatpush1.msra.mxu0 0.0
  %3946 = vmatprep.subr.mxu0 0.0
  %3947 = vmatpush1.msra.mxu0 0.0
  %3948 = vmatprep.subr.mxu0 0.0
  %3949 = vmatpush1.msra.mxu0 0.0
  %3950 = vmatprep.subr.mxu0 0.0
  %3951 = vmatpush1.msra.mxu0 0.0
  %3952 = vmatprep.subr.mxu0 0.0
  %3953 = vmatpush1.msra.mxu0 0.0
  %3954 = vmatprep.mubr.f32.mxu0 0.0
  %v3955 = vand.u32 %v1185, 4294901760
  %3956 = vmatmul.mubr.f32.gmra.mrb[0].mxu0 %v3955
  %v3957 = vpop.f32.mrb[0].mxu0
  %v3958 = vadd.f32 %v3876, %v3957
  %v3959 = vpop.f32.mrb[0].mxu0
  %v3960 = vadd.f32 %v3878, %v3959
  %3961 = vdwg.mxu0
  %v3962 = vand.u32 %v3256, 4294901760
  %v3963 = vsub.f32 %v3256, %v3962
  %3964 = vmatprep.subr.mxu0 %v3963
  %v3965 = vand.u32 %v3255, 4294901760
  %v3966 = vsub.f32 %v3255, %v3965
  %3967 = vmatpush1.msra.mxu0 %v3966
  %3968 = vmatprep.subr.mxu0 0.0
  %3969 = vmatpush1.msra.mxu0 0.0
  %3970 = vmatprep.subr.mxu0 0.0
  %3971 = vmatpush1.msra.mxu0 0.0
  %3972 = vmatprep.subr.mxu0 0.0
  %3973 = vmatpush1.msra.mxu0 0.0
  %3974 = vmatprep.subr.mxu0 0.0
  %3975 = vmatpush1.msra.mxu0 0.0
  %3976 = vmatprep.subr.mxu0 0.0
  %3977 = vmatpush1.msra.mxu0 0.0
  %3978 = vmatprep.subr.mxu0 0.0
  %3979 = vmatpush1.msra.mxu0 0.0
  %3980 = vmatprep.subr.mxu0 0.0
  %3981 = vmatpush1.msra.mxu0 0.0
  %3982 = vmatprep.subr.mxu0 0.0
  %3983 = vmatpush1.msra.mxu0 0.0
  %3984 = vmatprep.subr.mxu0 0.0
  %3985 = vmatpush1.msra.mxu0 0.0
  %3986 = vmatprep.subr.mxu0 0.0
  %3987 = vmatpush1.msra.mxu0 0.0
  %3988 = vmatprep.subr.mxu0 0.0
  %3989 = vmatpush1.msra.mxu0 0.0
  %3990 = vmatprep.subr.mxu0 0.0
  %3991 = vmatpush1.msra.mxu0 0.0
  %3992 = vmatprep.subr.mxu0 0.0
  %3993 = vmatpush1.msra.mxu0 0.0
  %3994 = vmatprep.subr.mxu0 0.0
  %3995 = vmatpush1.msra.mxu0 0.0
  %3996 = vmatprep.subr.mxu0 0.0
  %3997 = vmatpush1.msra.mxu0 0.0
  %3998 = vmatprep.subr.mxu0 0.0
  %3999 = vmatpush1.msra.mxu0 0.0
  %4000 = vmatprep.subr.mxu0 0.0
  %4001 = vmatpush1.msra.mxu0 0.0
  %4002 = vmatprep.subr.mxu0 0.0
  %4003 = vmatpush1.msra.mxu0 0.0
  %4004 = vmatprep.subr.mxu0 0.0
  %4005 = vmatpush1.msra.mxu0 0.0
  %4006 = vmatprep.subr.mxu0 0.0
  %4007 = vmatpush1.msra.mxu0 0.0
  %4008 = vmatprep.subr.mxu0 0.0
  %4009 = vmatpush1.msra.mxu0 0.0
  %4010 = vmatprep.subr.mxu0 0.0
  %4011 = vmatpush1.msra.mxu0 0.0
  %4012 = vmatprep.subr.mxu0 0.0
  %4013 = vmatpush1.msra.mxu0 0.0
  %4014 = vmatprep.subr.mxu0 0.0
  %4015 = vmatpush1.msra.mxu0 0.0
  %4016 = vmatprep.subr.mxu0 0.0
  %4017 = vmatpush1.msra.mxu0 0.0
  %4018 = vmatprep.subr.mxu0 0.0
  %4019 = vmatpush1.msra.mxu0 0.0
  %4020 = vmatprep.subr.mxu0 0.0
  %4021 = vmatpush1.msra.mxu0 0.0
  %4022 = vmatprep.subr.mxu0 0.0
  %4023 = vmatpush1.msra.mxu0 0.0
  %4024 = vmatprep.subr.mxu0 0.0
  %4025 = vmatpush1.msra.mxu0 0.0
  %4026 = vmatprep.subr.mxu0 0.0
  %4027 = vmatpush1.msra.mxu0 0.0
  %4028 = vmatprep.subr.mxu0 0.0
  %4029 = vmatpush1.msra.mxu0 0.0
  %4030 = vmatprep.mubr.f32.mxu0 0.0
  %v4031 = vand.u32 %v1185, 4294901760
  %v4032 = vsub.f32 %v1185, %v4031
  %4033 = vmatmul.mubr.f32.gmra.mrb[0].mxu0 %v4032
  %v4034 = vpop.f32.mrb[0].mxu0
  %v4035 = vadd.f32 %v3958, %v4034
  %v4036 = vpop.f32.mrb[0].mxu0
  %v4037 = vadd.f32 %v3960, %v4036
  %4038 = vdwg.mxu0
  %v4039 = vand.u32 %v3256, 4294901760
  %4040 = vmatprep.subr.mxu0 %v4039
  %v4041 = vand.u32 %v3255, 4294901760
  %4042 = vmatpush1.msra.mxu0 %v4041
  %4043 = vmatprep.subr.mxu0 0.0
  %4044 = vmatpush1.msra.mxu0 0.0
  %4045 = vmatprep.subr.mxu0 0.0
  %4046 = vmatpush1.msra.mxu0 0.0
  %4047 = vmatprep.subr.mxu0 0.0
  %4048 = vmatpush1.msra.mxu0 0.0
  %4049 = vmatprep.subr.mxu0 0.0
  %4050 = vmatpush1.msra.mxu0 0.0
  %4051 = vmatprep.subr.mxu0 0.0
  %4052 = vmatpush1.msra.mxu0 0.0
  %4053 = vmatprep.subr.mxu0 0.0
  %4054 = vmatpush1.msra.mxu0 0.0
  %4055 = vmatprep.subr.mxu0 0.0
  %4056 = vmatpush1.msra.mxu0 0.0
  %4057 = vmatprep.subr.mxu0 0.0
  %4058 = vmatpush1.msra.mxu0 0.0
  %4059 = vmatprep.subr.mxu0 0.0
  %4060 = vmatpush1.msra.mxu0 0.0
  %4061 = vmatprep.subr.mxu0 0.0
  %4062 = vmatpush1.msra.mxu0 0.0
  %4063 = vmatprep.subr.mxu0 0.0
  %4064 = vmatpush1.msra.mxu0 0.0
  %4065 = vmatprep.subr.mxu0 0.0
  %4066 = vmatpush1.msra.mxu0 0.0
  %4067 = vmatprep.subr.mxu0 0.0
  %4068 = vmatpush1.msra.mxu0 0.0
  %4069 = vmatprep.subr.mxu0 0.0
  %4070 = vmatpush1.msra.mxu0 0.0
  %4071 = vmatprep.subr.mxu0 0.0
  %4072 = vmatpush1.msra.mxu0 0.0
  %4073 = vmatprep.subr.mxu0 0.0
  %4074 = vmatpush1.msra.mxu0 0.0
  %4075 = vmatprep.subr.mxu0 0.0
  %4076 = vmatpush1.msra.mxu0 0.0
  %4077 = vmatprep.subr.mxu0 0.0
  %4078 = vmatpush1.msra.mxu0 0.0
  %4079 = vmatprep.subr.mxu0 0.0
  %4080 = vmatpush1.msra.mxu0 0.0
  %4081 = vmatprep.subr.mxu0 0.0
  %4082 = vmatpush1.msra.mxu0 0.0
  %4083 = vmatprep.subr.mxu0 0.0
  %4084 = vmatpush1.msra.mxu0 0.0
  %4085 = vmatprep.subr.mxu0 0.0
  %4086 = vmatpush1.msra.mxu0 0.0
  %4087 = vmatprep.subr.mxu0 0.0
  %4088 = vmatpush1.msra.mxu0 0.0
  %4089 = vmatprep.subr.mxu0 0.0
  %4090 = vmatpush1.msra.mxu0 0.0
  %4091 = vmatprep.subr.mxu0 0.0
  %4092 = vmatpush1.msra.mxu0 0.0
  %4093 = vmatprep.subr.mxu0 0.0
  %4094 = vmatpush1.msra.mxu0 0.0
  %4095 = vmatprep.subr.mxu0 0.0
  %4096 = vmatpush1.msra.mxu0 0.0
  %4097 = vmatprep.subr.mxu0 0.0
  %4098 = vmatpush1.msra.mxu0 0.0
  %4099 = vmatprep.subr.mxu0 0.0
  %4100 = vmatpush1.msra.mxu0 0.0
  %4101 = vmatprep.subr.mxu0 0.0
  %4102 = vmatpush1.msra.mxu0 0.0
  %4103 = vmatprep.subr.mxu0 0.0
  %4104 = vmatpush1.msra.mxu0 0.0
  %4105 = vmatprep.mubr.f32.mxu0 0.0
  %v4106 = vand.u32 %v1185, 4294901760
  %v4107 = vsub.f32 %v1185, %v4106
  %v4108 = vand.u32 %v4107, 4294901760
  %4109 = vmatmul.mubr.f32.gmra.mrb[0].mxu0 %v4108
  %v4110 = vpop.f32.mrb[0].mxu0
  %v4111 = vadd.f32 %v4035, %v4110
  %v4112 = vpop.f32.mrb[0].mxu0
  %v4113 = vadd.f32 %v4037, %v4112
  %4114 = vdwg.mxu0
  %v4115 = vand.u32 %v3256, 4294901760
  %v4116 = vsub.f32 %v3256, %v4115
  %v4117 = vand.u32 %v4116, 4294901760
  %4118 = vmatprep.subr.mxu0 %v4117
  %v4119 = vand.u32 %v3255, 4294901760
  %v4120 = vsub.f32 %v3255, %v4119
  %v4121 = vand.u32 %v4120, 4294901760
  %4122 = vmatpush1.msra.mxu0 %v4121
  %4123 = vmatprep.subr.mxu0 0.0
  %4124 = vmatpush1.msra.mxu0 0.0
  %4125 = vmatprep.subr.mxu0 0.0
  %4126 = vmatpush1.msra.mxu0 0.0
  %4127 = vmatprep.subr.mxu0 0.0
  %4128 = vmatpush1.msra.mxu0 0.0
  %4129 = vmatprep.subr.mxu0 0.0
  %4130 = vmatpush1.msra.mxu0 0.0
  %4131 = vmatprep.subr.mxu0 0.0
  %4132 = vmatpush1.msra.mxu0 0.0
  %4133 = vmatprep.subr.mxu0 0.0
  %4134 = vmatpush1.msra.mxu0 0.0
  %4135 = vmatprep.subr.mxu0 0.0
  %4136 = vmatpush1.msra.mxu0 0.0
  %4137 = vmatprep.subr.mxu0 0.0
  %4138 = vmatpush1.msra.mxu0 0.0
  %4139 = vmatprep.subr.mxu0 0.0
  %4140 = vmatpush1.msra.mxu0 0.0
  %4141 = vmatprep.subr.mxu0 0.0
  %4142 = vmatpush1.msra.mxu0 0.0
  %4143 = vmatprep.subr.mxu0 0.0
  %4144 = vmatpush1.msra.mxu0 0.0
  %4145 = vmatprep.subr.mxu0 0.0
  %4146 = vmatpush1.msra.mxu0 0.0
  %4147 = vmatprep.subr.mxu0 0.0
  %4148 = vmatpush1.msra.mxu0 0.0
  %4149 = vmatprep.subr.mxu0 0.0
  %4150 = vmatpush1.msra.mxu0 0.0
  %4151 = vmatprep.subr.mxu0 0.0
  %4152 = vmatpush1.msra.mxu0 0.0
  %4153 = vmatprep.subr.mxu0 0.0
  %4154 = vmatpush1.msra.mxu0 0.0
  %4155 = vmatprep.subr.mxu0 0.0
  %4156 = vmatpush1.msra.mxu0 0.0
  %4157 = vmatprep.subr.mxu0 0.0
  %4158 = vmatpush1.msra.mxu0 0.0
  %4159 = vmatprep.subr.mxu0 0.0
  %4160 = vmatpush1.msra.mxu0 0.0
  %4161 = vmatprep.subr.mxu0 0.0
  %4162 = vmatpush1.msra.mxu0 0.0
  %4163 = vmatprep.subr.mxu0 0.0
  %4164 = vmatpush1.msra.mxu0 0.0
  %4165 = vmatprep.subr.mxu0 0.0
  %4166 = vmatpush1.msra.mxu0 0.0
  %4167 = vmatprep.subr.mxu0 0.0
  %4168 = vmatpush1.msra.mxu0 0.0
  %4169 = vmatprep.subr.mxu0 0.0
  %4170 = vmatpush1.msra.mxu0 0.0
  %4171 = vmatprep.subr.mxu0 0.0
  %4172 = vmatpush1.msra.mxu0 0.0
  %4173 = vmatprep.subr.mxu0 0.0
  %4174 = vmatpush1.msra.mxu0 0.0
  %4175 = vmatprep.subr.mxu0 0.0
  %4176 = vmatpush1.msra.mxu0 0.0
  %4177 = vmatprep.subr.mxu0 0.0
  %4178 = vmatpush1.msra.mxu0 0.0
  %4179 = vmatprep.subr.mxu0 0.0
  %4180 = vmatpush1.msra.mxu0 0.0
  %4181 = vmatprep.subr.mxu0 0.0
  %4182 = vmatpush1.msra.mxu0 0.0
  %4183 = vmatprep.subr.mxu0 0.0
  %4184 = vmatpush1.msra.mxu0 0.0
  %4185 = vmatprep.mubr.f32.mxu0 0.0
  %v4186 = vand.u32 %v1185, 4294901760
  %4187 = vmatmul.mubr.f32.gmra.mrb[0].mxu0 %v4186
  %v4188 = vpop.f32.mrb[0].mxu0
  %v4189 = vadd.f32 %v4111, %v4188
  %v4190 = vpop.f32.mrb[0].mxu0
  %v4191 = vadd.f32 %v4113, %v4190
  %4192 = vdwg.mxu0
  %v4193 = vand.u32 %v3256, 4294901760
  %4194 = vmatprep.subr.mxu0 %v4193
  %v4195 = vand.u32 %v3255, 4294901760
  %4196 = vmatpush1.msra.mxu0 %v4195
  %4197 = vmatprep.subr.mxu0 0.0
  %4198 = vmatpush1.msra.mxu0 0.0
  %4199 = vmatprep.subr.mxu0 0.0
  %4200 = vmatpush1.msra.mxu0 0.0
  %4201 = vmatprep.subr.mxu0 0.0
  %4202 = vmatpush1.msra.mxu0 0.0
  %4203 = vmatprep.subr.mxu0 0.0
  %4204 = vmatpush1.msra.mxu0 0.0
  %4205 = vmatprep.subr.mxu0 0.0
  %4206 = vmatpush1.msra.mxu0 0.0
  %4207 = vmatprep.subr.mxu0 0.0
  %4208 = vmatpush1.msra.mxu0 0.0
  %4209 = vmatprep.subr.mxu0 0.0
  %4210 = vmatpush1.msra.mxu0 0.0
  %4211 = vmatprep.subr.mxu0 0.0
  %4212 = vmatpush1.msra.mxu0 0.0
  %4213 = vmatprep.subr.mxu0 0.0
  %4214 = vmatpush1.msra.mxu0 0.0
  %4215 = vmatprep.subr.mxu0 0.0
  %4216 = vmatpush1.msra.mxu0 0.0
  %4217 = vmatprep.subr.mxu0 0.0
  %4218 = vmatpush1.msra.mxu0 0.0
  %4219 = vmatprep.subr.mxu0 0.0
  %4220 = vmatpush1.msra.mxu0 0.0
  %4221 = vmatprep.subr.mxu0 0.0
  %4222 = vmatpush1.msra.mxu0 0.0
  %4223 = vmatprep.subr.mxu0 0.0
  %4224 = vmatpush1.msra.mxu0 0.0
  %4225 = vmatprep.subr.mxu0 0.0
  %4226 = vmatpush1.msra.mxu0 0.0
  %4227 = vmatprep.subr.mxu0 0.0
  %4228 = vmatpush1.msra.mxu0 0.0
  %4229 = vmatprep.subr.mxu0 0.0
  %4230 = vmatpush1.msra.mxu0 0.0
  %4231 = vmatprep.subr.mxu0 0.0
  %4232 = vmatpush1.msra.mxu0 0.0
  %4233 = vmatprep.subr.mxu0 0.0
  %4234 = vmatpush1.msra.mxu0 0.0
  %4235 = vmatprep.subr.mxu0 0.0
  %4236 = vmatpush1.msra.mxu0 0.0
  %4237 = vmatprep.subr.mxu0 0.0
  %4238 = vmatpush1.msra.mxu0 0.0
  %4239 = vmatprep.subr.mxu0 0.0
  %4240 = vmatpush1.msra.mxu0 0.0
  %4241 = vmatprep.subr.mxu0 0.0
  %4242 = vmatpush1.msra.mxu0 0.0
  %4243 = vmatprep.subr.mxu0 0.0
  %4244 = vmatpush1.msra.mxu0 0.0
  %4245 = vmatprep.subr.mxu0 0.0
  %4246 = vmatpush1.msra.mxu0 0.0
  %4247 = vmatprep.subr.mxu0 0.0
  %4248 = vmatpush1.msra.mxu0 0.0
  %4249 = vmatprep.subr.mxu0 0.0
  %4250 = vmatpush1.msra.mxu0 0.0
  %4251 = vmatprep.subr.mxu0 0.0
  %4252 = vmatpush1.msra.mxu0 0.0
  %4253 = vmatprep.subr.mxu0 0.0
  %4254 = vmatpush1.msra.mxu0 0.0
  %4255 = vmatprep.subr.mxu0 0.0
  %4256 = vmatpush1.msra.mxu0 0.0
  %4257 = vmatprep.subr.mxu0 0.0
  %4258 = vmatpush1.msra.mxu0 0.0
  %4259 = vmatprep.mubr.f32.mxu0 0.0
  %v4260 = vand.u32 %v1185, 4294901760
  %4261 = vmatmul.mubr.f32.gmra.mrb[0].mxu0 %v4260
  %v4262 = vpop.f32.mrb[0].mxu0
  %v4263 = vadd.f32 %v4189, %v4262
  %v4264 = vpop.f32.mrb[0].mxu0
  %v4265 = vadd.f32 %v4191, %v4264
  %4266 = vdwg.mxu0
  %4267 = vrot.lane.b32.xlu0 %v3335, 16
  %v4268 = vpop.permute.xlu0 %4267
  %4269 = vrot.lane.b32.xlu0 %v3336, 16
  %v4270 = vpop.permute.xlu0 %4269
  %v4271 = vsel %vm544, %v4268, %v4270
  %v4272 = vsel %vm544, %v4270, %v4268
  %v4273 = vadd.f32 %v4272, %v551
  %v4274 = vadd.f32 %v4271, %v555
  %4275 = vrot.lane.b32.xlu0 %v3335, 112
  %v4276 = vpop.permute.xlu0 %4275
  %4277 = vrot.lane.b32.xlu0 %v3336, 112
  %v4278 = vpop.permute.xlu0 %4277
  %v4279 = vsel %vm564, %v4276, %v4278
  %v4280 = vsel %vm564, %v4278, %v4276
  %v4281 = vadd.f32 %v4279, %v571
  %v4282 = vadd.f32 %v4280, %v575
  %v4283 = vmax.f32 %v4273, %v4281
  %v4284 = vmax.f32 %v4274, %v4282
  %v4285 = vmax.f32 %v3335, %v4283
  %v4286 = vmax.f32 %v3336, %v4284
  %4287 = vrot.lane.b32.xlu0 %v3335, 32
  %v4288 = vpop.permute.xlu0 %4287
  %4289 = vrot.lane.b32.xlu0 %v3336, 32
  %v4290 = vpop.permute.xlu0 %4289
  %v4291 = vsel %vm588, %v4288, %v4290
  %v4292 = vsel %vm588, %v4290, %v4288
  %v4293 = vadd.f32 %v4292, %v595
  %v4294 = vadd.f32 %v4291, %v599
  %4295 = vrot.lane.b32.xlu0 %v3335, 96
  %v4296 = vpop.permute.xlu0 %4295
  %4297 = vrot.lane.b32.xlu0 %v3336, 96
  %v4298 = vpop.permute.xlu0 %4297
  %v4299 = vsel %vm608, %v4296, %v4298
  %v4300 = vsel %vm608, %v4298, %v4296
  %v4301 = vadd.f32 %v4299, %v615
  %v4302 = vadd.f32 %v4300, %v619
  %v4303 = vmax.f32 %v4293, %v4301
  %v4304 = vmax.f32 %v4294, %v4302
  %v4305 = vmax.f32 %v4285, %v4303
  %v4306 = vmax.f32 %v4286, %v4304
  %4307 = vrot.lane.b32.xlu0 %v4305, 1
  %v4308 = vpop.permute.xlu0 %4307
  %4309 = vrot.lane.b32.xlu0 %v4306, 1
  %v4310 = vpop.permute.xlu0 %4309
  %v4311 = vsel %vm632, %v4308, %v4310
  %v4312 = vsel %vm632, %v4310, %v4308
  %v4313 = vadd.f32 %v4312, %v639
  %v4314 = vadd.f32 %v4311, %v643
  %4315 = vrot.lane.b32.xlu0 %v4305, 127
  %v4316 = vpop.permute.xlu0 %4315
  %4317 = vrot.lane.b32.xlu0 %v4306, 127
  %v4318 = vpop.permute.xlu0 %4317
  %v4319 = vsel %vm652, %v4316, %v4318
  %v4320 = vsel %vm652, %v4318, %v4316
  %v4321 = vadd.f32 %v4319, %v659
  %v4322 = vadd.f32 %v4320, %v663
  %v4323 = vmax.f32 %v4313, %v4321
  %v4324 = vmax.f32 %v4314, %v4322
  %v4325 = vmax.f32 %v4305, %v4323
  %v4326 = vmax.f32 %v4306, %v4324
  %4327 = vrot.lane.b32.xlu0 %v4305, 2
  %v4328 = vpop.permute.xlu0 %4327
  %4329 = vrot.lane.b32.xlu0 %v4306, 2
  %v4330 = vpop.permute.xlu0 %4329
  %v4331 = vsel %vm676, %v4328, %v4330
  %v4332 = vsel %vm676, %v4330, %v4328
  %v4333 = vadd.f32 %v4332, %v683
  %v4334 = vadd.f32 %v4331, %v687
  %4335 = vrot.lane.b32.xlu0 %v4305, 126
  %v4336 = vpop.permute.xlu0 %4335
  %4337 = vrot.lane.b32.xlu0 %v4306, 126
  %v4338 = vpop.permute.xlu0 %4337
  %v4339 = vsel %vm696, %v4336, %v4338
  %v4340 = vsel %vm696, %v4338, %v4336
  %v4341 = vadd.f32 %v4339, %v703
  %v4342 = vadd.f32 %v4340, %v707
  %v4343 = vmax.f32 %v4333, %v4341
  %v4344 = vmax.f32 %v4334, %v4342
  %v4345 = vmax.f32 %v4325, %v4343
  %v4346 = vmax.f32 %v4326, %v4344
  %v4347 = vand.u32 %v4346, 4294901760
  %4348 = vmatprep.subr.mxu0 %v4347
  %v4349 = vand.u32 %v4345, 4294901760
  %4350 = vmatpush1.msra.mxu0 %v4349
  %4351 = vmatprep.subr.mxu0 0.0
  %4352 = vmatpush1.msra.mxu0 0.0
  %4353 = vmatprep.subr.mxu0 0.0
  %4354 = vmatpush1.msra.mxu0 0.0
  %4355 = vmatprep.subr.mxu0 0.0
  %4356 = vmatpush1.msra.mxu0 0.0
  %4357 = vmatprep.subr.mxu0 0.0
  %4358 = vmatpush1.msra.mxu0 0.0
  %4359 = vmatprep.subr.mxu0 0.0
  %4360 = vmatpush1.msra.mxu0 0.0
  %4361 = vmatprep.subr.mxu0 0.0
  %4362 = vmatpush1.msra.mxu0 0.0
  %4363 = vmatprep.subr.mxu0 0.0
  %4364 = vmatpush1.msra.mxu0 0.0
  %4365 = vmatprep.subr.mxu0 0.0
  %4366 = vmatpush1.msra.mxu0 0.0
  %4367 = vmatprep.subr.mxu0 0.0
  %4368 = vmatpush1.msra.mxu0 0.0
  %4369 = vmatprep.subr.mxu0 0.0
  %4370 = vmatpush1.msra.mxu0 0.0
  %4371 = vmatprep.subr.mxu0 0.0
  %4372 = vmatpush1.msra.mxu0 0.0
  %4373 = vmatprep.subr.mxu0 0.0
  %4374 = vmatpush1.msra.mxu0 0.0
  %4375 = vmatprep.subr.mxu0 0.0
  %4376 = vmatpush1.msra.mxu0 0.0
  %4377 = vmatprep.subr.mxu0 0.0
  %4378 = vmatpush1.msra.mxu0 0.0
  %4379 = vmatprep.subr.mxu0 0.0
  %4380 = vmatpush1.msra.mxu0 0.0
  %4381 = vmatprep.subr.mxu0 0.0
  %4382 = vmatpush1.msra.mxu0 0.0
  %4383 = vmatprep.subr.mxu0 0.0
  %4384 = vmatpush1.msra.mxu0 0.0
  %4385 = vmatprep.subr.mxu0 0.0
  %4386 = vmatpush1.msra.mxu0 0.0
  %4387 = vmatprep.subr.mxu0 0.0
  %4388 = vmatpush1.msra.mxu0 0.0
  %4389 = vmatprep.subr.mxu0 0.0
  %4390 = vmatpush1.msra.mxu0 0.0
  %4391 = vmatprep.subr.mxu0 0.0
  %4392 = vmatpush1.msra.mxu0 0.0
  %4393 = vmatprep.subr.mxu0 0.0
  %4394 = vmatpush1.msra.mxu0 0.0
  %4395 = vmatprep.subr.mxu0 0.0
  %4396 = vmatpush1.msra.mxu0 0.0
  %4397 = vmatprep.subr.mxu0 0.0
  %4398 = vmatpush1.msra.mxu0 0.0
  %4399 = vmatprep.subr.mxu0 0.0
  %4400 = vmatpush1.msra.mxu0 0.0
  %4401 = vmatprep.subr.mxu0 0.0
  %4402 = vmatpush1.msra.mxu0 0.0
  %4403 = vmatprep.subr.mxu0 0.0
  %4404 = vmatpush1.msra.mxu0 0.0
  %4405 = vmatprep.subr.mxu0 0.0
  %4406 = vmatpush1.msra.mxu0 0.0
  %4407 = vmatprep.subr.mxu0 0.0
  %4408 = vmatpush1.msra.mxu0 0.0
  %4409 = vmatprep.subr.mxu0 0.0
  %4410 = vmatpush1.msra.mxu0 0.0
  %4411 = vmatprep.subr.mxu0 0.0
  %4412 = vmatpush1.msra.mxu0 0.0
  %4413 = vmatprep.mubr.f32.mxu0 0.0
  %v4414 = vand.u32 %v1733, 4294901760
  %v4415 = vsub.f32 %v1733, %v4414
  %v4416 = vand.u32 %v4415, 4294901760
  %v4417 = vsub.f32 %v4415, %v4416
  %v4418 = vand.u32 %v4417, 4294901760
  %4419 = vmatmul.mubr.f32.gmra.mrb[0].mxu0 %v4418
  %v4420 = vpop.f32.mrb[0].mxu0
  %v4421 = vadd.f32 0.0, %v4420
  %v4422 = vpop.f32.mrb[0].mxu0
  %v4423 = vadd.f32 0.0, %v4422
  %4424 = vdwg.mxu0
  %v4425 = vand.u32 %v4346, 4294901760
  %v4426 = vsub.f32 %v4346, %v4425
  %v4427 = vand.u32 %v4426, 4294901760
  %v4428 = vsub.f32 %v4426, %v4427
  %v4429 = vand.u32 %v4428, 4294901760
  %4430 = vmatprep.subr.mxu0 %v4429
  %v4431 = vand.u32 %v4345, 4294901760
  %v4432 = vsub.f32 %v4345, %v4431
  %v4433 = vand.u32 %v4432, 4294901760
  %v4434 = vsub.f32 %v4432, %v4433
  %v4435 = vand.u32 %v4434, 4294901760
  %4436 = vmatpush1.msra.mxu0 %v4435
  %4437 = vmatprep.subr.mxu0 0.0
  %4438 = vmatpush1.msra.mxu0 0.0
  %4439 = vmatprep.subr.mxu0 0.0
  %4440 = vmatpush1.msra.mxu0 0.0
  %4441 = vmatprep.subr.mxu0 0.0
  %4442 = vmatpush1.msra.mxu0 0.0
  %4443 = vmatprep.subr.mxu0 0.0
  %4444 = vmatpush1.msra.mxu0 0.0
  %4445 = vmatprep.subr.mxu0 0.0
  %4446 = vmatpush1.msra.mxu0 0.0
  %4447 = vmatprep.subr.mxu0 0.0
  %4448 = vmatpush1.msra.mxu0 0.0
  %4449 = vmatprep.subr.mxu0 0.0
  %4450 = vmatpush1.msra.mxu0 0.0
  %4451 = vmatprep.subr.mxu0 0.0
  %4452 = vmatpush1.msra.mxu0 0.0
  %4453 = vmatprep.subr.mxu0 0.0
  %4454 = vmatpush1.msra.mxu0 0.0
  %4455 = vmatprep.subr.mxu0 0.0
  %4456 = vmatpush1.msra.mxu0 0.0
  %4457 = vmatprep.subr.mxu0 0.0
  %4458 = vmatpush1.msra.mxu0 0.0
  %4459 = vmatprep.subr.mxu0 0.0
  %4460 = vmatpush1.msra.mxu0 0.0
  %4461 = vmatprep.subr.mxu0 0.0
  %4462 = vmatpush1.msra.mxu0 0.0
  %4463 = vmatprep.subr.mxu0 0.0
  %4464 = vmatpush1.msra.mxu0 0.0
  %4465 = vmatprep.subr.mxu0 0.0
  %4466 = vmatpush1.msra.mxu0 0.0
  %4467 = vmatprep.subr.mxu0 0.0
  %4468 = vmatpush1.msra.mxu0 0.0
  %4469 = vmatprep.subr.mxu0 0.0
  %4470 = vmatpush1.msra.mxu0 0.0
  %4471 = vmatprep.subr.mxu0 0.0
  %4472 = vmatpush1.msra.mxu0 0.0
  %4473 = vmatprep.subr.mxu0 0.0
  %4474 = vmatpush1.msra.mxu0 0.0
  %4475 = vmatprep.subr.mxu0 0.0
  %4476 = vmatpush1.msra.mxu0 0.0
  %4477 = vmatprep.subr.mxu0 0.0
  %4478 = vmatpush1.msra.mxu0 0.0
  %4479 = vmatprep.subr.mxu0 0.0
  %4480 = vmatpush1.msra.mxu0 0.0
  %4481 = vmatprep.subr.mxu0 0.0
  %4482 = vmatpush1.msra.mxu0 0.0
  %4483 = vmatprep.subr.mxu0 0.0
  %4484 = vmatpush1.msra.mxu0 0.0
  %4485 = vmatprep.subr.mxu0 0.0
  %4486 = vmatpush1.msra.mxu0 0.0
  %4487 = vmatprep.subr.mxu0 0.0
  %4488 = vmatpush1.msra.mxu0 0.0
  %4489 = vmatprep.subr.mxu0 0.0
  %4490 = vmatpush1.msra.mxu0 0.0
  %4491 = vmatprep.subr.mxu0 0.0
  %4492 = vmatpush1.msra.mxu0 0.0
  %4493 = vmatprep.subr.mxu0 0.0
  %4494 = vmatpush1.msra.mxu0 0.0
  %4495 = vmatprep.subr.mxu0 0.0
  %4496 = vmatpush1.msra.mxu0 0.0
  %4497 = vmatprep.subr.mxu0 0.0
  %4498 = vmatpush1.msra.mxu0 0.0
  %4499 = vmatprep.mubr.f32.mxu0 0.0
  %v4500 = vand.u32 %v1733, 4294901760
  %4501 = vmatmul.mubr.f32.gmra.mrb[0].mxu0 %v4500
  %v4502 = vpop.f32.mrb[0].mxu0
  %v4503 = vadd.f32 %v4421, %v4502
  %v4504 = vpop.f32.mrb[0].mxu0
  %v4505 = vadd.f32 %v4423, %v4504
  %4506 = vdwg.mxu0
  %v4507 = vand.u32 %v4346, 4294901760
  %v4508 = vsub.f32 %v4346, %v4507
  %4509 = vmatprep.subr.mxu0 %v4508
  %v4510 = vand.u32 %v4345, 4294901760
  %v4511 = vsub.f32 %v4345, %v4510
  %4512 = vmatpush1.msra.mxu0 %v4511
  %4513 = vmatprep.subr.mxu0 0.0
  %4514 = vmatpush1.msra.mxu0 0.0
  %4515 = vmatprep.subr.mxu0 0.0
  %4516 = vmatpush1.msra.mxu0 0.0
  %4517 = vmatprep.subr.mxu0 0.0
  %4518 = vmatpush1.msra.mxu0 0.0
  %4519 = vmatprep.subr.mxu0 0.0
  %4520 = vmatpush1.msra.mxu0 0.0
  %4521 = vmatprep.subr.mxu0 0.0
  %4522 = vmatpush1.msra.mxu0 0.0
  %4523 = vmatprep.subr.mxu0 0.0
  %4524 = vmatpush1.msra.mxu0 0.0
  %4525 = vmatprep.subr.mxu0 0.0
  %4526 = vmatpush1.msra.mxu0 0.0
  %4527 = vmatprep.subr.mxu0 0.0
  %4528 = vmatpush1.msra.mxu0 0.0
  %4529 = vmatprep.subr.mxu0 0.0
  %4530 = vmatpush1.msra.mxu0 0.0
  %4531 = vmatprep.subr.mxu0 0.0
  %4532 = vmatpush1.msra.mxu0 0.0
  %4533 = vmatprep.subr.mxu0 0.0
  %4534 = vmatpush1.msra.mxu0 0.0
  %4535 = vmatprep.subr.mxu0 0.0
  %4536 = vmatpush1.msra.mxu0 0.0
  %4537 = vmatprep.subr.mxu0 0.0
  %4538 = vmatpush1.msra.mxu0 0.0
  %4539 = vmatprep.subr.mxu0 0.0
  %4540 = vmatpush1.msra.mxu0 0.0
  %4541 = vmatprep.subr.mxu0 0.0
  %4542 = vmatpush1.msra.mxu0 0.0
  %4543 = vmatprep.subr.mxu0 0.0
  %4544 = vmatpush1.msra.mxu0 0.0
  %4545 = vmatprep.subr.mxu0 0.0
  %4546 = vmatpush1.msra.mxu0 0.0
  %4547 = vmatprep.subr.mxu0 0.0
  %4548 = vmatpush1.msra.mxu0 0.0
  %4549 = vmatprep.subr.mxu0 0.0
  %4550 = vmatpush1.msra.mxu0 0.0
  %4551 = vmatprep.subr.mxu0 0.0
  %4552 = vmatpush1.msra.mxu0 0.0
  %4553 = vmatprep.subr.mxu0 0.0
  %4554 = vmatpush1.msra.mxu0 0.0
  %4555 = vmatprep.subr.mxu0 0.0
  %4556 = vmatpush1.msra.mxu0 0.0
  %4557 = vmatprep.subr.mxu0 0.0
  %4558 = vmatpush1.msra.mxu0 0.0
  %4559 = vmatprep.subr.mxu0 0.0
  %4560 = vmatpush1.msra.mxu0 0.0
  %4561 = vmatprep.subr.mxu0 0.0
  %4562 = vmatpush1.msra.mxu0 0.0
  %4563 = vmatprep.subr.mxu0 0.0
  %4564 = vmatpush1.msra.mxu0 0.0
  %4565 = vmatprep.subr.mxu0 0.0
  %4566 = vmatpush1.msra.mxu0 0.0
  %4567 = vmatprep.subr.mxu0 0.0
  %4568 = vmatpush1.msra.mxu0 0.0
  %4569 = vmatprep.subr.mxu0 0.0
  %4570 = vmatpush1.msra.mxu0 0.0
  %4571 = vmatprep.subr.mxu0 0.0
  %4572 = vmatpush1.msra.mxu0 0.0
  %4573 = vmatprep.subr.mxu0 0.0
  %4574 = vmatpush1.msra.mxu0 0.0
  %4575 = vmatprep.mubr.f32.mxu0 0.0
  %v4576 = vand.u32 %v1733, 4294901760
  %v4577 = vsub.f32 %v1733, %v4576
  %4578 = vmatmul.mubr.f32.gmra.mrb[0].mxu0 %v4577
  %v4579 = vpop.f32.mrb[0].mxu0
  %v4580 = vadd.f32 %v4503, %v4579
  %v4581 = vpop.f32.mrb[0].mxu0
  %v4582 = vadd.f32 %v4505, %v4581
  %4583 = vdwg.mxu0
  %v4584 = vand.u32 %v4346, 4294901760
  %4585 = vmatprep.subr.mxu0 %v4584
  %v4586 = vand.u32 %v4345, 4294901760
  %4587 = vmatpush1.msra.mxu0 %v4586
  %4588 = vmatprep.subr.mxu0 0.0
  %4589 = vmatpush1.msra.mxu0 0.0
  %4590 = vmatprep.subr.mxu0 0.0
  %4591 = vmatpush1.msra.mxu0 0.0
  %4592 = vmatprep.subr.mxu0 0.0
  %4593 = vmatpush1.msra.mxu0 0.0
  %4594 = vmatprep.subr.mxu0 0.0
  %4595 = vmatpush1.msra.mxu0 0.0
  %4596 = vmatprep.subr.mxu0 0.0
  %4597 = vmatpush1.msra.mxu0 0.0
  %4598 = vmatprep.subr.mxu0 0.0
  %4599 = vmatpush1.msra.mxu0 0.0
  %4600 = vmatprep.subr.mxu0 0.0
  %4601 = vmatpush1.msra.mxu0 0.0
  %4602 = vmatprep.subr.mxu0 0.0
  %4603 = vmatpush1.msra.mxu0 0.0
  %4604 = vmatprep.subr.mxu0 0.0
  %4605 = vmatpush1.msra.mxu0 0.0
  %4606 = vmatprep.subr.mxu0 0.0
  %4607 = vmatpush1.msra.mxu0 0.0
  %4608 = vmatprep.subr.mxu0 0.0
  %4609 = vmatpush1.msra.mxu0 0.0
  %4610 = vmatprep.subr.mxu0 0.0
  %4611 = vmatpush1.msra.mxu0 0.0
  %4612 = vmatprep.subr.mxu0 0.0
  %4613 = vmatpush1.msra.mxu0 0.0
  %4614 = vmatprep.subr.mxu0 0.0
  %4615 = vmatpush1.msra.mxu0 0.0
  %4616 = vmatprep.subr.mxu0 0.0
  %4617 = vmatpush1.msra.mxu0 0.0
  %4618 = vmatprep.subr.mxu0 0.0
  %4619 = vmatpush1.msra.mxu0 0.0
  %4620 = vmatprep.subr.mxu0 0.0
  %4621 = vmatpush1.msra.mxu0 0.0
  %4622 = vmatprep.subr.mxu0 0.0
  %4623 = vmatpush1.msra.mxu0 0.0
  %4624 = vmatprep.subr.mxu0 0.0
  %4625 = vmatpush1.msra.mxu0 0.0
  %4626 = vmatprep.subr.mxu0 0.0
  %4627 = vmatpush1.msra.mxu0 0.0
  %4628 = vmatprep.subr.mxu0 0.0
  %4629 = vmatpush1.msra.mxu0 0.0
  %4630 = vmatprep.subr.mxu0 0.0
  %4631 = vmatpush1.msra.mxu0 0.0
  %4632 = vmatprep.subr.mxu0 0.0
  %4633 = vmatpush1.msra.mxu0 0.0
  %4634 = vmatprep.subr.mxu0 0.0
  %4635 = vmatpush1.msra.mxu0 0.0
  %4636 = vmatprep.subr.mxu0 0.0
  %4637 = vmatpush1.msra.mxu0 0.0
  %4638 = vmatprep.subr.mxu0 0.0
  %4639 = vmatpush1.msra.mxu0 0.0
  %4640 = vmatprep.subr.mxu0 0.0
  %4641 = vmatpush1.msra.mxu0 0.0
  %4642 = vmatprep.subr.mxu0 0.0
  %4643 = vmatpush1.msra.mxu0 0.0
  %4644 = vmatprep.subr.mxu0 0.0
  %4645 = vmatpush1.msra.mxu0 0.0
  %4646 = vmatprep.subr.mxu0 0.0
  %4647 = vmatpush1.msra.mxu0 0.0
  %4648 = vmatprep.subr.mxu0 0.0
  %4649 = vmatpush1.msra.mxu0 0.0
  %4650 = vmatprep.mubr.f32.mxu0 0.0
  %v4651 = vand.u32 %v1733, 4294901760
  %v4652 = vsub.f32 %v1733, %v4651
  %v4653 = vand.u32 %v4652, 4294901760
  %4654 = vmatmul.mubr.f32.gmra.mrb[0].mxu0 %v4653
  %v4655 = vpop.f32.mrb[0].mxu0
  %v4656 = vadd.f32 %v4580, %v4655
  %v4657 = vpop.f32.mrb[0].mxu0
  %v4658 = vadd.f32 %v4582, %v4657
  %4659 = vdwg.mxu0
  %v4660 = vand.u32 %v4346, 4294901760
  %v4661 = vsub.f32 %v4346, %v4660
  %v4662 = vand.u32 %v4661, 4294901760
  %4663 = vmatprep.subr.mxu0 %v4662
  %v4664 = vand.u32 %v4345, 4294901760
  %v4665 = vsub.f32 %v4345, %v4664
  %v4666 = vand.u32 %v4665, 4294901760
  %4667 = vmatpush1.msra.mxu0 %v4666
  %4668 = vmatprep.subr.mxu0 0.0
  %4669 = vmatpush1.msra.mxu0 0.0
  %4670 = vmatprep.subr.mxu0 0.0
  %4671 = vmatpush1.msra.mxu0 0.0
  %4672 = vmatprep.subr.mxu0 0.0
  %4673 = vmatpush1.msra.mxu0 0.0
  %4674 = vmatprep.subr.mxu0 0.0
  %4675 = vmatpush1.msra.mxu0 0.0
  %4676 = vmatprep.subr.mxu0 0.0
  %4677 = vmatpush1.msra.mxu0 0.0
  %4678 = vmatprep.subr.mxu0 0.0
  %4679 = vmatpush1.msra.mxu0 0.0
  %4680 = vmatprep.subr.mxu0 0.0
  %4681 = vmatpush1.msra.mxu0 0.0
  %4682 = vmatprep.subr.mxu0 0.0
  %4683 = vmatpush1.msra.mxu0 0.0
  %4684 = vmatprep.subr.mxu0 0.0
  %4685 = vmatpush1.msra.mxu0 0.0
  %4686 = vmatprep.subr.mxu0 0.0
  %4687 = vmatpush1.msra.mxu0 0.0
  %4688 = vmatprep.subr.mxu0 0.0
  %4689 = vmatpush1.msra.mxu0 0.0
  %4690 = vmatprep.subr.mxu0 0.0
  %4691 = vmatpush1.msra.mxu0 0.0
  %4692 = vmatprep.subr.mxu0 0.0
  %4693 = vmatpush1.msra.mxu0 0.0
  %4694 = vmatprep.subr.mxu0 0.0
  %4695 = vmatpush1.msra.mxu0 0.0
  %4696 = vmatprep.subr.mxu0 0.0
  %4697 = vmatpush1.msra.mxu0 0.0
  %4698 = vmatprep.subr.mxu0 0.0
  %4699 = vmatpush1.msra.mxu0 0.0
  %4700 = vmatprep.subr.mxu0 0.0
  %4701 = vmatpush1.msra.mxu0 0.0
  %4702 = vmatprep.subr.mxu0 0.0
  %4703 = vmatpush1.msra.mxu0 0.0
  %4704 = vmatprep.subr.mxu0 0.0
  %4705 = vmatpush1.msra.mxu0 0.0
  %4706 = vmatprep.subr.mxu0 0.0
  %4707 = vmatpush1.msra.mxu0 0.0
  %4708 = vmatprep.subr.mxu0 0.0
  %4709 = vmatpush1.msra.mxu0 0.0
  %4710 = vmatprep.subr.mxu0 0.0
  %4711 = vmatpush1.msra.mxu0 0.0
  %4712 = vmatprep.subr.mxu0 0.0
  %4713 = vmatpush1.msra.mxu0 0.0
  %4714 = vmatprep.subr.mxu0 0.0
  %4715 = vmatpush1.msra.mxu0 0.0
  %4716 = vmatprep.subr.mxu0 0.0
  %4717 = vmatpush1.msra.mxu0 0.0
  %4718 = vmatprep.subr.mxu0 0.0
  %4719 = vmatpush1.msra.mxu0 0.0
  %4720 = vmatprep.subr.mxu0 0.0
  %4721 = vmatpush1.msra.mxu0 0.0
  %4722 = vmatprep.subr.mxu0 0.0
  %4723 = vmatpush1.msra.mxu0 0.0
  %4724 = vmatprep.subr.mxu0 0.0
  %4725 = vmatpush1.msra.mxu0 0.0
  %4726 = vmatprep.subr.mxu0 0.0
  %4727 = vmatpush1.msra.mxu0 0.0
  %4728 = vmatprep.subr.mxu0 0.0
  %4729 = vmatpush1.msra.mxu0 0.0
  %4730 = vmatprep.mubr.f32.mxu0 0.0
  %v4731 = vand.u32 %v1733, 4294901760
  %4732 = vmatmul.mubr.f32.gmra.mrb[0].mxu0 %v4731
  %v4733 = vpop.f32.mrb[0].mxu0
  %v4734 = vadd.f32 %v4656, %v4733
  %v4735 = vpop.f32.mrb[0].mxu0
  %v4736 = vadd.f32 %v4658, %v4735
  %4737 = vdwg.mxu0
  %v4738 = vand.u32 %v4346, 4294901760
  %4739 = vmatprep.subr.mxu0 %v4738
  %v4740 = vand.u32 %v4345, 4294901760
  %4741 = vmatpush1.msra.mxu0 %v4740
  %4742 = vmatprep.subr.mxu0 0.0
  %4743 = vmatpush1.msra.mxu0 0.0
  %4744 = vmatprep.subr.mxu0 0.0
  %4745 = vmatpush1.msra.mxu0 0.0
  %4746 = vmatprep.subr.mxu0 0.0
  %4747 = vmatpush1.msra.mxu0 0.0
  %4748 = vmatprep.subr.mxu0 0.0
  %4749 = vmatpush1.msra.mxu0 0.0
  %4750 = vmatprep.subr.mxu0 0.0
  %4751 = vmatpush1.msra.mxu0 0.0
  %4752 = vmatprep.subr.mxu0 0.0
  %4753 = vmatpush1.msra.mxu0 0.0
  %4754 = vmatprep.subr.mxu0 0.0
  %4755 = vmatpush1.msra.mxu0 0.0
  %4756 = vmatprep.subr.mxu0 0.0
  %4757 = vmatpush1.msra.mxu0 0.0
  %4758 = vmatprep.subr.mxu0 0.0
  %4759 = vmatpush1.msra.mxu0 0.0
  %4760 = vmatprep.subr.mxu0 0.0
  %4761 = vmatpush1.msra.mxu0 0.0
  %4762 = vmatprep.subr.mxu0 0.0
  %4763 = vmatpush1.msra.mxu0 0.0
  %4764 = vmatprep.subr.mxu0 0.0
  %4765 = vmatpush1.msra.mxu0 0.0
  %4766 = vmatprep.subr.mxu0 0.0
  %4767 = vmatpush1.msra.mxu0 0.0
  %4768 = vmatprep.subr.mxu0 0.0
  %4769 = vmatpush1.msra.mxu0 0.0
  %4770 = vmatprep.subr.mxu0 0.0
  %4771 = vmatpush1.msra.mxu0 0.0
  %4772 = vmatprep.subr.mxu0 0.0
  %4773 = vmatpush1.msra.mxu0 0.0
  %4774 = vmatprep.subr.mxu0 0.0
  %4775 = vmatpush1.msra.mxu0 0.0
  %4776 = vmatprep.subr.mxu0 0.0
  %4777 = vmatpush1.msra.mxu0 0.0
  %4778 = vmatprep.subr.mxu0 0.0
  %4779 = vmatpush1.msra.mxu0 0.0
  %4780 = vmatprep.subr.mxu0 0.0
  %4781 = vmatpush1.msra.mxu0 0.0
  %4782 = vmatprep.subr.mxu0 0.0
  %4783 = vmatpush1.msra.mxu0 0.0
  %4784 = vmatprep.subr.mxu0 0.0
  %4785 = vmatpush1.msra.mxu0 0.0
  %4786 = vmatprep.subr.mxu0 0.0
  %4787 = vmatpush1.msra.mxu0 0.0
  %4788 = vmatprep.subr.mxu0 0.0
  %4789 = vmatpush1.msra.mxu0 0.0
  %4790 = vmatprep.subr.mxu0 0.0
  %4791 = vmatpush1.msra.mxu0 0.0
  %4792 = vmatprep.subr.mxu0 0.0
  %4793 = vmatpush1.msra.mxu0 0.0
  %4794 = vmatprep.subr.mxu0 0.0
  %4795 = vmatpush1.msra.mxu0 0.0
  %4796 = vmatprep.subr.mxu0 0.0
  %4797 = vmatpush1.msra.mxu0 0.0
  %4798 = vmatprep.subr.mxu0 0.0
  %4799 = vmatpush1.msra.mxu0 0.0
  %4800 = vmatprep.subr.mxu0 0.0
  %4801 = vmatpush1.msra.mxu0 0.0
  %4802 = vmatprep.subr.mxu0 0.0
  %4803 = vmatpush1.msra.mxu0 0.0
  %4804 = vmatprep.mubr.f32.mxu0 0.0
  %v4805 = vand.u32 %v1733, 4294901760
  %4806 = vmatmul.mubr.f32.gmra.mrb[0].mxu0 %v4805
  %v4807 = vpop.f32.mrb[0].mxu0
  %v4808 = vadd.f32 %v4734, %v4807
  %v4809 = vpop.f32.mrb[0].mxu0
  %v4810 = vadd.f32 %v4736, %v4809
  %4811 = vdwg.mxu0
  %v4812 = vadd.f32 %v4263, %v4808
  %v4813 = vadd.f32 %v4265, %v4810
  %4814 = vrot.lane.b32.xlu0 %v4345, 16
  %v4815 = vpop.permute.xlu0 %4814
  %4816 = vrot.lane.b32.xlu0 %v4346, 16
  %v4817 = vpop.permute.xlu0 %4816
  %v4818 = vsel %vm544, %v4815, %v4817
  %v4819 = vsel %vm544, %v4817, %v4815
  %v4820 = vadd.f32 %v4819, %v551
  %v4821 = vadd.f32 %v4818, %v555
  %4822 = vrot.lane.b32.xlu0 %v4345, 112
  %v4823 = vpop.permute.xlu0 %4822
  %4824 = vrot.lane.b32.xlu0 %v4346, 112
  %v4825 = vpop.permute.xlu0 %4824
  %v4826 = vsel %vm564, %v4823, %v4825
  %v4827 = vsel %vm564, %v4825, %v4823
  %v4828 = vadd.f32 %v4826, %v571
  %v4829 = vadd.f32 %v4827, %v575
  %v4830 = vmax.f32 %v4820, %v4828
  %v4831 = vmax.f32 %v4821, %v4829
  %v4832 = vmax.f32 %v4345, %v4830
  %v4833 = vmax.f32 %v4346, %v4831
  %4834 = vrot.lane.b32.xlu0 %v4345, 32
  %v4835 = vpop.permute.xlu0 %4834
  %4836 = vrot.lane.b32.xlu0 %v4346, 32
  %v4837 = vpop.permute.xlu0 %4836
  %v4838 = vsel %vm588, %v4835, %v4837
  %v4839 = vsel %vm588, %v4837, %v4835
  %v4840 = vadd.f32 %v4839, %v595
  %v4841 = vadd.f32 %v4838, %v599
  %4842 = vrot.lane.b32.xlu0 %v4345, 96
  %v4843 = vpop.permute.xlu0 %4842
  %4844 = vrot.lane.b32.xlu0 %v4346, 96
  %v4845 = vpop.permute.xlu0 %4844
  %v4846 = vsel %vm608, %v4843, %v4845
  %v4847 = vsel %vm608, %v4845, %v4843
  %v4848 = vadd.f32 %v4846, %v615
  %v4849 = vadd.f32 %v4847, %v619
  %v4850 = vmax.f32 %v4840, %v4848
  %v4851 = vmax.f32 %v4841, %v4849
  %v4852 = vmax.f32 %v4832, %v4850
  %v4853 = vmax.f32 %v4833, %v4851
  %4854 = vrot.lane.b32.xlu0 %v4852, 1
  %v4855 = vpop.permute.xlu0 %4854
  %4856 = vrot.lane.b32.xlu0 %v4853, 1
  %v4857 = vpop.permute.xlu0 %4856
  %v4858 = vsel %vm632, %v4855, %v4857
  %v4859 = vsel %vm632, %v4857, %v4855
  %v4860 = vadd.f32 %v4859, %v639
  %v4861 = vadd.f32 %v4858, %v643
  %4862 = vrot.lane.b32.xlu0 %v4852, 127
  %v4863 = vpop.permute.xlu0 %4862
  %4864 = vrot.lane.b32.xlu0 %v4853, 127
  %v4865 = vpop.permute.xlu0 %4864
  %v4866 = vsel %vm652, %v4863, %v4865
  %v4867 = vsel %vm652, %v4865, %v4863
  %v4868 = vadd.f32 %v4866, %v659
  %v4869 = vadd.f32 %v4867, %v663
  %v4870 = vmax.f32 %v4860, %v4868
  %v4871 = vmax.f32 %v4861, %v4869
  %v4872 = vmax.f32 %v4852, %v4870
  %v4873 = vmax.f32 %v4853, %v4871
  %4874 = vrot.lane.b32.xlu0 %v4852, 2
  %v4875 = vpop.permute.xlu0 %4874
  %4876 = vrot.lane.b32.xlu0 %v4853, 2
  %v4877 = vpop.permute.xlu0 %4876
  %v4878 = vsel %vm676, %v4875, %v4877
  %v4879 = vsel %vm676, %v4877, %v4875
  %v4880 = vadd.f32 %v4879, %v683
  %v4881 = vadd.f32 %v4878, %v687
  %4882 = vrot.lane.b32.xlu0 %v4852, 126
  %v4883 = vpop.permute.xlu0 %4882
  %4884 = vrot.lane.b32.xlu0 %v4853, 126
  %v4885 = vpop.permute.xlu0 %4884
  %v4886 = vsel %vm696, %v4883, %v4885
  %v4887 = vsel %vm696, %v4885, %v4883
  %v4888 = vadd.f32 %v4886, %v703
  %v4889 = vadd.f32 %v4887, %v707
  %v4890 = vmax.f32 %v4880, %v4888
  %v4891 = vmax.f32 %v4881, %v4889
  %v4892 = vmax.f32 %v4872, %v4890
  %v4893 = vmax.f32 %v4873, %v4891
  %v4894 = vand.u32 %v4893, 4294901760
  %4895 = vmatprep.subr.mxu0 %v4894
  %v4896 = vand.u32 %v4892, 4294901760
  %4897 = vmatpush1.msra.mxu0 %v4896
  %4898 = vmatprep.subr.mxu0 0.0
  %4899 = vmatpush1.msra.mxu0 0.0
  %4900 = vmatprep.subr.mxu0 0.0
  %4901 = vmatpush1.msra.mxu0 0.0
  %4902 = vmatprep.subr.mxu0 0.0
  %4903 = vmatpush1.msra.mxu0 0.0
  %4904 = vmatprep.subr.mxu0 0.0
  %4905 = vmatpush1.msra.mxu0 0.0
  %4906 = vmatprep.subr.mxu0 0.0
  %4907 = vmatpush1.msra.mxu0 0.0
  %4908 = vmatprep.subr.mxu0 0.0
  %4909 = vmatpush1.msra.mxu0 0.0
  %4910 = vmatprep.subr.mxu0 0.0
  %4911 = vmatpush1.msra.mxu0 0.0
  %4912 = vmatprep.subr.mxu0 0.0
  %4913 = vmatpush1.msra.mxu0 0.0
  %4914 = vmatprep.subr.mxu0 0.0
  %4915 = vmatpush1.msra.mxu0 0.0
  %4916 = vmatprep.subr.mxu0 0.0
  %4917 = vmatpush1.msra.mxu0 0.0
  %4918 = vmatprep.subr.mxu0 0.0
  %4919 = vmatpush1.msra.mxu0 0.0
  %4920 = vmatprep.subr.mxu0 0.0
  %4921 = vmatpush1.msra.mxu0 0.0
  %4922 = vmatprep.subr.mxu0 0.0
  %4923 = vmatpush1.msra.mxu0 0.0
  %4924 = vmatprep.subr.mxu0 0.0
  %4925 = vmatpush1.msra.mxu0 0.0
  %4926 = vmatprep.subr.mxu0 0.0
  %4927 = vmatpush1.msra.mxu0 0.0
  %4928 = vmatprep.subr.mxu0 0.0
  %4929 = vmatpush1.msra.mxu0 0.0
  %4930 = vmatprep.subr.mxu0 0.0
  %4931 = vmatpush1.msra.mxu0 0.0
  %4932 = vmatprep.subr.mxu0 0.0
  %4933 = vmatpush1.msra.mxu0 0.0
  %4934 = vmatprep.subr.mxu0 0.0
  %4935 = vmatpush1.msra.mxu0 0.0
  %4936 = vmatprep.subr.mxu0 0.0
  %4937 = vmatpush1.msra.mxu0 0.0
  %4938 = vmatprep.subr.mxu0 0.0
  %4939 = vmatpush1.msra.mxu0 0.0
  %4940 = vmatprep.subr.mxu0 0.0
  %4941 = vmatpush1.msra.mxu0 0.0
  %4942 = vmatprep.subr.mxu0 0.0
  %4943 = vmatpush1.msra.mxu0 0.0
  %4944 = vmatprep.subr.mxu0 0.0
  %4945 = vmatpush1.msra.mxu0 0.0
  %4946 = vmatprep.subr.mxu0 0.0
  %4947 = vmatpush1.msra.mxu0 0.0
  %4948 = vmatprep.subr.mxu0 0.0
  %4949 = vmatpush1.msra.mxu0 0.0
  %4950 = vmatprep.subr.mxu0 0.0
  %4951 = vmatpush1.msra.mxu0 0.0
  %4952 = vmatprep.subr.mxu0 0.0
  %4953 = vmatpush1.msra.mxu0 0.0
  %4954 = vmatprep.subr.mxu0 0.0
  %4955 = vmatpush1.msra.mxu0 0.0
  %4956 = vmatprep.subr.mxu0 0.0
  %4957 = vmatpush1.msra.mxu0 0.0
  %4958 = vmatprep.subr.mxu0 0.0
  %4959 = vmatpush1.msra.mxu0 0.0
  %4960 = vmatprep.mubr.f32.mxu0 0.0
  %v4961 = vand.u32 %v2283, 4294901760
  %v4962 = vsub.f32 %v2283, %v4961
  %v4963 = vand.u32 %v4962, 4294901760
  %v4964 = vsub.f32 %v4962, %v4963
  %v4965 = vand.u32 %v4964, 4294901760
  %4966 = vmatmul.mubr.f32.gmra.mrb[0].mxu0 %v4965
  %v4967 = vpop.f32.mrb[0].mxu0
  %v4968 = vadd.f32 0.0, %v4967
  %v4969 = vpop.f32.mrb[0].mxu0
  %v4970 = vadd.f32 0.0, %v4969
  %4971 = vdwg.mxu0
  %v4972 = vand.u32 %v4893, 4294901760
  %v4973 = vsub.f32 %v4893, %v4972
  %v4974 = vand.u32 %v4973, 4294901760
  %v4975 = vsub.f32 %v4973, %v4974
  %v4976 = vand.u32 %v4975, 4294901760
  %4977 = vmatprep.subr.mxu0 %v4976
  %v4978 = vand.u32 %v4892, 4294901760
  %v4979 = vsub.f32 %v4892, %v4978
  %v4980 = vand.u32 %v4979, 4294901760
  %v4981 = vsub.f32 %v4979, %v4980
  %v4982 = vand.u32 %v4981, 4294901760
  %4983 = vmatpush1.msra.mxu0 %v4982
  %4984 = vmatprep.subr.mxu0 0.0
  %4985 = vmatpush1.msra.mxu0 0.0
  %4986 = vmatprep.subr.mxu0 0.0
  %4987 = vmatpush1.msra.mxu0 0.0
  %4988 = vmatprep.subr.mxu0 0.0
  %4989 = vmatpush1.msra.mxu0 0.0
  %4990 = vmatprep.subr.mxu0 0.0
  %4991 = vmatpush1.msra.mxu0 0.0
  %4992 = vmatprep.subr.mxu0 0.0
  %4993 = vmatpush1.msra.mxu0 0.0
  %4994 = vmatprep.subr.mxu0 0.0
  %4995 = vmatpush1.msra.mxu0 0.0
  %4996 = vmatprep.subr.mxu0 0.0
  %4997 = vmatpush1.msra.mxu0 0.0
  %4998 = vmatprep.subr.mxu0 0.0
  %4999 = vmatpush1.msra.mxu0 0.0
  %5000 = vmatprep.subr.mxu0 0.0
  %5001 = vmatpush1.msra.mxu0 0.0
  %5002 = vmatprep.subr.mxu0 0.0
  %5003 = vmatpush1.msra.mxu0 0.0
  %5004 = vmatprep.subr.mxu0 0.0
  %5005 = vmatpush1.msra.mxu0 0.0
  %5006 = vmatprep.subr.mxu0 0.0
  %5007 = vmatpush1.msra.mxu0 0.0
  %5008 = vmatprep.subr.mxu0 0.0
  %5009 = vmatpush1.msra.mxu0 0.0
  %5010 = vmatprep.subr.mxu0 0.0
  %5011 = vmatpush1.msra.mxu0 0.0
  %5012 = vmatprep.subr.mxu0 0.0
  %5013 = vmatpush1.msra.mxu0 0.0
  %5014 = vmatprep.subr.mxu0 0.0
  %5015 = vmatpush1.msra.mxu0 0.0
  %5016 = vmatprep.subr.mxu0 0.0
  %5017 = vmatpush1.msra.mxu0 0.0
  %5018 = vmatprep.subr.mxu0 0.0
  %5019 = vmatpush1.msra.mxu0 0.0
  %5020 = vmatprep.subr.mxu0 0.0
  %5021 = vmatpush1.msra.mxu0 0.0
  %5022 = vmatprep.subr.mxu0 0.0
  %5023 = vmatpush1.msra.mxu0 0.0
  %5024 = vmatprep.subr.mxu0 0.0
  %5025 = vmatpush1.msra.mxu0 0.0
  %5026 = vmatprep.subr.mxu0 0.0
  %5027 = vmatpush1.msra.mxu0 0.0
  %5028 = vmatprep.subr.mxu0 0.0
  %5029 = vmatpush1.msra.mxu0 0.0
  %5030 = vmatprep.subr.mxu0 0.0
  %5031 = vmatpush1.msra.mxu0 0.0
  %5032 = vmatprep.subr.mxu0 0.0
  %5033 = vmatpush1.msra.mxu0 0.0
  %5034 = vmatprep.subr.mxu0 0.0
  %5035 = vmatpush1.msra.mxu0 0.0
  %5036 = vmatprep.subr.mxu0 0.0
  %5037 = vmatpush1.msra.mxu0 0.0
  %5038 = vmatprep.subr.mxu0 0.0
  %5039 = vmatpush1.msra.mxu0 0.0
  %5040 = vmatprep.subr.mxu0 0.0
  %5041 = vmatpush1.msra.mxu0 0.0
  %5042 = vmatprep.subr.mxu0 0.0
  %5043 = vmatpush1.msra.mxu0 0.0
  %5044 = vmatprep.subr.mxu0 0.0
  %5045 = vmatpush1.msra.mxu0 0.0
  %5046 = vmatprep.mubr.f32.mxu0 0.0
  %v5047 = vand.u32 %v2283, 4294901760
  %5048 = vmatmul.mubr.f32.gmra.mrb[0].mxu0 %v5047
  %v5049 = vpop.f32.mrb[0].mxu0
  %v5050 = vadd.f32 %v4968, %v5049
  %v5051 = vpop.f32.mrb[0].mxu0
  %v5052 = vadd.f32 %v4970, %v5051
  %5053 = vdwg.mxu0
  %v5054 = vand.u32 %v4893, 4294901760
  %v5055 = vsub.f32 %v4893, %v5054
  %5056 = vmatprep.subr.mxu0 %v5055
  %v5057 = vand.u32 %v4892, 4294901760
  %v5058 = vsub.f32 %v4892, %v5057
  %5059 = vmatpush1.msra.mxu0 %v5058
  %5060 = vmatprep.subr.mxu0 0.0
  %5061 = vmatpush1.msra.mxu0 0.0
  %5062 = vmatprep.subr.mxu0 0.0
  %5063 = vmatpush1.msra.mxu0 0.0
  %5064 = vmatprep.subr.mxu0 0.0
  %5065 = vmatpush1.msra.mxu0 0.0
  %5066 = vmatprep.subr.mxu0 0.0
  %5067 = vmatpush1.msra.mxu0 0.0
  %5068 = vmatprep.subr.mxu0 0.0
  %5069 = vmatpush1.msra.mxu0 0.0
  %5070 = vmatprep.subr.mxu0 0.0
  %5071 = vmatpush1.msra.mxu0 0.0
  %5072 = vmatprep.subr.mxu0 0.0
  %5073 = vmatpush1.msra.mxu0 0.0
  %5074 = vmatprep.subr.mxu0 0.0
  %5075 = vmatpush1.msra.mxu0 0.0
  %5076 = vmatprep.subr.mxu0 0.0
  %5077 = vmatpush1.msra.mxu0 0.0
  %5078 = vmatprep.subr.mxu0 0.0
  %5079 = vmatpush1.msra.mxu0 0.0
  %5080 = vmatprep.subr.mxu0 0.0
  %5081 = vmatpush1.msra.mxu0 0.0
  %5082 = vmatprep.subr.mxu0 0.0
  %5083 = vmatpush1.msra.mxu0 0.0
  %5084 = vmatprep.subr.mxu0 0.0
  %5085 = vmatpush1.msra.mxu0 0.0
  %5086 = vmatprep.subr.mxu0 0.0
  %5087 = vmatpush1.msra.mxu0 0.0
  %5088 = vmatprep.subr.mxu0 0.0
  %5089 = vmatpush1.msra.mxu0 0.0
  %5090 = vmatprep.subr.mxu0 0.0
  %5091 = vmatpush1.msra.mxu0 0.0
  %5092 = vmatprep.subr.mxu0 0.0
  %5093 = vmatpush1.msra.mxu0 0.0
  %5094 = vmatprep.subr.mxu0 0.0
  %5095 = vmatpush1.msra.mxu0 0.0
  %5096 = vmatprep.subr.mxu0 0.0
  %5097 = vmatpush1.msra.mxu0 0.0
  %5098 = vmatprep.subr.mxu0 0.0
  %5099 = vmatpush1.msra.mxu0 0.0
  %5100 = vmatprep.subr.mxu0 0.0
  %5101 = vmatpush1.msra.mxu0 0.0
  %5102 = vmatprep.subr.mxu0 0.0
  %5103 = vmatpush1.msra.mxu0 0.0
  %5104 = vmatprep.subr.mxu0 0.0
  %5105 = vmatpush1.msra.mxu0 0.0
  %5106 = vmatprep.subr.mxu0 0.0
  %5107 = vmatpush1.msra.mxu0 0.0
  %5108 = vmatprep.subr.mxu0 0.0
  %5109 = vmatpush1.msra.mxu0 0.0
  %5110 = vmatprep.subr.mxu0 0.0
  %5111 = vmatpush1.msra.mxu0 0.0
  %5112 = vmatprep.subr.mxu0 0.0
  %5113 = vmatpush1.msra.mxu0 0.0
  %5114 = vmatprep.subr.mxu0 0.0
  %5115 = vmatpush1.msra.mxu0 0.0
  %5116 = vmatprep.subr.mxu0 0.0
  %5117 = vmatpush1.msra.mxu0 0.0
  %5118 = vmatprep.subr.mxu0 0.0
  %5119 = vmatpush1.msra.mxu0 0.0
  %5120 = vmatprep.subr.mxu0 0.0
  %5121 = vmatpush1.msra.mxu0 0.0
  %5122 = vmatprep.mubr.f32.mxu0 0.0
  %v5123 = vand.u32 %v2283, 4294901760
  %v5124 = vsub.f32 %v2283, %v5123
  %5125 = vmatmul.mubr.f32.gmra.mrb[0].mxu0 %v5124
  %v5126 = vpop.f32.mrb[0].mxu0
  %v5127 = vadd.f32 %v5050, %v5126
  %v5128 = vpop.f32.mrb[0].mxu0
  %v5129 = vadd.f32 %v5052, %v5128
  %5130 = vdwg.mxu0
  %v5131 = vand.u32 %v4893, 4294901760
  %5132 = vmatprep.subr.mxu0 %v5131
  %v5133 = vand.u32 %v4892, 4294901760
  %5134 = vmatpush1.msra.mxu0 %v5133
  %5135 = vmatprep.subr.mxu0 0.0
  %5136 = vmatpush1.msra.mxu0 0.0
  %5137 = vmatprep.subr.mxu0 0.0
  %5138 = vmatpush1.msra.mxu0 0.0
  %5139 = vmatprep.subr.mxu0 0.0
  %5140 = vmatpush1.msra.mxu0 0.0
  %5141 = vmatprep.subr.mxu0 0.0
  %5142 = vmatpush1.msra.mxu0 0.0
  %5143 = vmatprep.subr.mxu0 0.0
  %5144 = vmatpush1.msra.mxu0 0.0
  %5145 = vmatprep.subr.mxu0 0.0
  %5146 = vmatpush1.msra.mxu0 0.0
  %5147 = vmatprep.subr.mxu0 0.0
  %5148 = vmatpush1.msra.mxu0 0.0
  %5149 = vmatprep.subr.mxu0 0.0
  %5150 = vmatpush1.msra.mxu0 0.0
  %5151 = vmatprep.subr.mxu0 0.0
  %5152 = vmatpush1.msra.mxu0 0.0
  %5153 = vmatprep.subr.mxu0 0.0
  %5154 = vmatpush1.msra.mxu0 0.0
  %5155 = vmatprep.subr.mxu0 0.0
  %5156 = vmatpush1.msra.mxu0 0.0
  %5157 = vmatprep.subr.mxu0 0.0
  %5158 = vmatpush1.msra.mxu0 0.0
  %5159 = vmatprep.subr.mxu0 0.0
  %5160 = vmatpush1.msra.mxu0 0.0
  %5161 = vmatprep.subr.mxu0 0.0
  %5162 = vmatpush1.msra.mxu0 0.0
  %5163 = vmatprep.subr.mxu0 0.0
  %5164 = vmatpush1.msra.mxu0 0.0
  %5165 = vmatprep.subr.mxu0 0.0
  %5166 = vmatpush1.msra.mxu0 0.0
  %5167 = vmatprep.subr.mxu0 0.0
  %5168 = vmatpush1.msra.mxu0 0.0
  %5169 = vmatprep.subr.mxu0 0.0
  %5170 = vmatpush1.msra.mxu0 0.0
  %5171 = vmatprep.subr.mxu0 0.0
  %5172 = vmatpush1.msra.mxu0 0.0
  %5173 = vmatprep.subr.mxu0 0.0
  %5174 = vmatpush1.msra.mxu0 0.0
  %5175 = vmatprep.subr.mxu0 0.0
  %5176 = vmatpush1.msra.mxu0 0.0
  %5177 = vmatprep.subr.mxu0 0.0
  %5178 = vmatpush1.msra.mxu0 0.0
  %5179 = vmatprep.subr.mxu0 0.0
  %5180 = vmatpush1.msra.mxu0 0.0
  %5181 = vmatprep.subr.mxu0 0.0
  %5182 = vmatpush1.msra.mxu0 0.0
  %5183 = vmatprep.subr.mxu0 0.0
  %5184 = vmatpush1.msra.mxu0 0.0
  %5185 = vmatprep.subr.mxu0 0.0
  %5186 = vmatpush1.msra.mxu0 0.0
  %5187 = vmatprep.subr.mxu0 0.0
  %5188 = vmatpush1.msra.mxu0 0.0
  %5189 = vmatprep.subr.mxu0 0.0
  %5190 = vmatpush1.msra.mxu0 0.0
  %5191 = vmatprep.subr.mxu0 0.0
  %5192 = vmatpush1.msra.mxu0 0.0
  %5193 = vmatprep.subr.mxu0 0.0
  %5194 = vmatpush1.msra.mxu0 0.0
  %5195 = vmatprep.subr.mxu0 0.0
  %5196 = vmatpush1.msra.mxu0 0.0
  %5197 = vmatprep.mubr.f32.mxu0 0.0
  %v5198 = vand.u32 %v2283, 4294901760
  %v5199 = vsub.f32 %v2283, %v5198
  %v5200 = vand.u32 %v5199, 4294901760
  %5201 = vmatmul.mubr.f32.gmra.mrb[0].mxu0 %v5200
  %v5202 = vpop.f32.mrb[0].mxu0
  %v5203 = vadd.f32 %v5127, %v5202
  %v5204 = vpop.f32.mrb[0].mxu0
  %v5205 = vadd.f32 %v5129, %v5204
  %5206 = vdwg.mxu0
  %v5207 = vand.u32 %v4893, 4294901760
  %v5208 = vsub.f32 %v4893, %v5207
  %v5209 = vand.u32 %v5208, 4294901760
  %5210 = vmatprep.subr.mxu0 %v5209
  %v5211 = vand.u32 %v4892, 4294901760
  %v5212 = vsub.f32 %v4892, %v5211
  %v5213 = vand.u32 %v5212, 4294901760
  %5214 = vmatpush1.msra.mxu0 %v5213
  %5215 = vmatprep.subr.mxu0 0.0
  %5216 = vmatpush1.msra.mxu0 0.0
  %5217 = vmatprep.subr.mxu0 0.0
  %5218 = vmatpush1.msra.mxu0 0.0
  %5219 = vmatprep.subr.mxu0 0.0
  %5220 = vmatpush1.msra.mxu0 0.0
  %5221 = vmatprep.subr.mxu0 0.0
  %5222 = vmatpush1.msra.mxu0 0.0
  %5223 = vmatprep.subr.mxu0 0.0
  %5224 = vmatpush1.msra.mxu0 0.0
  %5225 = vmatprep.subr.mxu0 0.0
  %5226 = vmatpush1.msra.mxu0 0.0
  %5227 = vmatprep.subr.mxu0 0.0
  %5228 = vmatpush1.msra.mxu0 0.0
  %5229 = vmatprep.subr.mxu0 0.0
  %5230 = vmatpush1.msra.mxu0 0.0
  %5231 = vmatprep.subr.mxu0 0.0
  %5232 = vmatpush1.msra.mxu0 0.0
  %5233 = vmatprep.subr.mxu0 0.0
  %5234 = vmatpush1.msra.mxu0 0.0
  %5235 = vmatprep.subr.mxu0 0.0
  %5236 = vmatpush1.msra.mxu0 0.0
  %5237 = vmatprep.subr.mxu0 0.0
  %5238 = vmatpush1.msra.mxu0 0.0
  %5239 = vmatprep.subr.mxu0 0.0
  %5240 = vmatpush1.msra.mxu0 0.0
  %5241 = vmatprep.subr.mxu0 0.0
  %5242 = vmatpush1.msra.mxu0 0.0
  %5243 = vmatprep.subr.mxu0 0.0
  %5244 = vmatpush1.msra.mxu0 0.0
  %5245 = vmatprep.subr.mxu0 0.0
  %5246 = vmatpush1.msra.mxu0 0.0
  %5247 = vmatprep.subr.mxu0 0.0
  %5248 = vmatpush1.msra.mxu0 0.0
  %5249 = vmatprep.subr.mxu0 0.0
  %5250 = vmatpush1.msra.mxu0 0.0
  %5251 = vmatprep.subr.mxu0 0.0
  %5252 = vmatpush1.msra.mxu0 0.0
  %5253 = vmatprep.subr.mxu0 0.0
  %5254 = vmatpush1.msra.mxu0 0.0
  %5255 = vmatprep.subr.mxu0 0.0
  %5256 = vmatpush1.msra.mxu0 0.0
  %5257 = vmatprep.subr.mxu0 0.0
  %5258 = vmatpush1.msra.mxu0 0.0
  %5259 = vmatprep.subr.mxu0 0.0
  %5260 = vmatpush1.msra.mxu0 0.0
  %5261 = vmatprep.subr.mxu0 0.0
  %5262 = vmatpush1.msra.mxu0 0.0
  %5263 = vmatprep.subr.mxu0 0.0
  %5264 = vmatpush1.msra.mxu0 0.0
  %5265 = vmatprep.subr.mxu0 0.0
  %5266 = vmatpush1.msra.mxu0 0.0
  %5267 = vmatprep.subr.mxu0 0.0
  %5268 = vmatpush1.msra.mxu0 0.0
  %5269 = vmatprep.subr.mxu0 0.0
  %5270 = vmatpush1.msra.mxu0 0.0
  %5271 = vmatprep.subr.mxu0 0.0
  %5272 = vmatpush1.msra.mxu0 0.0
  %5273 = vmatprep.subr.mxu0 0.0
  %5274 = vmatpush1.msra.mxu0 0.0
  %5275 = vmatprep.subr.mxu0 0.0
  %5276 = vmatpush1.msra.mxu0 0.0
  %5277 = vmatprep.mubr.f32.mxu0 0.0
  %v5278 = vand.u32 %v2283, 4294901760
  %5279 = vmatmul.mubr.f32.gmra.mrb[0].mxu0 %v5278
  %v5280 = vpop.f32.mrb[0].mxu0
  %v5281 = vadd.f32 %v5203, %v5280
  %v5282 = vpop.f32.mrb[0].mxu0
  %v5283 = vadd.f32 %v5205, %v5282
  %5284 = vdwg.mxu0
  %v5285 = vand.u32 %v4893, 4294901760
  %5286 = vmatprep.subr.mxu0 %v5285
  %v5287 = vand.u32 %v4892, 4294901760
  %5288 = vmatpush1.msra.mxu0 %v5287
  %5289 = vmatprep.subr.mxu0 0.0
  %5290 = vmatpush1.msra.mxu0 0.0
  %5291 = vmatprep.subr.mxu0 0.0
  %5292 = vmatpush1.msra.mxu0 0.0
  %5293 = vmatprep.subr.mxu0 0.0
  %5294 = vmatpush1.msra.mxu0 0.0
  %5295 = vmatprep.subr.mxu0 0.0
  %5296 = vmatpush1.msra.mxu0 0.0
  %5297 = vmatprep.subr.mxu0 0.0
  %5298 = vmatpush1.msra.mxu0 0.0
  %5299 = vmatprep.subr.mxu0 0.0
  %5300 = vmatpush1.msra.mxu0 0.0
  %5301 = vmatprep.subr.mxu0 0.0
  %5302 = vmatpush1.msra.mxu0 0.0
  %5303 = vmatprep.subr.mxu0 0.0
  %5304 = vmatpush1.msra.mxu0 0.0
  %5305 = vmatprep.subr.mxu0 0.0
  %5306 = vmatpush1.msra.mxu0 0.0
  %5307 = vmatprep.subr.mxu0 0.0
  %5308 = vmatpush1.msra.mxu0 0.0
  %5309 = vmatprep.subr.mxu0 0.0
  %5310 = vmatpush1.msra.mxu0 0.0
  %5311 = vmatprep.subr.mxu0 0.0
  %5312 = vmatpush1.msra.mxu0 0.0
  %5313 = vmatprep.subr.mxu0 0.0
  %5314 = vmatpush1.msra.mxu0 0.0
  %5315 = vmatprep.subr.mxu0 0.0
  %5316 = vmatpush1.msra.mxu0 0.0
  %5317 = vmatprep.subr.mxu0 0.0
  %5318 = vmatpush1.msra.mxu0 0.0
  %5319 = vmatprep.subr.mxu0 0.0
  %5320 = vmatpush1.msra.mxu0 0.0
  %5321 = vmatprep.subr.mxu0 0.0
  %5322 = vmatpush1.msra.mxu0 0.0
  %5323 = vmatprep.subr.mxu0 0.0
  %5324 = vmatpush1.msra.mxu0 0.0
  %5325 = vmatprep.subr.mxu0 0.0
  %5326 = vmatpush1.msra.mxu0 0.0
  %5327 = vmatprep.subr.mxu0 0.0
  %5328 = vmatpush1.msra.mxu0 0.0
  %5329 = vmatprep.subr.mxu0 0.0
  %5330 = vmatpush1.msra.mxu0 0.0
  %5331 = vmatprep.subr.mxu0 0.0
  %5332 = vmatpush1.msra.mxu0 0.0
  %5333 = vmatprep.subr.mxu0 0.0
  %5334 = vmatpush1.msra.mxu0 0.0
  %5335 = vmatprep.subr.mxu0 0.0
  %5336 = vmatpush1.msra.mxu0 0.0
  %5337 = vmatprep.subr.mxu0 0.0
  %5338 = vmatpush1.msra.mxu0 0.0
  %5339 = vmatprep.subr.mxu0 0.0
  %5340 = vmatpush1.msra.mxu0 0.0
  %5341 = vmatprep.subr.mxu0 0.0
  %5342 = vmatpush1.msra.mxu0 0.0
  %5343 = vmatprep.subr.mxu0 0.0
  %5344 = vmatpush1.msra.mxu0 0.0
  %5345 = vmatprep.subr.mxu0 0.0
  %5346 = vmatpush1.msra.mxu0 0.0
  %5347 = vmatprep.subr.mxu0 0.0
  %5348 = vmatpush1.msra.mxu0 0.0
  %5349 = vmatprep.subr.mxu0 0.0
  %5350 = vmatpush1.msra.mxu0 0.0
  %5351 = vmatprep.mubr.f32.mxu0 0.0
  %v5352 = vand.u32 %v2283, 4294901760
  %5353 = vmatmul.mubr.f32.gmra.mrb[0].mxu0 %v5352
  %v5354 = vpop.f32.mrb[0].mxu0
  %v5355 = vadd.f32 %v5281, %v5354
  %v5356 = vpop.f32.mrb[0].mxu0
  %v5357 = vadd.f32 %v5283, %v5356
  %5358 = vdwg.mxu0
  %v5359 = vadd.f32 %v4812, %v5355
  %v5360 = vadd.f32 %v4813, %v5357
  %v5361 = vadd.f32 %v5359, %v2755
  %v5362 = vadd.f32 %v5360, %v2755
  %v5363 = vxor.u32 %v5361, 2147483648
  %v5364 = vxor.u32 %v5362, 2147483648
  %v5365 = vmul.f32 %v5363, 1.442695
  %v5366 = vpow.pop %v5365
  %v5367 = vmul.f32 %v5364, 1.442695
  %v5368 = vpow.pop %v5367
  %v5369 = vadd.f32 %v5366, 1.0
  %v5370 = vadd.f32 %v5368, 1.0
  %v5371 = vrcp.pop %v5369
  %v5372 = vmul.f32 1.0, %v5371
  %v5373 = vrcp.pop %v5370
  %v5374 = vmul.f32 1.0, %v5373
  %v5375 = vmul.f32 %v5361, %v5372
  %v5376 = vmul.f32 %v5362, %v5374
  %s5377 = scalar_lea.vmem %s6, 16
  %5378 = vst [vmem:[%s5377] sm:$0xff] %v5375
  %5379 = vst [vmem:[%s5377 + $0x8] sm:$0xff] %v5376
  // Predicated region
  $region26: #{spp_bottleneck.1} parent=0 // pred_check
    _
  $region27: #{spp_bottleneck.1} parent=0 // pred_check_branch
    %5381 = sbr.rel (0) target = $region29
  $region28: #{spp_bottleneck.1} parent=0 // pred_region
    _
  $region29: #{spp_bottleneck.1} parent=0 // pred_fallthru
    _
  // Predicated region
  $region30: #{spp_bottleneck.1} parent=0 // pred_check
    _
  $region31: #{spp_bottleneck.1} parent=0 // pred_check_branch
    %5383 = sbr.rel (0) target = $region33
  $region32: #{spp_bottleneck.1} parent=0 // pred_region
    _
  $region33: #{spp_bottleneck.1} parent=0 // pred_fallthru
    _

</llo_original>
